<compile_context>
chip_gen: v7x
topology: tpu7x:2x2x1
jax: 0.10.0
libtpu: 0.0.40
codegen_flags: <defaults>
</compile_context>

<pallas_src>
import functools

import jax
import jax.numpy as jnp
from jax import lax
from jax.experimental import pallas as pl
from jax.experimental.pallas import tpu as pltpu


# ----------------------------------------------------------------------------
# Fused kernel: LSTM stack -> ReLU -> GRU stack -> last step -> fc head
# ----------------------------------------------------------------------------
def _fused_kernel(*args, T, Bp, Hp, L, classification, w_dtype, seq_dtype):
    # ---- unpack refs: inputs..., output, scratch -------------------------
    idx = 0
    x_ref = args[idx]; idx += 1
    lstm_w = [args[idx + 3 * l: idx + 3 * l + 3] for l in range(L)]
    idx += 3 * L
    gru_w = [args[idx + 4 * l: idx + 4 * l + 4] for l in range(L)]
    idx += 4 * L
    fc1_w_ref, fc1_b_ref, fc2_w_ref, fc2_b_ref = args[idx: idx + 4]
    idx += 4
    out_ref = args[idx]; idx += 1
    seq_ref, proj_ref = args[idx: idx + 2]   # shared projection scratch

    f32 = jnp.float32
    GW = 3 * Hp                               # GRU gate slab width
    # Bounded partial unroll: full unroll only for tiny T, else unroll=8 so the
    # scheduler can overlap adjacent steps without blowing vreg pressure.
    unroll = True if T <= 16 else 8

    # ---------------- stacked LSTM ----------------------------------------
    for l, (wih_ref, whh_ref, b_ref) in enumerate(lstm_w):
        # Hoisted input projection for ALL timesteps (one big MXU matmul).
        # x_ref / seq_ref are already in the MXU dtype -> no full-tensor cast.
        x_in = x_ref[...] if l == 0 else seq_ref[...]
        proj_ref[...] = (jnp.dot(x_in, wih_ref[...],
                                 preferred_element_type=f32) + b_ref[...])

        whh_v = whh_ref[...]
        last_lstm = (l == L - 1)

        def body(t, carry, whh_v=whh_v, last_lstm=last_lstm):
            h, c = carry
            row = pl.multiple_of(t * Bp, Bp)
            gates = proj_ref[pl.ds(row, Bp), :] + jnp.dot(
                h.astype(w_dtype), whh_v, preferred_element_type=f32)
            # Hp-aligned gate slices -> whole-vreg extracts (no lane masking).
            i = jax.nn.sigmoid(gates[:, 0 * Hp:1 * Hp])
            f = jax.nn.sigmoid(gates[:, 1 * Hp:2 * Hp])
            g = jnp.tanh(gates[:, 2 * Hp:3 * Hp])
            o = jax.nn.sigmoid(gates[:, 3 * Hp:4 * Hp])
            c_new = f * c + i * g
            h_new = o * jnp.tanh(c_new)
            # Fuse the LSTM->GRU ReLU into the last layer's per-step store.
            h_store = jnp.maximum(h_new, 0.0) if last_lstm else h_new
            seq_ref[pl.ds(row, Bp), :] = h_store.astype(seq_dtype)
            return (h_new, c_new)

        zeros = jnp.zeros((Bp, Hp), f32)
        lax.fori_loop(0, T, body, (zeros, zeros), unroll=unroll)

    # ---------------- stacked GRU ------------------------------------------
    h_last = None
    for l, (wih_ref, whh_ref, gib_ref, bhn_ref) in enumerate(gru_w):
        # Hoisted input projection (r,z biases b_ih+b_hh already folded in),
        # written into the SAME scratch as the LSTM projection (never co-live).
        proj_ref[:, pl.ds(0, GW)] = (
            jnp.dot(seq_ref[...], wih_ref[...],
                    preferred_element_type=f32) + gib_ref[...])

        whh_v = whh_ref[...]
        # Hoist the (1,Hp)->(Bp,Hp) broadcast out of the serial time loop.
        bhn_b = jnp.broadcast_to(bhn_ref[...], (Bp, Hp))

        def body(t, h, whh_v=whh_v, bhn_b=bhn_b):
            row = pl.multiple_of(t * Bp, Bp)
            gi = proj_ref[pl.ds(row, Bp), pl.ds(0, GW)]
            gh = jnp.dot(h.astype(w_dtype), whh_v, preferred_element_type=f32)
            r = jax.nn.sigmoid(gi[:, 0 * Hp:1 * Hp] + gh[:, 0 * Hp:1 * Hp])
            z = jax.nn.sigmoid(gi[:, 1 * Hp:2 * Hp] + gh[:, 1 * Hp:2 * Hp])
            n = jnp.tanh(gi[:, 2 * Hp:3 * Hp] + r * (gh[:, 2 * Hp:3 * Hp] + bhn_b))
            h_new = (1.0 - z) * n + z * h
            seq_ref[pl.ds(row, Bp), :] = h_new.astype(seq_dtype)
            return h_new

        h_last = lax.fori_loop(0, T, body, jnp.zeros((Bp, Hp), f32),
                               unroll=unroll)

    # ---------------- fc head: fc2(relu(fc1(relu(h_last)))) ---------------
    # NOTE: padded batch rows (B..Bp) and padded hidden lanes (H..Hp) carry
    # zeros / never-read values; all ops here are row/lane independent, so they
    # are benign.  Do not introduce reductions over batch or hidden axes.
    h = jnp.maximum(h_last, 0.0)
    z1 = jnp.dot(h.astype(w_dtype), fc1_w_ref[...],
                 preferred_element_type=f32) + fc1_b_ref[...]
    z1 = jnp.maximum(z1, 0.0)
    out = jnp.dot(z1.astype(w_dtype), fc2_w_ref[...],
                  preferred_element_type=f32) + fc2_b_ref[...]
    if classification:
        out = jax.nn.sigmoid(out)
    out_ref[...] = out.astype(out_ref.dtype)


# ----------------------------------------------------------------------------
# Weight packing helpers (gate-padded, transposed, lane-aligned)
# ----------------------------------------------------------------------------
def _pad_gates_T(w, n_gates, H, Hp, in_pad_to=None):
    """(n_gates*H, Din) PyTorch layout -> (Din[_pad], n_gates*Hp) transposed,
    each gate block lane-padded to Hp with zero columns."""
    Din = w.shape[1]
    blk = w.reshape(n_gates, H, Din)
    blk = jnp.pad(blk, ((0, 0), (0, Hp - H), (0, 0)))
    wt = jnp.transpose(blk, (2, 0, 1)).reshape(Din, n_gates * Hp)
    if in_pad_to is not None and in_pad_to > Din:
        wt = jnp.pad(wt, ((0, in_pad_to - Din), (0, 0)))
    return wt


def _pad_gates_bias(b, n_gates, H, Hp):
    blk = b.reshape(n_gates, H)
    blk = jnp.pad(blk, ((0, 0), (0, Hp - H)))
    return blk.reshape(1, n_gates * Hp)


# ----------------------------------------------------------------------------
# Wrapper
# ----------------------------------------------------------------------------
def lstm_gru_forward(x, params, config, classification=False,
                     weight_dtype=jnp.float32):
    """Pallas implementation of LSTM_GRU.forward.  x: (B, T, input_dim).

    weight_dtype=jnp.bfloat16 is recommended on ALL TPU generations (the MXU is
    natively bf16 even on v5e); gate math, h/c state and accumulation stay f32.
    Validate bf16 accuracy at production T before shipping it as the default
    (recurrent-state rounding compounds over timesteps).
    """
    H = config["hidden_dimension"]
    B, T, D = x.shape
    L = len(params["lstm"])
    O = params["fc2_w"].shape[0]

    Bp = ((B + 7) // 8) * 8                     # pad batch to full sublanes
    Hp = ((H + 127) // 128) * 128               # lane-align every gate block
    Op = ((O + 127) // 128) * 128               # lane-dense final store
    wd = jnp.dtype(weight_dtype)
    f32 = jnp.float32
    use_bf16 = (wd == jnp.dtype(jnp.bfloat16))
    seq_dtype = jnp.bfloat16 if use_bf16 else f32

    # time-major, batch-padded, flattened to (T*Bp, D), pre-cast to MXU dtype
    xt = jnp.transpose(x, (1, 0, 2)).astype(f32)          # (T, B, D)
    xt = jnp.pad(xt, ((0, 0), (0, Bp - B), (0, 0)))        # (T, Bp, D)
    x_flat = xt.reshape(T * Bp, D).astype(wd)

    inputs = [x_flat]
    # LSTM layers: gate-padded W_ih^T, W_hh^T, (b_ih + b_hh)
    for l, p in enumerate(params["lstm"]):
        in_pad = None if l == 0 else Hp
        inputs += [
            _pad_gates_T(p["w_ih"], 4, H, Hp, in_pad_to=in_pad).astype(wd),
            _pad_gates_T(p["w_hh"], 4, H, Hp, in_pad_to=Hp).astype(wd),
            _pad_gates_bias(p["b_ih"] + p["b_hh"], 4, H, Hp).astype(f32),
        ]
    # GRU layers: gate-padded W_ih^T, W_hh^T, folded input-side bias, b_hh_n
    for p in params["gru"]:
        gib = p["b_ih"].at[:2 * H].add(p["b_hh"][:2 * H])   # r,z folded
        bhn = jnp.pad(p["b_hh"][2 * H:].reshape(1, H), ((0, 0), (0, Hp - H)))
        inputs += [
            _pad_gates_T(p["w_ih"], 3, H, Hp, in_pad_to=Hp).astype(wd),
            _pad_gates_T(p["w_hh"], 3, H, Hp, in_pad_to=Hp).astype(wd),
            _pad_gates_bias(gib, 3, H, Hp).astype(f32),
            bhn.astype(f32),
        ]
    # fc head (zero-padded to Hp / Op lanes)
    fc1_wt = jnp.pad(params["fc1_w"].T, ((0, Hp - H), (0, Hp - H))).astype(wd)
    fc1_b = jnp.pad(params["fc1_b"].reshape(1, H), ((0, 0), (0, Hp - H))).astype(f32)
    fc2_wt = jnp.pad(params["fc2_w"].T, ((0, Hp - H), (0, Op - O))).astype(wd)
    fc2_b = jnp.pad(params["fc2_b"].reshape(1, O), ((0, 0), (0, Op - O))).astype(f32)
    inputs += [fc1_wt, fc1_b, fc2_wt, fc2_b]

    kernel = functools.partial(
        _fused_kernel, T=T, Bp=Bp, Hp=Hp, L=L,
        classification=classification, w_dtype=wd, seq_dtype=seq_dtype)

    # Scratch: layer-to-layer sequence + ONE shared hoisted-projection buffer.
    scratch_shapes = [
        pltpu.VMEM((T * Bp, Hp), seq_dtype),     # h sequence between layers
        pltpu.VMEM((T * Bp, 4 * Hp), f32),       # LSTM(4*Hp) / GRU(3*Hp) proj
    ]

    # Explicit VMEM budget (default scoped limit is far below physical).
    def nbytes(a):
        return a.size * jnp.dtype(a.dtype).itemsize
    scratch_bytes = (T * Bp * Hp * jnp.dtype(seq_dtype).itemsize
                     + T * Bp * 4 * Hp * 4)
    total_bytes = sum(nbytes(a) for a in inputs) + Bp * Op * 4 + scratch_bytes
    vmem_limit = int(min(max(2 * total_bytes + (4 << 20), 32 << 20), 128 << 20))

    out = pl.pallas_call(
        kernel,
        out_shape=jax.ShapeDtypeStruct((Bp, Op), f32),
        in_specs=[pl.BlockSpec(memory_space=pltpu.MemorySpace.VMEM)] *
        len(inputs),
        out_specs=pl.BlockSpec(memory_space=pltpu.MemorySpace.VMEM),
        scratch_shapes=scratch_shapes,
        compiler_params=pltpu.CompilerParams(vmem_limit_bytes=vmem_limit),
    )(*inputs)
    return out[:B, :O]


# ----------------------------------------------------------------------------
# Deterministic parameter init (uniform +-1/sqrt(H), like PyTorch RNN/Linear)
# ----------------------------------------------------------------------------
def init_params(key, config):
    D = config["input_dimension"]
    H = config["hidden_dimension"]
    L = config["layers"]
    O = config["output_dimension"]
    bound = 1.0 / float(H) ** 0.5

    keys = iter(jax.random.split(key, 8 * L + 4))

    def u(shape):
        return jax.random.uniform(next(keys), shape, jnp.float32, -bound, bound)

    params = {"lstm": [], "gru": []}
    for l in range(L):
        in_dim = D if l == 0 else H
        params["lstm"].append(dict(
            w_ih=u((4 * H, in_dim)), w_hh=u((4 * H, H)),
            b_ih=u((4 * H,)), b_hh=u((4 * H,))))
        params["gru"].append(dict(
            w_ih=u((3 * H, H)), w_hh=u((3 * H, H)),
            b_ih=u((3 * H,)), b_hh=u((3 * H,))))
    params["fc1_w"] = u((H, H))
    params["fc1_b"] = u((H,))
    params["fc2_w"] = u((O, H))
    params["fc2_b"] = u((O,))
    return params


# ----------------------------------------------------------------------------
# Pure-JAX reference (mirrors PyTorch semantics) for the correctness check
# ----------------------------------------------------------------------------
def reference_forward(x, params, config, classification=False):
    H = config["hidden_dimension"]

    def lstm_layer(seq, p):
        def step(carry, x_t):
            h, c = carry
            gates = (x_t @ p["w_ih"].T + p["b_ih"]
                     + h @ p["w_hh"].T + p["b_hh"])
            i, f, g, o = jnp.split(gates, 4, axis=-1)
            i, f, o = map(jax.nn.sigmoid, (i, f, o))
            g = jnp.tanh(g)
            c = f * c + i * g
            h = o * jnp.tanh(c)
            return (h, c), h
        B = seq.shape[1]
        init = (jnp.zeros((B, H), jnp.float32), jnp.zeros((B, H), jnp.float32))
        _, hs = jax.lax.scan(step, init, seq)
        return hs

    def gru_layer(seq, p):
        def step(h, x_t):
            gi = x_t @ p["w_ih"].T + p["b_ih"]
            gh = h @ p["w_hh"].T + p["b_hh"]
            ir, iz, inn = jnp.split(gi, 3, axis=-1)
            hr, hz, hn = jnp.split(gh, 3, axis=-1)
            r = jax.nn.sigmoid(ir + hr)
            z = jax.nn.sigmoid(iz + hz)
            n = jnp.tanh(inn + r * hn)
            h = (1.0 - z) * n + z * h
            return h, h
        B = seq.shape[1]
        _, hs = jax.lax.scan(step, jnp.zeros((B, H), jnp.float32), seq)
        return hs

    seq = jnp.transpose(x, (1, 0, 2))
    for p in params["lstm"]:
        seq = lstm_layer(seq, p)
    seq = jnp.maximum(seq, 0.0)
    for p in params["gru"]:
        seq = gru_layer(seq, p)
    h_last = seq[-1]
    out = jnp.maximum(h_last, 0.0) @ params["fc1_w"].T + params["fc1_b"]
    out = jnp.maximum(out, 0.0) @ params["fc2_w"].T + params["fc2_b"]
    if classification:
        out = jax.nn.sigmoid(out)
    return out


# ----------------------------------------------------------------------------
if __name__ == "__main__":
    config = dict(input_dimension=8, output_dimension=4, dropout=0.0,
                  layers=1, hidden_dimension=32)
    classification = False

    key = jax.random.PRNGKey(0)
    pkey, xkey = jax.random.split(key)
    params = init_params(pkey, config)

    B, T = 2, 8
    x = jax.random.normal(xkey, (B, T, config["input_dimension"]), jnp.float32)

    ref = reference_forward(x, params, config, classification=classification)

    # f32 weights: must match the PyTorch-semantics reference tightly.
    out_f32 = lstm_gru_forward(x, params, config,
                               classification=classification,
                               weight_dtype=jnp.float32)
    out_f32 = jax.block_until_ready(out_f32)
    assert out_f32.shape == (B, config["output_dimension"])
    assert jnp.allclose(out_f32, ref, atol=1e-4, rtol=1e-4)

    # bf16 weights (recommended on all generations): f32 accumulation + gates.
    out_bf16 = lstm_gru_forward(x, params, config,
                                classification=classification,
                                weight_dtype=jnp.bfloat16)
    out_bf16 = jax.block_until_ready(out_bf16)
    assert out_bf16.shape == (B, config["output_dimension"])
    assert jnp.allclose(out_bf16, ref, atol=1e-1)

    print("KERNEL_OK")
</pallas_src>

<mosaic_0001>
module attributes {stable_mosaic.version = 11 : i64} {
  func.func @_fused_kernel(%arg0: memref<64x8xf32, #tpu.memory_space<vmem>>, %arg1: memref<8x512xf32, #tpu.memory_space<vmem>>, %arg2: memref<128x512xf32, #tpu.memory_space<vmem>>, %arg3: memref<1x512xf32, #tpu.memory_space<vmem>>, %arg4: memref<128x384xf32, #tpu.memory_space<vmem>>, %arg5: memref<128x384xf32, #tpu.memory_space<vmem>>, %arg6: memref<1x384xf32, #tpu.memory_space<vmem>>, %arg7: memref<1x128xf32, #tpu.memory_space<vmem>>, %arg8: memref<128x128xf32, #tpu.memory_space<vmem>>, %arg9: memref<1x128xf32, #tpu.memory_space<vmem>>, %arg10: memref<128x128xf32, #tpu.memory_space<vmem>>, %arg11: memref<1x128xf32, #tpu.memory_space<vmem>>, %arg12: memref<8x128xf32, #tpu.memory_space<vmem>>, %arg13: memref<64x128xf32, #tpu.memory_space<vmem>>, %arg14: memref<64x512xf32, #tpu.memory_space<vmem>>) attributes {dimension_semantics = [], scalar_prefetch = 0 : i64, scratch_operands = 2 : i64, tpu.core_type = #tpu.core_type<tc>} {
    %c0 = arith.constant 0 : index
    %c0_0 = arith.constant 0 : index
    %0 = vector.load %arg0[%c0, %c0_0] : memref<64x8xf32, #tpu.memory_space<vmem>>, vector<64x8xf32>
    %c0_1 = arith.constant 0 : index
    %c0_2 = arith.constant 0 : index
    %1 = vector.load %arg1[%c0_1, %c0_2] : memref<8x512xf32, #tpu.memory_space<vmem>>, vector<8x512xf32>
    %cst = arith.constant dense<0.000000e+00> : vector<64x512xf32>
    %2 = tpu.matmul %0, %1, %cst {dimension_numbers = #tpu.dot_dimension_numbers<[1], [0], [0], [1], [0, 0, 1, 1], [], []>} : vector<64x8xf32>, vector<8x512xf32>, vector<64x512xf32> -> vector<64x512xf32>
    %c0_3 = arith.constant 0 : index
    %c0_4 = arith.constant 0 : index
    %3 = vector.load %arg3[%c0_3, %c0_4] : memref<1x512xf32, #tpu.memory_space<vmem>>, vector<1x512xf32>
    %4 = vector.broadcast %3 : vector<1x512xf32> to vector<64x512xf32>
    %5 = arith.addf %2, %4 : vector<64x512xf32>
    %c0_5 = arith.constant 0 : index
    %c0_6 = arith.constant 0 : index
    %6 = vector.load %arg14[%c0_5, %c0_6] : memref<64x512xf32, #tpu.memory_space<vmem>>, vector<64x512xf32>
    tpu.vector_store %arg14[%c0_5, %c0_6], %5 {strides = array<i32>} : memref<64x512xf32, #tpu.memory_space<vmem>>, vector<64x512xf32>,
    %c0_7 = arith.constant 0 : index
    %c0_8 = arith.constant 0 : index
    %7 = vector.load %arg2[%c0_7, %c0_8] : memref<128x512xf32, #tpu.memory_space<vmem>>, vector<128x512xf32>
    %cst_9 = arith.constant 0.000000e+00 : f32
    %8 = vector.broadcast %cst_9 : f32 to vector<8x128xf32>
    %c0_i32 = arith.constant 0 : i32
    %c8_i32 = arith.constant 8 : i32
    %9 = arith.muli %c0_i32, %c8_i32 : i32
    %10 = tpu.assume_multiple %9, 8 : i32
    %11 = arith.index_cast %10 : i32 to index
    %c0_10 = arith.constant 0 : index
    %12 = vector.load %arg14[%11, %c0_10] : memref<64x512xf32, #tpu.memory_space<vmem>>, vector<8x512xf32>
    %cst_11 = arith.constant dense<0.000000e+00> : vector<8x512xf32>
    %13 = tpu.matmul %8, %7, %cst_11 {dimension_numbers = #tpu.dot_dimension_numbers<[1], [0], [0], [1], [0, 0, 1, 1], [], []>} : vector<8x128xf32>, vector<128x512xf32>, vector<8x512xf32> -> vector<8x512xf32>
    %14 = arith.addf %12, %13 : vector<8x512xf32>
    %15 = vector.extract_strided_slice %14 {offsets = [0, 0], sizes = [8, 128], strides = [1, 1]} : vector<8x512xf32> to vector<8x128xf32>
    %16 = arith.negf %15 : vector<8x128xf32>
    %17 = math.exp %16 : vector<8x128xf32>
    %cst_12 = arith.constant 1.000000e+00 : f32
    %18 = vector.broadcast %cst_12 : f32 to vector<8x128xf32>
    %19 = arith.addf %18, %17 : vector<8x128xf32>
    %20 = arith.divf %18, %19 : vector<8x128xf32>
    %21 = vector.extract_strided_slice %14 {offsets = [0, 128], sizes = [8, 128], strides = [1, 1]} : vector<8x512xf32> to vector<8x128xf32>
    %22 = arith.negf %21 : vector<8x128xf32>
    %23 = math.exp %22 : vector<8x128xf32>
    %cst_13 = arith.constant 1.000000e+00 : f32
    %24 = vector.broadcast %cst_13 : f32 to vector<8x128xf32>
    %25 = arith.addf %24, %23 : vector<8x128xf32>
    %26 = arith.divf %24, %25 : vector<8x128xf32>
    %27 = vector.extract_strided_slice %14 {offsets = [0, 256], sizes = [8, 128], strides = [1, 1]} : vector<8x512xf32> to vector<8x128xf32>
    %28 = math.tanh %27 : vector<8x128xf32>
    %29 = vector.extract_strided_slice %14 {offsets = [0, 384], sizes = [8, 128], strides = [1, 1]} : vector<8x512xf32> to vector<8x128xf32>
    %30 = arith.negf %29 : vector<8x128xf32>
    %31 = math.exp %30 : vector<8x128xf32>
    %cst_14 = arith.constant 1.000000e+00 : f32
    %32 = vector.broadcast %cst_14 : f32 to vector<8x128xf32>
    %33 = arith.addf %32, %31 : vector<8x128xf32>
    %34 = arith.divf %32, %33 : vector<8x128xf32>
    %35 = arith.mulf %26, %8 : vector<8x128xf32>
    %36 = arith.mulf %20, %28 : vector<8x128xf32>
    %37 = arith.addf %35, %36 : vector<8x128xf32>
    %38 = math.tanh %37 : vector<8x128xf32>
    %39 = arith.mulf %34, %38 : vector<8x128xf32>
    %cst_15 = arith.constant 0.000000e+00 : f32
    %40 = vector.broadcast %cst_15 : f32 to vector<8x128xf32>
    %41 = arith.maximumf %39, %40 : vector<8x128xf32>
    %42 = arith.index_cast %10 : i32 to index
    %c0_16 = arith.constant 0 : index
    %43 = vector.load %arg13[%42, %c0_16] : memref<64x128xf32, #tpu.memory_space<vmem>>, vector<8x128xf32>
    tpu.vector_store %arg13[%42, %c0_16], %41 {strides = array<i32>} : memref<64x128xf32, #tpu.memory_space<vmem>>, vector<8x128xf32>,
    %c1_i32 = arith.constant 1 : i32
    %c8_i32_17 = arith.constant 8 : i32
    %44 = arith.muli %c1_i32, %c8_i32_17 : i32
    %45 = tpu.assume_multiple %44, 8 : i32
    %46 = arith.index_cast %45 : i32 to index
    %c0_18 = arith.constant 0 : index
    %47 = vector.load %arg14[%46, %c0_18] : memref<64x512xf32, #tpu.memory_space<vmem>>, vector<8x512xf32>
    %cst_19 = arith.constant dense<0.000000e+00> : vector<8x512xf32>
    %48 = tpu.matmul %39, %7, %cst_19 {dimension_numbers = #tpu.dot_dimension_numbers<[1], [0], [0], [1], [0, 0, 1, 1], [], []>} : vector<8x128xf32>, vector<128x512xf32>, vector<8x512xf32> -> vector<8x512xf32>
    %49 = arith.addf %47, %48 : vector<8x512xf32>
    %50 = vector.extract_strided_slice %49 {offsets = [0, 0], sizes = [8, 128], strides = [1, 1]} : vector<8x512xf32> to vector<8x128xf32>
    %51 = arith.negf %50 : vector<8x128xf32>
    %52 = math.exp %51 : vector<8x128xf32>
    %cst_20 = arith.constant 1.000000e+00 : f32
    %53 = vector.broadcast %cst_20 : f32 to vector<8x128xf32>
    %54 = arith.addf %53, %52 : vector<8x128xf32>
    %55 = arith.divf %53, %54 : vector<8x128xf32>
    %56 = vector.extract_strided_slice %49 {offsets = [0, 128], sizes = [8, 128], strides = [1, 1]} : vector<8x512xf32> to vector<8x128xf32>
    %57 = arith.negf %56 : vector<8x128xf32>
    %58 = math.exp %57 : vector<8x128xf32>
    %cst_21 = arith.constant 1.000000e+00 : f32
    %59 = vector.broadcast %cst_21 : f32 to vector<8x128xf32>
    %60 = arith.addf %59, %58 : vector<8x128xf32>
    %61 = arith.divf %59, %60 : vector<8x128xf32>
    %62 = vector.extract_strided_slice %49 {offsets = [0, 256], sizes = [8, 128], strides = [1, 1]} : vector<8x512xf32> to vector<8x128xf32>
    %63 = math.tanh %62 : vector<8x128xf32>
    %64 = vector.extract_strided_slice %49 {offsets = [0, 384], sizes = [8, 128], strides = [1, 1]} : vector<8x512xf32> to vector<8x128xf32>
    %65 = arith.negf %64 : vector<8x128xf32>
    %66 = math.exp %65 : vector<8x128xf32>
    %cst_22 = arith.constant 1.000000e+00 : f32
    %67 = vector.broadcast %cst_22 : f32 to vector<8x128xf32>
    %68 = arith.addf %67, %66 : vector<8x128xf32>
    %69 = arith.divf %67, %68 : vector<8x128xf32>
    %70 = arith.mulf %61, %37 : vector<8x128xf32>
    %71 = arith.mulf %55, %63 : vector<8x128xf32>
    %72 = arith.addf %70, %71 : vector<8x128xf32>
    %73 = math.tanh %72 : vector<8x128xf32>
    %74 = arith.mulf %69, %73 : vector<8x128xf32>
    %cst_23 = arith.constant 0.000000e+00 : f32
    %75 = vector.broadcast %cst_23 : f32 to vector<8x128xf32>
    %76 = arith.maximumf %74, %75 : vector<8x128xf32>
    %77 = arith.index_cast %45 : i32 to index
    %c0_24 = arith.constant 0 : index
    %78 = vector.load %arg13[%77, %c0_24] : memref<64x128xf32, #tpu.memory_space<vmem>>, vector<8x128xf32>
    tpu.vector_store %arg13[%77, %c0_24], %76 {strides = array<i32>} : memref<64x128xf32, #tpu.memory_space<vmem>>, vector<8x128xf32>,
    %c2_i32 = arith.constant 2 : i32
    %c8_i32_25 = arith.constant 8 : i32
    %79 = arith.muli %c2_i32, %c8_i32_25 : i32
    %80 = tpu.assume_multiple %79, 8 : i32
    %81 = arith.index_cast %80 : i32 to index
    %c0_26 = arith.constant 0 : index
    %82 = vector.load %arg14[%81, %c0_26] : memref<64x512xf32, #tpu.memory_space<vmem>>, vector<8x512xf32>
    %cst_27 = arith.constant dense<0.000000e+00> : vector<8x512xf32>
    %83 = tpu.matmul %74, %7, %cst_27 {dimension_numbers = #tpu.dot_dimension_numbers<[1], [0], [0], [1], [0, 0, 1, 1], [], []>} : vector<8x128xf32>, vector<128x512xf32>, vector<8x512xf32> -> vector<8x512xf32>
    %84 = arith.addf %82, %83 : vector<8x512xf32>
    %85 = vector.extract_strided_slice %84 {offsets = [0, 0], sizes = [8, 128], strides = [1, 1]} : vector<8x512xf32> to vector<8x128xf32>
    %86 = arith.negf %85 : vector<8x128xf32>
    %87 = math.exp %86 : vector<8x128xf32>
    %cst_28 = arith.constant 1.000000e+00 : f32
    %88 = vector.broadcast %cst_28 : f32 to vector<8x128xf32>
    %89 = arith.addf %88, %87 : vector<8x128xf32>
    %90 = arith.divf %88, %89 : vector<8x128xf32>
    %91 = vector.extract_strided_slice %84 {offsets = [0, 128], sizes = [8, 128], strides = [1, 1]} : vector<8x512xf32> to vector<8x128xf32>
    %92 = arith.negf %91 : vector<8x128xf32>
    %93 = math.exp %92 : vector<8x128xf32>
    %cst_29 = arith.constant 1.000000e+00 : f32
    %94 = vector.broadcast %cst_29 : f32 to vector<8x128xf32>
    %95 = arith.addf %94, %93 : vector<8x128xf32>
    %96 = arith.divf %94, %95 : vector<8x128xf32>
    %97 = vector.extract_strided_slice %84 {offsets = [0, 256], sizes = [8, 128], strides = [1, 1]} : vector<8x512xf32> to vector<8x128xf32>
    %98 = math.tanh %97 : vector<8x128xf32>
    %99 = vector.extract_strided_slice %84 {offsets = [0, 384], sizes = [8, 128], strides = [1, 1]} : vector<8x512xf32> to vector<8x128xf32>
    %100 = arith.negf %99 : vector<8x128xf32>
    %101 = math.exp %100 : vector<8x128xf32>
    %cst_30 = arith.constant 1.000000e+00 : f32
    %102 = vector.broadcast %cst_30 : f32 to vector<8x128xf32>
    %103 = arith.addf %102, %101 : vector<8x128xf32>
    %104 = arith.divf %102, %103 : vector<8x128xf32>
    %105 = arith.mulf %96, %72 : vector<8x128xf32>
    %106 = arith.mulf %90, %98 : vector<8x128xf32>
    %107 = arith.addf %105, %106 : vector<8x128xf32>
    %108 = math.tanh %107 : vector<8x128xf32>
    %109 = arith.mulf %104, %108 : vector<8x128xf32>
    %cst_31 = arith.constant 0.000000e+00 : f32
    %110 = vector.broadcast %cst_31 : f32 to vector<8x128xf32>
    %111 = arith.maximumf %109, %110 : vector<8x128xf32>
    %112 = arith.index_cast %80 : i32 to index
    %c0_32 = arith.constant 0 : index
    %113 = vector.load %arg13[%112, %c0_32] : memref<64x128xf32, #tpu.memory_space<vmem>>, vector<8x128xf32>
    tpu.vector_store %arg13[%112, %c0_32], %111 {strides = array<i32>} : memref<64x128xf32, #tpu.memory_space<vmem>>, vector<8x128xf32>,
    %c3_i32 = arith.constant 3 : i32
    %c8_i32_33 = arith.constant 8 : i32
    %114 = arith.muli %c3_i32, %c8_i32_33 : i32
    %115 = tpu.assume_multiple %114, 8 : i32
    %116 = arith.index_cast %115 : i32 to index
    %c0_34 = arith.constant 0 : index
    %117 = vector.load %arg14[%116, %c0_34] : memref<64x512xf32, #tpu.memory_space<vmem>>, vector<8x512xf32>
    %cst_35 = arith.constant dense<0.000000e+00> : vector<8x512xf32>
    %118 = tpu.matmul %109, %7, %cst_35 {dimension_numbers = #tpu.dot_dimension_numbers<[1], [0], [0], [1], [0, 0, 1, 1], [], []>} : vector<8x128xf32>, vector<128x512xf32>, vector<8x512xf32> -> vector<8x512xf32>
    %119 = arith.addf %117, %118 : vector<8x512xf32>
    %120 = vector.extract_strided_slice %119 {offsets = [0, 0], sizes = [8, 128], strides = [1, 1]} : vector<8x512xf32> to vector<8x128xf32>
    %121 = arith.negf %120 : vector<8x128xf32>
    %122 = math.exp %121 : vector<8x128xf32>
    %cst_36 = arith.constant 1.000000e+00 : f32
    %123 = vector.broadcast %cst_36 : f32 to vector<8x128xf32>
    %124 = arith.addf %123, %122 : vector<8x128xf32>
    %125 = arith.divf %123, %124 : vector<8x128xf32>
    %126 = vector.extract_strided_slice %119 {offsets = [0, 128], sizes = [8, 128], strides = [1, 1]} : vector<8x512xf32> to vector<8x128xf32>
    %127 = arith.negf %126 : vector<8x128xf32>
    %128 = math.exp %127 : vector<8x128xf32>
    %cst_37 = arith.constant 1.000000e+00 : f32
    %129 = vector.broadcast %cst_37 : f32 to vector<8x128xf32>
    %130 = arith.addf %129, %128 : vector<8x128xf32>
    %131 = arith.divf %129, %130 : vector<8x128xf32>
    %132 = vector.extract_strided_slice %119 {offsets = [0, 256], sizes = [8, 128], strides = [1, 1]} : vector<8x512xf32> to vector<8x128xf32>
    %133 = math.tanh %132 : vector<8x128xf32>
    %134 = vector.extract_strided_slice %119 {offsets = [0, 384], sizes = [8, 128], strides = [1, 1]} : vector<8x512xf32> to vector<8x128xf32>
    %135 = arith.negf %134 : vector<8x128xf32>
    %136 = math.exp %135 : vector<8x128xf32>
    %cst_38 = arith.constant 1.000000e+00 : f32
    %137 = vector.broadcast %cst_38 : f32 to vector<8x128xf32>
    %138 = arith.addf %137, %136 : vector<8x128xf32>
    %139 = arith.divf %137, %138 : vector<8x128xf32>
    %140 = arith.mulf %131, %107 : vector<8x128xf32>
    %141 = arith.mulf %125, %133 : vector<8x128xf32>
    %142 = arith.addf %140, %141 : vector<8x128xf32>
    %143 = math.tanh %142 : vector<8x128xf32>
    %144 = arith.mulf %139, %143 : vector<8x128xf32>
    %cst_39 = arith.constant 0.000000e+00 : f32
    %145 = vector.broadcast %cst_39 : f32 to vector<8x128xf32>
    %146 = arith.maximumf %144, %145 : vector<8x128xf32>
    %147 = arith.index_cast %115 : i32 to index
    %c0_40 = arith.constant 0 : index
    %148 = vector.load %arg13[%147, %c0_40] : memref<64x128xf32, #tpu.memory_space<vmem>>, vector<8x128xf32>
    tpu.vector_store %arg13[%147, %c0_40], %146 {strides = array<i32>} : memref<64x128xf32, #tpu.memory_space<vmem>>, vector<8x128xf32>,
    %c4_i32 = arith.constant 4 : i32
    %c8_i32_41 = arith.constant 8 : i32
    %149 = arith.muli %c4_i32, %c8_i32_41 : i32
    %150 = tpu.assume_multiple %149, 8 : i32
    %151 = arith.index_cast %150 : i32 to index
    %c0_42 = arith.constant 0 : index
    %152 = vector.load %arg14[%151, %c0_42] : memref<64x512xf32, #tpu.memory_space<vmem>>, vector<8x512xf32>
    %cst_43 = arith.constant dense<0.000000e+00> : vector<8x512xf32>
    %153 = tpu.matmul %144, %7, %cst_43 {dimension_numbers = #tpu.dot_dimension_numbers<[1], [0], [0], [1], [0, 0, 1, 1], [], []>} : vector<8x128xf32>, vector<128x512xf32>, vector<8x512xf32> -> vector<8x512xf32>
    %154 = arith.addf %152, %153 : vector<8x512xf32>
    %155 = vector.extract_strided_slice %154 {offsets = [0, 0], sizes = [8, 128], strides = [1, 1]} : vector<8x512xf32> to vector<8x128xf32>
    %156 = arith.negf %155 : vector<8x128xf32>
    %157 = math.exp %156 : vector<8x128xf32>
    %cst_44 = arith.constant 1.000000e+00 : f32
    %158 = vector.broadcast %cst_44 : f32 to vector<8x128xf32>
    %159 = arith.addf %158, %157 : vector<8x128xf32>
    %160 = arith.divf %158, %159 : vector<8x128xf32>
    %161 = vector.extract_strided_slice %154 {offsets = [0, 128], sizes = [8, 128], strides = [1, 1]} : vector<8x512xf32> to vector<8x128xf32>
    %162 = arith.negf %161 : vector<8x128xf32>
    %163 = math.exp %162 : vector<8x128xf32>
    %cst_45 = arith.constant 1.000000e+00 : f32
    %164 = vector.broadcast %cst_45 : f32 to vector<8x128xf32>
    %165 = arith.addf %164, %163 : vector<8x128xf32>
    %166 = arith.divf %164, %165 : vector<8x128xf32>
    %167 = vector.extract_strided_slice %154 {offsets = [0, 256], sizes = [8, 128], strides = [1, 1]} : vector<8x512xf32> to vector<8x128xf32>
    %168 = math.tanh %167 : vector<8x128xf32>
    %169 = vector.extract_strided_slice %154 {offsets = [0, 384], sizes = [8, 128], strides = [1, 1]} : vector<8x512xf32> to vector<8x128xf32>
    %170 = arith.negf %169 : vector<8x128xf32>
    %171 = math.exp %170 : vector<8x128xf32>
    %cst_46 = arith.constant 1.000000e+00 : f32
    %172 = vector.broadcast %cst_46 : f32 to vector<8x128xf32>
    %173 = arith.addf %172, %171 : vector<8x128xf32>
    %174 = arith.divf %172, %173 : vector<8x128xf32>
    %175 = arith.mulf %166, %142 : vector<8x128xf32>
    %176 = arith.mulf %160, %168 : vector<8x128xf32>
    %177 = arith.addf %175, %176 : vector<8x128xf32>
    %178 = math.tanh %177 : vector<8x128xf32>
    %179 = arith.mulf %174, %178 : vector<8x128xf32>
    %cst_47 = arith.constant 0.000000e+00 : f32
    %180 = vector.broadcast %cst_47 : f32 to vector<8x128xf32>
    %181 = arith.maximumf %179, %180 : vector<8x128xf32>
    %182 = arith.index_cast %150 : i32 to index
    %c0_48 = arith.constant 0 : index
    %183 = vector.load %arg13[%182, %c0_48] : memref<64x128xf32, #tpu.memory_space<vmem>>, vector<8x128xf32>
    tpu.vector_store %arg13[%182, %c0_48], %181 {strides = array<i32>} : memref<64x128xf32, #tpu.memory_space<vmem>>, vector<8x128xf32>,
    %c5_i32 = arith.constant 5 : i32
    %c8_i32_49 = arith.constant 8 : i32
    %184 = arith.muli %c5_i32, %c8_i32_49 : i32
    %185 = tpu.assume_multiple %184, 8 : i32
    %186 = arith.index_cast %185 : i32 to index
    %c0_50 = arith.constant 0 : index
    %187 = vector.load %arg14[%186, %c0_50] : memref<64x512xf32, #tpu.memory_space<vmem>>, vector<8x512xf32>
    %cst_51 = arith.constant dense<0.000000e+00> : vector<8x512xf32>
    %188 = tpu.matmul %179, %7, %cst_51 {dimension_numbers = #tpu.dot_dimension_numbers<[1], [0], [0], [1], [0, 0, 1, 1], [], []>} : vector<8x128xf32>, vector<128x512xf32>, vector<8x512xf32> -> vector<8x512xf32>
    %189 = arith.addf %187, %188 : vector<8x512xf32>
    %190 = vector.extract_strided_slice %189 {offsets = [0, 0], sizes = [8, 128], strides = [1, 1]} : vector<8x512xf32> to vector<8x128xf32>
    %191 = arith.negf %190 : vector<8x128xf32>
    %192 = math.exp %191 : vector<8x128xf32>
    %cst_52 = arith.constant 1.000000e+00 : f32
    %193 = vector.broadcast %cst_52 : f32 to vector<8x128xf32>
    %194 = arith.addf %193, %192 : vector<8x128xf32>
    %195 = arith.divf %193, %194 : vector<8x128xf32>
    %196 = vector.extract_strided_slice %189 {offsets = [0, 128], sizes = [8, 128], strides = [1, 1]} : vector<8x512xf32> to vector<8x128xf32>
    %197 = arith.negf %196 : vector<8x128xf32>
    %198 = math.exp %197 : vector<8x128xf32>
    %cst_53 = arith.constant 1.000000e+00 : f32
    %199 = vector.broadcast %cst_53 : f32 to vector<8x128xf32>
    %200 = arith.addf %199, %198 : vector<8x128xf32>
    %201 = arith.divf %199, %200 : vector<8x128xf32>
    %202 = vector.extract_strided_slice %189 {offsets = [0, 256], sizes = [8, 128], strides = [1, 1]} : vector<8x512xf32> to vector<8x128xf32>
    %203 = math.tanh %202 : vector<8x128xf32>
    %204 = vector.extract_strided_slice %189 {offsets = [0, 384], sizes = [8, 128], strides = [1, 1]} : vector<8x512xf32> to vector<8x128xf32>
    %205 = arith.negf %204 : vector<8x128xf32>
    %206 = math.exp %205 : vector<8x128xf32>
    %cst_54 = arith.constant 1.000000e+00 : f32
    %207 = vector.broadcast %cst_54 : f32 to vector<8x128xf32>
    %208 = arith.addf %207, %206 : vector<8x128xf32>
    %209 = arith.divf %207, %208 : vector<8x128xf32>
    %210 = arith.mulf %201, %177 : vector<8x128xf32>
    %211 = arith.mulf %195, %203 : vector<8x128xf32>
    %212 = arith.addf %210, %211 : vector<8x128xf32>
    %213 = math.tanh %212 : vector<8x128xf32>
    %214 = arith.mulf %209, %213 : vector<8x128xf32>
    %cst_55 = arith.constant 0.000000e+00 : f32
    %215 = vector.broadcast %cst_55 : f32 to vector<8x128xf32>
    %216 = arith.maximumf %214, %215 : vector<8x128xf32>
    %217 = arith.index_cast %185 : i32 to index
    %c0_56 = arith.constant 0 : index
    %218 = vector.load %arg13[%217, %c0_56] : memref<64x128xf32, #tpu.memory_space<vmem>>, vector<8x128xf32>
    tpu.vector_store %arg13[%217, %c0_56], %216 {strides = array<i32>} : memref<64x128xf32, #tpu.memory_space<vmem>>, vector<8x128xf32>,
    %c6_i32 = arith.constant 6 : i32
    %c8_i32_57 = arith.constant 8 : i32
    %219 = arith.muli %c6_i32, %c8_i32_57 : i32
    %220 = tpu.assume_multiple %219, 8 : i32
    %221 = arith.index_cast %220 : i32 to index
    %c0_58 = arith.constant 0 : index
    %222 = vector.load %arg14[%221, %c0_58] : memref<64x512xf32, #tpu.memory_space<vmem>>, vector<8x512xf32>
    %cst_59 = arith.constant dense<0.000000e+00> : vector<8x512xf32>
    %223 = tpu.matmul %214, %7, %cst_59 {dimension_numbers = #tpu.dot_dimension_numbers<[1], [0], [0], [1], [0, 0, 1, 1], [], []>} : vector<8x128xf32>, vector<128x512xf32>, vector<8x512xf32> -> vector<8x512xf32>
    %224 = arith.addf %222, %223 : vector<8x512xf32>
    %225 = vector.extract_strided_slice %224 {offsets = [0, 0], sizes = [8, 128], strides = [1, 1]} : vector<8x512xf32> to vector<8x128xf32>
    %226 = arith.negf %225 : vector<8x128xf32>
    %227 = math.exp %226 : vector<8x128xf32>
    %cst_60 = arith.constant 1.000000e+00 : f32
    %228 = vector.broadcast %cst_60 : f32 to vector<8x128xf32>
    %229 = arith.addf %228, %227 : vector<8x128xf32>
    %230 = arith.divf %228, %229 : vector<8x128xf32>
    %231 = vector.extract_strided_slice %224 {offsets = [0, 128], sizes = [8, 128], strides = [1, 1]} : vector<8x512xf32> to vector<8x128xf32>
    %232 = arith.negf %231 : vector<8x128xf32>
    %233 = math.exp %232 : vector<8x128xf32>
    %cst_61 = arith.constant 1.000000e+00 : f32
    %234 = vector.broadcast %cst_61 : f32 to vector<8x128xf32>
    %235 = arith.addf %234, %233 : vector<8x128xf32>
    %236 = arith.divf %234, %235 : vector<8x128xf32>
    %237 = vector.extract_strided_slice %224 {offsets = [0, 256], sizes = [8, 128], strides = [1, 1]} : vector<8x512xf32> to vector<8x128xf32>
    %238 = math.tanh %237 : vector<8x128xf32>
    %239 = vector.extract_strided_slice %224 {offsets = [0, 384], sizes = [8, 128], strides = [1, 1]} : vector<8x512xf32> to vector<8x128xf32>
    %240 = arith.negf %239 : vector<8x128xf32>
    %241 = math.exp %240 : vector<8x128xf32>
    %cst_62 = arith.constant 1.000000e+00 : f32
    %242 = vector.broadcast %cst_62 : f32 to vector<8x128xf32>
    %243 = arith.addf %242, %241 : vector<8x128xf32>
    %244 = arith.divf %242, %243 : vector<8x128xf32>
    %245 = arith.mulf %236, %212 : vector<8x128xf32>
    %246 = arith.mulf %230, %238 : vector<8x128xf32>
    %247 = arith.addf %245, %246 : vector<8x128xf32>
    %248 = math.tanh %247 : vector<8x128xf32>
    %249 = arith.mulf %244, %248 : vector<8x128xf32>
    %cst_63 = arith.constant 0.000000e+00 : f32
    %250 = vector.broadcast %cst_63 : f32 to vector<8x128xf32>
    %251 = arith.maximumf %249, %250 : vector<8x128xf32>
    %252 = arith.index_cast %220 : i32 to index
    %c0_64 = arith.constant 0 : index
    %253 = vector.load %arg13[%252, %c0_64] : memref<64x128xf32, #tpu.memory_space<vmem>>, vector<8x128xf32>
    tpu.vector_store %arg13[%252, %c0_64], %251 {strides = array<i32>} : memref<64x128xf32, #tpu.memory_space<vmem>>, vector<8x128xf32>,
    %c7_i32 = arith.constant 7 : i32
    %c8_i32_65 = arith.constant 8 : i32
    %254 = arith.muli %c7_i32, %c8_i32_65 : i32
    %255 = tpu.assume_multiple %254, 8 : i32
    %256 = arith.index_cast %255 : i32 to index
    %c0_66 = arith.constant 0 : index
    %257 = vector.load %arg14[%256, %c0_66] : memref<64x512xf32, #tpu.memory_space<vmem>>, vector<8x512xf32>
    %cst_67 = arith.constant dense<0.000000e+00> : vector<8x512xf32>
    %258 = tpu.matmul %249, %7, %cst_67 {dimension_numbers = #tpu.dot_dimension_numbers<[1], [0], [0], [1], [0, 0, 1, 1], [], []>} : vector<8x128xf32>, vector<128x512xf32>, vector<8x512xf32> -> vector<8x512xf32>
    %259 = arith.addf %257, %258 : vector<8x512xf32>
    %260 = vector.extract_strided_slice %259 {offsets = [0, 0], sizes = [8, 128], strides = [1, 1]} : vector<8x512xf32> to vector<8x128xf32>
    %261 = arith.negf %260 : vector<8x128xf32>
    %262 = math.exp %261 : vector<8x128xf32>
    %cst_68 = arith.constant 1.000000e+00 : f32
    %263 = vector.broadcast %cst_68 : f32 to vector<8x128xf32>
    %264 = arith.addf %263, %262 : vector<8x128xf32>
    %265 = arith.divf %263, %264 : vector<8x128xf32>
    %266 = vector.extract_strided_slice %259 {offsets = [0, 128], sizes = [8, 128], strides = [1, 1]} : vector<8x512xf32> to vector<8x128xf32>
    %267 = arith.negf %266 : vector<8x128xf32>
    %268 = math.exp %267 : vector<8x128xf32>
    %cst_69 = arith.constant 1.000000e+00 : f32
    %269 = vector.broadcast %cst_69 : f32 to vector<8x128xf32>
    %270 = arith.addf %269, %268 : vector<8x128xf32>
    %271 = arith.divf %269, %270 : vector<8x128xf32>
    %272 = vector.extract_strided_slice %259 {offsets = [0, 256], sizes = [8, 128], strides = [1, 1]} : vector<8x512xf32> to vector<8x128xf32>
    %273 = math.tanh %272 : vector<8x128xf32>
    %274 = vector.extract_strided_slice %259 {offsets = [0, 384], sizes = [8, 128], strides = [1, 1]} : vector<8x512xf32> to vector<8x128xf32>
    %275 = arith.negf %274 : vector<8x128xf32>
    %276 = math.exp %275 : vector<8x128xf32>
    %cst_70 = arith.constant 1.000000e+00 : f32
    %277 = vector.broadcast %cst_70 : f32 to vector<8x128xf32>
    %278 = arith.addf %277, %276 : vector<8x128xf32>
    %279 = arith.divf %277, %278 : vector<8x128xf32>
    %280 = arith.mulf %271, %247 : vector<8x128xf32>
    %281 = arith.mulf %265, %273 : vector<8x128xf32>
    %282 = arith.addf %280, %281 : vector<8x128xf32>
    %283 = math.tanh %282 : vector<8x128xf32>
    %284 = arith.mulf %279, %283 : vector<8x128xf32>
    %cst_71 = arith.constant 0.000000e+00 : f32
    %285 = vector.broadcast %cst_71 : f32 to vector<8x128xf32>
    %286 = arith.maximumf %284, %285 : vector<8x128xf32>
    %287 = arith.index_cast %255 : i32 to index
    %c0_72 = arith.constant 0 : index
    %288 = vector.load %arg13[%287, %c0_72] : memref<64x128xf32, #tpu.memory_space<vmem>>, vector<8x128xf32>
    tpu.vector_store %arg13[%287, %c0_72], %286 {strides = array<i32>} : memref<64x128xf32, #tpu.memory_space<vmem>>, vector<8x128xf32>,
    %c8_i32_73 = arith.constant 8 : i32
    %c0_74 = arith.constant 0 : index
    %c0_75 = arith.constant 0 : index
    %289 = vector.load %arg13[%c0_74, %c0_75] : memref<64x128xf32, #tpu.memory_space<vmem>>, vector<64x128xf32>
    %c0_76 = arith.constant 0 : index
    %c0_77 = arith.constant 0 : index
    %290 = vector.load %arg4[%c0_76, %c0_77] : memref<128x384xf32, #tpu.memory_space<vmem>>, vector<128x384xf32>
    %cst_78 = arith.constant dense<0.000000e+00> : vector<64x384xf32>
    %291 = tpu.matmul %289, %290, %cst_78 {dimension_numbers = #tpu.dot_dimension_numbers<[1], [0], [0], [1], [0, 0, 1, 1], [], []>} : vector<64x128xf32>, vector<128x384xf32>, vector<64x384xf32> -> vector<64x384xf32>
    %c0_79 = arith.constant 0 : index
    %c0_80 = arith.constant 0 : index
    %292 = vector.load %arg6[%c0_79, %c0_80] : memref<1x384xf32, #tpu.memory_space<vmem>>, vector<1x384xf32>
    %293 = vector.broadcast %292 : vector<1x384xf32> to vector<64x384xf32>
    %294 = arith.addf %291, %293 : vector<64x384xf32>
    %c0_81 = arith.constant 0 : index
    %c0_82 = arith.constant 0 : index
    %295 = vector.load %arg14[%c0_81, %c0_82] : memref<64x512xf32, #tpu.memory_space<vmem>>, vector<64x384xf32>
    tpu.vector_store %arg14[%c0_81, %c0_82], %294 {strides = array<i32>} : memref<64x512xf32, #tpu.memory_space<vmem>>, vector<64x384xf32>,
    %c0_83 = arith.constant 0 : index
    %c0_84 = arith.constant 0 : index
    %296 = vector.load %arg5[%c0_83, %c0_84] : memref<128x384xf32, #tpu.memory_space<vmem>>, vector<128x384xf32>
    %c0_85 = arith.constant 0 : index
    %c0_86 = arith.constant 0 : index
    %297 = vector.load %arg7[%c0_85, %c0_86] : memref<1x128xf32, #tpu.memory_space<vmem>>, vector<1x128xf32>
    %298 = vector.shape_cast %297 : vector<1x128xf32> to vector<1x128xf32>
    %299 = vector.broadcast %298 : vector<1x128xf32> to vector<8x128xf32>
    %cst_87 = arith.constant 0.000000e+00 : f32
    %300 = vector.broadcast %cst_87 : f32 to vector<8x128xf32>
    %c0_i32_88 = arith.constant 0 : i32
    %c8_i32_89 = arith.constant 8 : i32
    %301 = arith.muli %c0_i32_88, %c8_i32_89 : i32
    %302 = tpu.assume_multiple %301, 8 : i32
    %303 = arith.index_cast %302 : i32 to index
    %c0_90 = arith.constant 0 : index
    %304 = vector.load %arg14[%303, %c0_90] : memref<64x512xf32, #tpu.memory_space<vmem>>, vector<8x384xf32>
    %cst_91 = arith.constant dense<0.000000e+00> : vector<8x384xf32>
    %305 = tpu.matmul %300, %296, %cst_91 {dimension_numbers = #tpu.dot_dimension_numbers<[1], [0], [0], [1], [0, 0, 1, 1], [], []>} : vector<8x128xf32>, vector<128x384xf32>, vector<8x384xf32> -> vector<8x384xf32>
    %306 = vector.extract_strided_slice %304 {offsets = [0, 0], sizes = [8, 128], strides = [1, 1]} : vector<8x384xf32> to vector<8x128xf32>
    %307 = vector.extract_strided_slice %305 {offsets = [0, 0], sizes = [8, 128], strides = [1, 1]} : vector<8x384xf32> to vector<8x128xf32>
    %308 = arith.addf %306, %307 : vector<8x128xf32>
    %309 = arith.negf %308 : vector<8x128xf32>
    %310 = math.exp %309 : vector<8x128xf32>
    %cst_92 = arith.constant 1.000000e+00 : f32
    %311 = vector.broadcast %cst_92 : f32 to vector<8x128xf32>
    %312 = arith.addf %311, %310 : vector<8x128xf32>
    %313 = arith.divf %311, %312 : vector<8x128xf32>
    %314 = vector.extract_strided_slice %304 {offsets = [0, 128], sizes = [8, 128], strides = [1, 1]} : vector<8x384xf32> to vector<8x128xf32>
    %315 = vector.extract_strided_slice %305 {offsets = [0, 128], sizes = [8, 128], strides = [1, 1]} : vector<8x384xf32> to vector<8x128xf32>
    %316 = arith.addf %314, %315 : vector<8x128xf32>
    %317 = arith.negf %316 : vector<8x128xf32>
    %318 = math.exp %317 : vector<8x128xf32>
    %cst_93 = arith.constant 1.000000e+00 : f32
    %319 = vector.broadcast %cst_93 : f32 to vector<8x128xf32>
    %320 = arith.addf %319, %318 : vector<8x128xf32>
    %321 = arith.divf %319, %320 : vector<8x128xf32>
    %322 = vector.extract_strided_slice %304 {offsets = [0, 256], sizes = [8, 128], strides = [1, 1]} : vector<8x384xf32> to vector<8x128xf32>
    %323 = vector.extract_strided_slice %305 {offsets = [0, 256], sizes = [8, 128], strides = [1, 1]} : vector<8x384xf32> to vector<8x128xf32>
    %324 = arith.addf %323, %299 : vector<8x128xf32>
    %325 = arith.mulf %313, %324 : vector<8x128xf32>
    %326 = arith.addf %322, %325 : vector<8x128xf32>
    %327 = math.tanh %326 : vector<8x128xf32>
    %cst_94 = arith.constant 1.000000e+00 : f32
    %328 = vector.broadcast %cst_94 : f32 to vector<8x128xf32>
    %329 = arith.subf %328, %321 : vector<8x128xf32>
    %330 = arith.mulf %329, %327 : vector<8x128xf32>
    %331 = arith.mulf %321, %300 : vector<8x128xf32>
    %332 = arith.addf %330, %331 : vector<8x128xf32>
    %333 = arith.index_cast %302 : i32 to index
    %c0_95 = arith.constant 0 : index
    %334 = vector.load %arg13[%333, %c0_95] : memref<64x128xf32, #tpu.memory_space<vmem>>, vector<8x128xf32>
    tpu.vector_store %arg13[%333, %c0_95], %332 {strides = array<i32>} : memref<64x128xf32, #tpu.memory_space<vmem>>, vector<8x128xf32>,
    %c1_i32_96 = arith.constant 1 : i32
    %c8_i32_97 = arith.constant 8 : i32
    %335 = arith.muli %c1_i32_96, %c8_i32_97 : i32
    %336 = tpu.assume_multiple %335, 8 : i32
    %337 = arith.index_cast %336 : i32 to index
    %c0_98 = arith.constant 0 : index
    %338 = vector.load %arg14[%337, %c0_98] : memref<64x512xf32, #tpu.memory_space<vmem>>, vector<8x384xf32>
    %cst_99 = arith.constant dense<0.000000e+00> : vector<8x384xf32>
    %339 = tpu.matmul %332, %296, %cst_99 {dimension_numbers = #tpu.dot_dimension_numbers<[1], [0], [0], [1], [0, 0, 1, 1], [], []>} : vector<8x128xf32>, vector<128x384xf32>, vector<8x384xf32> -> vector<8x384xf32>
    %340 = vector.extract_strided_slice %338 {offsets = [0, 0], sizes = [8, 128], strides = [1, 1]} : vector<8x384xf32> to vector<8x128xf32>
    %341 = vector.extract_strided_slice %339 {offsets = [0, 0], sizes = [8, 128], strides = [1, 1]} : vector<8x384xf32> to vector<8x128xf32>
    %342 = arith.addf %340, %341 : vector<8x128xf32>
    %343 = arith.negf %342 : vector<8x128xf32>
    %344 = math.exp %343 : vector<8x128xf32>
    %cst_100 = arith.constant 1.000000e+00 : f32
    %345 = vector.broadcast %cst_100 : f32 to vector<8x128xf32>
    %346 = arith.addf %345, %344 : vector<8x128xf32>
    %347 = arith.divf %345, %346 : vector<8x128xf32>
    %348 = vector.extract_strided_slice %338 {offsets = [0, 128], sizes = [8, 128], strides = [1, 1]} : vector<8x384xf32> to vector<8x128xf32>
    %349 = vector.extract_strided_slice %339 {offsets = [0, 128], sizes = [8, 128], strides = [1, 1]} : vector<8x384xf32> to vector<8x128xf32>
    %350 = arith.addf %348, %349 : vector<8x128xf32>
    %351 = arith.negf %350 : vector<8x128xf32>
    %352 = math.exp %351 : vector<8x128xf32>
    %cst_101 = arith.constant 1.000000e+00 : f32
    %353 = vector.broadcast %cst_101 : f32 to vector<8x128xf32>
    %354 = arith.addf %353, %352 : vector<8x128xf32>
    %355 = arith.divf %353, %354 : vector<8x128xf32>
    %356 = vector.extract_strided_slice %338 {offsets = [0, 256], sizes = [8, 128], strides = [1, 1]} : vector<8x384xf32> to vector<8x128xf32>
    %357 = vector.extract_strided_slice %339 {offsets = [0, 256], sizes = [8, 128], strides = [1, 1]} : vector<8x384xf32> to vector<8x128xf32>
    %358 = arith.addf %357, %299 : vector<8x128xf32>
    %359 = arith.mulf %347, %358 : vector<8x128xf32>
    %360 = arith.addf %356, %359 : vector<8x128xf32>
    %361 = math.tanh %360 : vector<8x128xf32>
    %cst_102 = arith.constant 1.000000e+00 : f32
    %362 = vector.broadcast %cst_102 : f32 to vector<8x128xf32>
    %363 = arith.subf %362, %355 : vector<8x128xf32>
    %364 = arith.mulf %363, %361 : vector<8x128xf32>
    %365 = arith.mulf %355, %332 : vector<8x128xf32>
    %366 = arith.addf %364, %365 : vector<8x128xf32>
    %367 = arith.index_cast %336 : i32 to index
    %c0_103 = arith.constant 0 : index
    %368 = vector.load %arg13[%367, %c0_103] : memref<64x128xf32, #tpu.memory_space<vmem>>, vector<8x128xf32>
    tpu.vector_store %arg13[%367, %c0_103], %366 {strides = array<i32>} : memref<64x128xf32, #tpu.memory_space<vmem>>, vector<8x128xf32>,
    %c2_i32_104 = arith.constant 2 : i32
    %c8_i32_105 = arith.constant 8 : i32
    %369 = arith.muli %c2_i32_104, %c8_i32_105 : i32
    %370 = tpu.assume_multiple %369, 8 : i32
    %371 = arith.index_cast %370 : i32 to index
    %c0_106 = arith.constant 0 : index
    %372 = vector.load %arg14[%371, %c0_106] : memref<64x512xf32, #tpu.memory_space<vmem>>, vector<8x384xf32>
    %cst_107 = arith.constant dense<0.000000e+00> : vector<8x384xf32>
    %373 = tpu.matmul %366, %296, %cst_107 {dimension_numbers = #tpu.dot_dimension_numbers<[1], [0], [0], [1], [0, 0, 1, 1], [], []>} : vector<8x128xf32>, vector<128x384xf32>, vector<8x384xf32> -> vector<8x384xf32>
    %374 = vector.extract_strided_slice %372 {offsets = [0, 0], sizes = [8, 128], strides = [1, 1]} : vector<8x384xf32> to vector<8x128xf32>
    %375 = vector.extract_strided_slice %373 {offsets = [0, 0], sizes = [8, 128], strides = [1, 1]} : vector<8x384xf32> to vector<8x128xf32>
    %376 = arith.addf %374, %375 : vector<8x128xf32>
    %377 = arith.negf %376 : vector<8x128xf32>
    %378 = math.exp %377 : vector<8x128xf32>
    %cst_108 = arith.constant 1.000000e+00 : f32
    %379 = vector.broadcast %cst_108 : f32 to vector<8x128xf32>
    %380 = arith.addf %379, %378 : vector<8x128xf32>
    %381 = arith.divf %379, %380 : vector<8x128xf32>
    %382 = vector.extract_strided_slice %372 {offsets = [0, 128], sizes = [8, 128], strides = [1, 1]} : vector<8x384xf32> to vector<8x128xf32>
    %383 = vector.extract_strided_slice %373 {offsets = [0, 128], sizes = [8, 128], strides = [1, 1]} : vector<8x384xf32> to vector<8x128xf32>
    %384 = arith.addf %382, %383 : vector<8x128xf32>
    %385 = arith.negf %384 : vector<8x128xf32>
    %386 = math.exp %385 : vector<8x128xf32>
    %cst_109 = arith.constant 1.000000e+00 : f32
    %387 = vector.broadcast %cst_109 : f32 to vector<8x128xf32>
    %388 = arith.addf %387, %386 : vector<8x128xf32>
    %389 = arith.divf %387, %388 : vector<8x128xf32>
    %390 = vector.extract_strided_slice %372 {offsets = [0, 256], sizes = [8, 128], strides = [1, 1]} : vector<8x384xf32> to vector<8x128xf32>
    %391 = vector.extract_strided_slice %373 {offsets = [0, 256], sizes = [8, 128], strides = [1, 1]} : vector<8x384xf32> to vector<8x128xf32>
    %392 = arith.addf %391, %299 : vector<8x128xf32>
    %393 = arith.mulf %381, %392 : vector<8x128xf32>
    %394 = arith.addf %390, %393 : vector<8x128xf32>
    %395 = math.tanh %394 : vector<8x128xf32>
    %cst_110 = arith.constant 1.000000e+00 : f32
    %396 = vector.broadcast %cst_110 : f32 to vector<8x128xf32>
    %397 = arith.subf %396, %389 : vector<8x128xf32>
    %398 = arith.mulf %397, %395 : vector<8x128xf32>
    %399 = arith.mulf %389, %366 : vector<8x128xf32>
    %400 = arith.addf %398, %399 : vector<8x128xf32>
    %401 = arith.index_cast %370 : i32 to index
    %c0_111 = arith.constant 0 : index
    %402 = vector.load %arg13[%401, %c0_111] : memref<64x128xf32, #tpu.memory_space<vmem>>, vector<8x128xf32>
    tpu.vector_store %arg13[%401, %c0_111], %400 {strides = array<i32>} : memref<64x128xf32, #tpu.memory_space<vmem>>, vector<8x128xf32>,
    %c3_i32_112 = arith.constant 3 : i32
    %c8_i32_113 = arith.constant 8 : i32
    %403 = arith.muli %c3_i32_112, %c8_i32_113 : i32
    %404 = tpu.assume_multiple %403, 8 : i32
    %405 = arith.index_cast %404 : i32 to index
    %c0_114 = arith.constant 0 : index
    %406 = vector.load %arg14[%405, %c0_114] : memref<64x512xf32, #tpu.memory_space<vmem>>, vector<8x384xf32>
    %cst_115 = arith.constant dense<0.000000e+00> : vector<8x384xf32>
    %407 = tpu.matmul %400, %296, %cst_115 {dimension_numbers = #tpu.dot_dimension_numbers<[1], [0], [0], [1], [0, 0, 1, 1], [], []>} : vector<8x128xf32>, vector<128x384xf32>, vector<8x384xf32> -> vector<8x384xf32>
    %408 = vector.extract_strided_slice %406 {offsets = [0, 0], sizes = [8, 128], strides = [1, 1]} : vector<8x384xf32> to vector<8x128xf32>
    %409 = vector.extract_strided_slice %407 {offsets = [0, 0], sizes = [8, 128], strides = [1, 1]} : vector<8x384xf32> to vector<8x128xf32>
    %410 = arith.addf %408, %409 : vector<8x128xf32>
    %411 = arith.negf %410 : vector<8x128xf32>
    %412 = math.exp %411 : vector<8x128xf32>
    %cst_116 = arith.constant 1.000000e+00 : f32
    %413 = vector.broadcast %cst_116 : f32 to vector<8x128xf32>
    %414 = arith.addf %413, %412 : vector<8x128xf32>
    %415 = arith.divf %413, %414 : vector<8x128xf32>
    %416 = vector.extract_strided_slice %406 {offsets = [0, 128], sizes = [8, 128], strides = [1, 1]} : vector<8x384xf32> to vector<8x128xf32>
    %417 = vector.extract_strided_slice %407 {offsets = [0, 128], sizes = [8, 128], strides = [1, 1]} : vector<8x384xf32> to vector<8x128xf32>
    %418 = arith.addf %416, %417 : vector<8x128xf32>
    %419 = arith.negf %418 : vector<8x128xf32>
    %420 = math.exp %419 : vector<8x128xf32>
    %cst_117 = arith.constant 1.000000e+00 : f32
    %421 = vector.broadcast %cst_117 : f32 to vector<8x128xf32>
    %422 = arith.addf %421, %420 : vector<8x128xf32>
    %423 = arith.divf %421, %422 : vector<8x128xf32>
    %424 = vector.extract_strided_slice %406 {offsets = [0, 256], sizes = [8, 128], strides = [1, 1]} : vector<8x384xf32> to vector<8x128xf32>
    %425 = vector.extract_strided_slice %407 {offsets = [0, 256], sizes = [8, 128], strides = [1, 1]} : vector<8x384xf32> to vector<8x128xf32>
    %426 = arith.addf %425, %299 : vector<8x128xf32>
    %427 = arith.mulf %415, %426 : vector<8x128xf32>
    %428 = arith.addf %424, %427 : vector<8x128xf32>
    %429 = math.tanh %428 : vector<8x128xf32>
    %cst_118 = arith.constant 1.000000e+00 : f32
    %430 = vector.broadcast %cst_118 : f32 to vector<8x128xf32>
    %431 = arith.subf %430, %423 : vector<8x128xf32>
    %432 = arith.mulf %431, %429 : vector<8x128xf32>
    %433 = arith.mulf %423, %400 : vector<8x128xf32>
    %434 = arith.addf %432, %433 : vector<8x128xf32>
    %435 = arith.index_cast %404 : i32 to index
    %c0_119 = arith.constant 0 : index
    %436 = vector.load %arg13[%435, %c0_119] : memref<64x128xf32, #tpu.memory_space<vmem>>, vector<8x128xf32>
    tpu.vector_store %arg13[%435, %c0_119], %434 {strides = array<i32>} : memref<64x128xf32, #tpu.memory_space<vmem>>, vector<8x128xf32>,
    %c4_i32_120 = arith.constant 4 : i32
    %c8_i32_121 = arith.constant 8 : i32
    %437 = arith.muli %c4_i32_120, %c8_i32_121 : i32
    %438 = tpu.assume_multiple %437, 8 : i32
    %439 = arith.index_cast %438 : i32 to index
    %c0_122 = arith.constant 0 : index
    %440 = vector.load %arg14[%439, %c0_122] : memref<64x512xf32, #tpu.memory_space<vmem>>, vector<8x384xf32>
    %cst_123 = arith.constant dense<0.000000e+00> : vector<8x384xf32>
    %441 = tpu.matmul %434, %296, %cst_123 {dimension_numbers = #tpu.dot_dimension_numbers<[1], [0], [0], [1], [0, 0, 1, 1], [], []>} : vector<8x128xf32>, vector<128x384xf32>, vector<8x384xf32> -> vector<8x384xf32>
    %442 = vector.extract_strided_slice %440 {offsets = [0, 0], sizes = [8, 128], strides = [1, 1]} : vector<8x384xf32> to vector<8x128xf32>
    %443 = vector.extract_strided_slice %441 {offsets = [0, 0], sizes = [8, 128], strides = [1, 1]} : vector<8x384xf32> to vector<8x128xf32>
    %444 = arith.addf %442, %443 : vector<8x128xf32>
    %445 = arith.negf %444 : vector<8x128xf32>
    %446 = math.exp %445 : vector<8x128xf32>
    %cst_124 = arith.constant 1.000000e+00 : f32
    %447 = vector.broadcast %cst_124 : f32 to vector<8x128xf32>
    %448 = arith.addf %447, %446 : vector<8x128xf32>
    %449 = arith.divf %447, %448 : vector<8x128xf32>
    %450 = vector.extract_strided_slice %440 {offsets = [0, 128], sizes = [8, 128], strides = [1, 1]} : vector<8x384xf32> to vector<8x128xf32>
    %451 = vector.extract_strided_slice %441 {offsets = [0, 128], sizes = [8, 128], strides = [1, 1]} : vector<8x384xf32> to vector<8x128xf32>
    %452 = arith.addf %450, %451 : vector<8x128xf32>
    %453 = arith.negf %452 : vector<8x128xf32>
    %454 = math.exp %453 : vector<8x128xf32>
    %cst_125 = arith.constant 1.000000e+00 : f32
    %455 = vector.broadcast %cst_125 : f32 to vector<8x128xf32>
    %456 = arith.addf %455, %454 : vector<8x128xf32>
    %457 = arith.divf %455, %456 : vector<8x128xf32>
    %458 = vector.extract_strided_slice %440 {offsets = [0, 256], sizes = [8, 128], strides = [1, 1]} : vector<8x384xf32> to vector<8x128xf32>
    %459 = vector.extract_strided_slice %441 {offsets = [0, 256], sizes = [8, 128], strides = [1, 1]} : vector<8x384xf32> to vector<8x128xf32>
    %460 = arith.addf %459, %299 : vector<8x128xf32>
    %461 = arith.mulf %449, %460 : vector<8x128xf32>
    %462 = arith.addf %458, %461 : vector<8x128xf32>
    %463 = math.tanh %462 : vector<8x128xf32>
    %cst_126 = arith.constant 1.000000e+00 : f32
    %464 = vector.broadcast %cst_126 : f32 to vector<8x128xf32>
    %465 = arith.subf %464, %457 : vector<8x128xf32>
    %466 = arith.mulf %465, %463 : vector<8x128xf32>
    %467 = arith.mulf %457, %434 : vector<8x128xf32>
    %468 = arith.addf %466, %467 : vector<8x128xf32>
    %469 = arith.index_cast %438 : i32 to index
    %c0_127 = arith.constant 0 : index
    %470 = vector.load %arg13[%469, %c0_127] : memref<64x128xf32, #tpu.memory_space<vmem>>, vector<8x128xf32>
    tpu.vector_store %arg13[%469, %c0_127], %468 {strides = array<i32>} : memref<64x128xf32, #tpu.memory_space<vmem>>, vector<8x128xf32>,
    %c5_i32_128 = arith.constant 5 : i32
    %c8_i32_129 = arith.constant 8 : i32
    %471 = arith.muli %c5_i32_128, %c8_i32_129 : i32
    %472 = tpu.assume_multiple %471, 8 : i32
    %473 = arith.index_cast %472 : i32 to index
    %c0_130 = arith.constant 0 : index
    %474 = vector.load %arg14[%473, %c0_130] : memref<64x512xf32, #tpu.memory_space<vmem>>, vector<8x384xf32>
    %cst_131 = arith.constant dense<0.000000e+00> : vector<8x384xf32>
    %475 = tpu.matmul %468, %296, %cst_131 {dimension_numbers = #tpu.dot_dimension_numbers<[1], [0], [0], [1], [0, 0, 1, 1], [], []>} : vector<8x128xf32>, vector<128x384xf32>, vector<8x384xf32> -> vector<8x384xf32>
    %476 = vector.extract_strided_slice %474 {offsets = [0, 0], sizes = [8, 128], strides = [1, 1]} : vector<8x384xf32> to vector<8x128xf32>
    %477 = vector.extract_strided_slice %475 {offsets = [0, 0], sizes = [8, 128], strides = [1, 1]} : vector<8x384xf32> to vector<8x128xf32>
    %478 = arith.addf %476, %477 : vector<8x128xf32>
    %479 = arith.negf %478 : vector<8x128xf32>
    %480 = math.exp %479 : vector<8x128xf32>
    %cst_132 = arith.constant 1.000000e+00 : f32
    %481 = vector.broadcast %cst_132 : f32 to vector<8x128xf32>
    %482 = arith.addf %481, %480 : vector<8x128xf32>
    %483 = arith.divf %481, %482 : vector<8x128xf32>
    %484 = vector.extract_strided_slice %474 {offsets = [0, 128], sizes = [8, 128], strides = [1, 1]} : vector<8x384xf32> to vector<8x128xf32>
    %485 = vector.extract_strided_slice %475 {offsets = [0, 128], sizes = [8, 128], strides = [1, 1]} : vector<8x384xf32> to vector<8x128xf32>
    %486 = arith.addf %484, %485 : vector<8x128xf32>
    %487 = arith.negf %486 : vector<8x128xf32>
    %488 = math.exp %487 : vector<8x128xf32>
    %cst_133 = arith.constant 1.000000e+00 : f32
    %489 = vector.broadcast %cst_133 : f32 to vector<8x128xf32>
    %490 = arith.addf %489, %488 : vector<8x128xf32>
    %491 = arith.divf %489, %490 : vector<8x128xf32>
    %492 = vector.extract_strided_slice %474 {offsets = [0, 256], sizes = [8, 128], strides = [1, 1]} : vector<8x384xf32> to vector<8x128xf32>
    %493 = vector.extract_strided_slice %475 {offsets = [0, 256], sizes = [8, 128], strides = [1, 1]} : vector<8x384xf32> to vector<8x128xf32>
    %494 = arith.addf %493, %299 : vector<8x128xf32>
    %495 = arith.mulf %483, %494 : vector<8x128xf32>
    %496 = arith.addf %492, %495 : vector<8x128xf32>
    %497 = math.tanh %496 : vector<8x128xf32>
    %cst_134 = arith.constant 1.000000e+00 : f32
    %498 = vector.broadcast %cst_134 : f32 to vector<8x128xf32>
    %499 = arith.subf %498, %491 : vector<8x128xf32>
    %500 = arith.mulf %499, %497 : vector<8x128xf32>
    %501 = arith.mulf %491, %468 : vector<8x128xf32>
    %502 = arith.addf %500, %501 : vector<8x128xf32>
    %503 = arith.index_cast %472 : i32 to index
    %c0_135 = arith.constant 0 : index
    %504 = vector.load %arg13[%503, %c0_135] : memref<64x128xf32, #tpu.memory_space<vmem>>, vector<8x128xf32>
    tpu.vector_store %arg13[%503, %c0_135], %502 {strides = array<i32>} : memref<64x128xf32, #tpu.memory_space<vmem>>, vector<8x128xf32>,
    %c6_i32_136 = arith.constant 6 : i32
    %c8_i32_137 = arith.constant 8 : i32
    %505 = arith.muli %c6_i32_136, %c8_i32_137 : i32
    %506 = tpu.assume_multiple %505, 8 : i32
    %507 = arith.index_cast %506 : i32 to index
    %c0_138 = arith.constant 0 : index
    %508 = vector.load %arg14[%507, %c0_138] : memref<64x512xf32, #tpu.memory_space<vmem>>, vector<8x384xf32>
    %cst_139 = arith.constant dense<0.000000e+00> : vector<8x384xf32>
    %509 = tpu.matmul %502, %296, %cst_139 {dimension_numbers = #tpu.dot_dimension_numbers<[1], [0], [0], [1], [0, 0, 1, 1], [], []>} : vector<8x128xf32>, vector<128x384xf32>, vector<8x384xf32> -> vector<8x384xf32>
    %510 = vector.extract_strided_slice %508 {offsets = [0, 0], sizes = [8, 128], strides = [1, 1]} : vector<8x384xf32> to vector<8x128xf32>
    %511 = vector.extract_strided_slice %509 {offsets = [0, 0], sizes = [8, 128], strides = [1, 1]} : vector<8x384xf32> to vector<8x128xf32>
    %512 = arith.addf %510, %511 : vector<8x128xf32>
    %513 = arith.negf %512 : vector<8x128xf32>
    %514 = math.exp %513 : vector<8x128xf32>
    %cst_140 = arith.constant 1.000000e+00 : f32
    %515 = vector.broadcast %cst_140 : f32 to vector<8x128xf32>
    %516 = arith.addf %515, %514 : vector<8x128xf32>
    %517 = arith.divf %515, %516 : vector<8x128xf32>
    %518 = vector.extract_strided_slice %508 {offsets = [0, 128], sizes = [8, 128], strides = [1, 1]} : vector<8x384xf32> to vector<8x128xf32>
    %519 = vector.extract_strided_slice %509 {offsets = [0, 128], sizes = [8, 128], strides = [1, 1]} : vector<8x384xf32> to vector<8x128xf32>
    %520 = arith.addf %518, %519 : vector<8x128xf32>
    %521 = arith.negf %520 : vector<8x128xf32>
    %522 = math.exp %521 : vector<8x128xf32>
    %cst_141 = arith.constant 1.000000e+00 : f32
    %523 = vector.broadcast %cst_141 : f32 to vector<8x128xf32>
    %524 = arith.addf %523, %522 : vector<8x128xf32>
    %525 = arith.divf %523, %524 : vector<8x128xf32>
    %526 = vector.extract_strided_slice %508 {offsets = [0, 256], sizes = [8, 128], strides = [1, 1]} : vector<8x384xf32> to vector<8x128xf32>
    %527 = vector.extract_strided_slice %509 {offsets = [0, 256], sizes = [8, 128], strides = [1, 1]} : vector<8x384xf32> to vector<8x128xf32>
    %528 = arith.addf %527, %299 : vector<8x128xf32>
    %529 = arith.mulf %517, %528 : vector<8x128xf32>
    %530 = arith.addf %526, %529 : vector<8x128xf32>
    %531 = math.tanh %530 : vector<8x128xf32>
    %cst_142 = arith.constant 1.000000e+00 : f32
    %532 = vector.broadcast %cst_142 : f32 to vector<8x128xf32>
    %533 = arith.subf %532, %525 : vector<8x128xf32>
    %534 = arith.mulf %533, %531 : vector<8x128xf32>
    %535 = arith.mulf %525, %502 : vector<8x128xf32>
    %536 = arith.addf %534, %535 : vector<8x128xf32>
    %537 = arith.index_cast %506 : i32 to index
    %c0_143 = arith.constant 0 : index
    %538 = vector.load %arg13[%537, %c0_143] : memref<64x128xf32, #tpu.memory_space<vmem>>, vector<8x128xf32>
    tpu.vector_store %arg13[%537, %c0_143], %536 {strides = array<i32>} : memref<64x128xf32, #tpu.memory_space<vmem>>, vector<8x128xf32>,
    %c7_i32_144 = arith.constant 7 : i32
    %c8_i32_145 = arith.constant 8 : i32
    %539 = arith.muli %c7_i32_144, %c8_i32_145 : i32
    %540 = tpu.assume_multiple %539, 8 : i32
    %541 = arith.index_cast %540 : i32 to index
    %c0_146 = arith.constant 0 : index
    %542 = vector.load %arg14[%541, %c0_146] : memref<64x512xf32, #tpu.memory_space<vmem>>, vector<8x384xf32>
    %cst_147 = arith.constant dense<0.000000e+00> : vector<8x384xf32>
    %543 = tpu.matmul %536, %296, %cst_147 {dimension_numbers = #tpu.dot_dimension_numbers<[1], [0], [0], [1], [0, 0, 1, 1], [], []>} : vector<8x128xf32>, vector<128x384xf32>, vector<8x384xf32> -> vector<8x384xf32>
    %544 = vector.extract_strided_slice %542 {offsets = [0, 0], sizes = [8, 128], strides = [1, 1]} : vector<8x384xf32> to vector<8x128xf32>
    %545 = vector.extract_strided_slice %543 {offsets = [0, 0], sizes = [8, 128], strides = [1, 1]} : vector<8x384xf32> to vector<8x128xf32>
    %546 = arith.addf %544, %545 : vector<8x128xf32>
    %547 = arith.negf %546 : vector<8x128xf32>
    %548 = math.exp %547 : vector<8x128xf32>
    %cst_148 = arith.constant 1.000000e+00 : f32
    %549 = vector.broadcast %cst_148 : f32 to vector<8x128xf32>
    %550 = arith.addf %549, %548 : vector<8x128xf32>
    %551 = arith.divf %549, %550 : vector<8x128xf32>
    %552 = vector.extract_strided_slice %542 {offsets = [0, 128], sizes = [8, 128], strides = [1, 1]} : vector<8x384xf32> to vector<8x128xf32>
    %553 = vector.extract_strided_slice %543 {offsets = [0, 128], sizes = [8, 128], strides = [1, 1]} : vector<8x384xf32> to vector<8x128xf32>
    %554 = arith.addf %552, %553 : vector<8x128xf32>
    %555 = arith.negf %554 : vector<8x128xf32>
    %556 = math.exp %555 : vector<8x128xf32>
    %cst_149 = arith.constant 1.000000e+00 : f32
    %557 = vector.broadcast %cst_149 : f32 to vector<8x128xf32>
    %558 = arith.addf %557, %556 : vector<8x128xf32>
    %559 = arith.divf %557, %558 : vector<8x128xf32>
    %560 = vector.extract_strided_slice %542 {offsets = [0, 256], sizes = [8, 128], strides = [1, 1]} : vector<8x384xf32> to vector<8x128xf32>
    %561 = vector.extract_strided_slice %543 {offsets = [0, 256], sizes = [8, 128], strides = [1, 1]} : vector<8x384xf32> to vector<8x128xf32>
    %562 = arith.addf %561, %299 : vector<8x128xf32>
    %563 = arith.mulf %551, %562 : vector<8x128xf32>
    %564 = arith.addf %560, %563 : vector<8x128xf32>
    %565 = math.tanh %564 : vector<8x128xf32>
    %cst_150 = arith.constant 1.000000e+00 : f32
    %566 = vector.broadcast %cst_150 : f32 to vector<8x128xf32>
    %567 = arith.subf %566, %559 : vector<8x128xf32>
    %568 = arith.mulf %567, %565 : vector<8x128xf32>
    %569 = arith.mulf %559, %536 : vector<8x128xf32>
    %570 = arith.addf %568, %569 : vector<8x128xf32>
    %571 = arith.index_cast %540 : i32 to index
    %c0_151 = arith.constant 0 : index
    %572 = vector.load %arg13[%571, %c0_151] : memref<64x128xf32, #tpu.memory_space<vmem>>, vector<8x128xf32>
    tpu.vector_store %arg13[%571, %c0_151], %570 {strides = array<i32>} : memref<64x128xf32, #tpu.memory_space<vmem>>, vector<8x128xf32>,
    %c8_i32_152 = arith.constant 8 : i32
    %cst_153 = arith.constant 0.000000e+00 : f32
    %573 = vector.broadcast %cst_153 : f32 to vector<8x128xf32>
    %574 = arith.maximumf %570, %573 : vector<8x128xf32>
    %c0_154 = arith.constant 0 : index
    %c0_155 = arith.constant 0 : index
    %575 = vector.load %arg8[%c0_154, %c0_155] : memref<128x128xf32, #tpu.memory_space<vmem>>, vector<128x128xf32>
    %cst_156 = arith.constant dense<0.000000e+00> : vector<8x128xf32>
    %576 = tpu.matmul %574, %575, %cst_156 {dimension_numbers = #tpu.dot_dimension_numbers<[1], [0], [0], [1], [0, 0, 1, 1], [], []>} : vector<8x128xf32>, vector<128x128xf32>, vector<8x128xf32> -> vector<8x128xf32>
    %c0_157 = arith.constant 0 : index
    %c0_158 = arith.constant 0 : index
    %577 = vector.load %arg9[%c0_157, %c0_158] : memref<1x128xf32, #tpu.memory_space<vmem>>, vector<1x128xf32>
    %578 = vector.broadcast %577 : vector<1x128xf32> to vector<8x128xf32>
    %579 = arith.addf %576, %578 : vector<8x128xf32>
    %cst_159 = arith.constant 0.000000e+00 : f32
    %580 = vector.broadcast %cst_159 : f32 to vector<8x128xf32>
    %581 = arith.maximumf %579, %580 : vector<8x128xf32>
    %c0_160 = arith.constant 0 : index
    %c0_161 = arith.constant 0 : index
    %582 = vector.load %arg10[%c0_160, %c0_161] : memref<128x128xf32, #tpu.memory_space<vmem>>, vector<128x128xf32>
    %cst_162 = arith.constant dense<0.000000e+00> : vector<8x128xf32>
    %583 = tpu.matmul %581, %582, %cst_162 {dimension_numbers = #tpu.dot_dimension_numbers<[1], [0], [0], [1], [0, 0, 1, 1], [], []>} : vector<8x128xf32>, vector<128x128xf32>, vector<8x128xf32> -> vector<8x128xf32>
    %c0_163 = arith.constant 0 : index
    %c0_164 = arith.constant 0 : index
    %584 = vector.load %arg11[%c0_163, %c0_164] : memref<1x128xf32, #tpu.memory_space<vmem>>, vector<1x128xf32>
    %585 = vector.broadcast %584 : vector<1x128xf32> to vector<8x128xf32>
    %586 = arith.addf %583, %585 : vector<8x128xf32>
    %c0_165 = arith.constant 0 : index
    %c0_166 = arith.constant 0 : index
    %587 = vector.load %arg12[%c0_165, %c0_166] : memref<8x128xf32, #tpu.memory_space<vmem>>, vector<8x128xf32>
    tpu.vector_store %arg12[%c0_165, %c0_166], %586 {strides = array<i32>} : memref<8x128xf32, #tpu.memory_space<vmem>>, vector<8x128xf32>,
    return
  }
}

</mosaic_0001>

<llo_original>
// kernel: tpu_custom_call.1
$region0: #{tpu_custom_call.1}
  #allocation0 [shape = 'u32[]', space=smem, size = 0x4, offset = 0x4, fixed_abs, tag = 'smem constant byte address 0x4 - core index']
  #allocation1 [shape = 'u32[144,128]{1,0:T(1,128)}', space=vmem, size = 0x12000, scoped, tag = 'internal scratch']
  #allocation2 [shape = 'f32[64,128]{1,0:T(8,128)}', space=vmem, size = 0x8000, scoped, tag = 'scratch operand']
  #allocation3 [shape = 'f32[64,512]{1,0:T(8,128)}', space=vmem, size = 0x20000, scoped, tag = 'scratch operand']
  %s0 = inlined_call_operand.vmem [shape: f32[64,8], index: 0, kind: input, shape index: {}]
  %s1 = inlined_call_operand.vmem [shape: f32[8,512], index: 1, kind: input, shape index: {}]
  %s2 = inlined_call_operand.hbm [shape: f32[128,512], index: 2, kind: input, shape index: {}]
  %s3 = inlined_call_operand.vmem [shape: f32[1,512], index: 3, kind: input, shape index: {}]
  %s4 = inlined_call_operand.hbm [shape: f32[128,384], index: 4, kind: input, shape index: {}]
  %s5 = inlined_call_operand.hbm [shape: f32[128,384], index: 5, kind: input, shape index: {}]
  %s6 = inlined_call_operand.vmem [shape: f32[1,384], index: 6, kind: input, shape index: {}]
  %s7 = inlined_call_operand.vmem [shape: f32[1,128], index: 7, kind: input, shape index: {}]
  %s8 = inlined_call_operand.hbm [shape: f32[128,128], index: 8, kind: input, shape index: {}]
  %s9 = inlined_call_operand.vmem [shape: f32[1,128], index: 9, kind: input, shape index: {}]
  %s10 = inlined_call_operand.hbm [shape: f32[128,128], index: 10, kind: input, shape index: {}]
  %s11 = inlined_call_operand.vmem [shape: f32[1,128], index: 11, kind: input, shape index: {}]
  %s12 = inlined_call_operand.hbm [shape: f32[8,128], index: 12, kind: output, shape index: {}]
  %s13 = sld [smem:[#allocation0]]
  $region78: #{tpu_custom_call.1} parent=0
    _
  %s15 = ssub.s32 1, %s13
  %s16 = scalar_select 0, %s15, %s13
  $region1: #{tpu_custom_call.1} parent=0
    #allocation4 [shape = 'u8[262144]{0}', space=vmem, size = 0x40000, scoped, tag = 'input window, operand 2, single buffered']
    #allocation5 [shape = 's32[1]{0}', space=sflag, size = 0x4, scoped, tag = 'scoped memory for tpu_custom_call.1']
    #allocation6 [shape = 's32[1]{0}', space=sflag, size = 0x4, scoped, tag = 'scoped memory for tpu_custom_call.1']
    #allocation7 [shape = 'u8[196608]{0}', space=vmem, size = 0x30000, scoped, tag = 'input window, operand 4, single buffered']
    #allocation8 [shape = 's32[1]{0}', space=sflag, size = 0x4, scoped, tag = 'scoped memory for tpu_custom_call.1']
    #allocation9 [shape = 'u8[196608]{0}', space=vmem, size = 0x30000, scoped, tag = 'input window, operand 5, single buffered']
    #allocation10 [shape = 'u8[65536]{0}', space=vmem, size = 0x10000, scoped, tag = 'input window, operand 8, single buffered']
    #allocation11 [shape = 's32[1]{0}', space=sflag, size = 0x4, scoped, tag = 'scoped memory for tpu_custom_call.1']
    #allocation12 [shape = 'u8[65536]{0}', space=vmem, size = 0x10000, scoped, tag = 'input window, operand 10, single buffered']
    #allocation13 [shape = 'u8[4096]{0}', space=vmem, size = 0x1000, scoped, tag = 'output window, operand 0, single buffered']
    %17 = vsyncpa [#allocation5], 0
    %18 = vsyncpa [#allocation8], 0
    %19 = vsyncpa [#allocation11], 0
    %20 = vsyncpa [#allocation6], 0
    // Predicated region
    $region2: #{tpu_custom_call.1} parent=1 // pred_check
      _
    $region3: #{tpu_custom_call.1} parent=1 // pred_check_branch
      %22 = sbr.rel (0) target = $region5
    $region4: #{tpu_custom_call.1} parent=1 // pred_region
      _
    $region5: #{tpu_custom_call.1} parent=1 // pred_fallthru
      _
    // Predicated region
    $region6: #{tpu_custom_call.1} parent=1 // pred_check
      _
    $region7: #{tpu_custom_call.1} parent=1 // pred_check_branch
      %24 = sbr.rel (0) target = $region9
    $region8: #{tpu_custom_call.1} parent=1 // pred_region
      _
    $region9: #{tpu_custom_call.1} parent=1 // pred_fallthru
      _
    // Predicated region
    $region10: #{tpu_custom_call.1} parent=1 // pred_check
      _
    $region11: #{tpu_custom_call.1} parent=1 // pred_check_branch
      %26 = sbr.rel (0) target = $region13
    $region12: #{tpu_custom_call.1} parent=1 // pred_region
      %s28 = ssub.s32 8192, 8192
      %29 = vsyncadd [#allocation5], %s28
      %s30 = sshll.u32 [#allocation4], 4
      %s31 = int_to_ptr.vmem [resolvable:$true] %s30
      %36 = dma.hbm_to_vmem [thread:$0]  %s2, 8192, %s31, [#allocation5], 512, 512, 32
    $region13: #{tpu_custom_call.1} parent=1 // pred_fallthru
      _
    // Predicated region
    $region14: #{tpu_custom_call.1} parent=1 // pred_check
      _
    $region15: #{tpu_custom_call.1} parent=1 // pred_check_branch
      %38 = sbr.rel (0) target = $region17
    $region16: #{tpu_custom_call.1} parent=1 // pred_region
      _
    $region17: #{tpu_custom_call.1} parent=1 // pred_fallthru
      _
    // Predicated region
    $region18: #{tpu_custom_call.1} parent=1 // pred_check
      _
    $region19: #{tpu_custom_call.1} parent=1 // pred_check_branch
      %40 = sbr.rel (0) target = $region21
    $region20: #{tpu_custom_call.1} parent=1 // pred_region
      %s42 = ssub.s32 6144, 6144
      %43 = vsyncadd [#allocation8], %s42
      %s44 = sshll.u32 [#allocation7], 4
      %s45 = int_to_ptr.vmem [resolvable:$true] %s44
      %50 = dma.hbm_to_vmem [thread:$0]  %s4, 6144, %s45, [#allocation8], 384, 384, 24
    $region21: #{tpu_custom_call.1} parent=1 // pred_fallthru
      _
    // Predicated region
    $region22: #{tpu_custom_call.1} parent=1 // pred_check
      _
    $region23: #{tpu_custom_call.1} parent=1 // pred_check_branch
      %52 = sbr.rel (0) target = $region25
    $region24: #{tpu_custom_call.1} parent=1 // pred_region
      %s54 = ssub.s32 6144, 6144
      %55 = vsyncadd [#allocation8], %s54
      %s56 = sshll.u32 [#allocation9], 4
      %s57 = int_to_ptr.vmem [resolvable:$true] %s56
      %62 = dma.hbm_to_vmem [thread:$0]  %s5, 6144, %s57, [#allocation8], 384, 384, 24
    $region25: #{tpu_custom_call.1} parent=1 // pred_fallthru
      _
    // Predicated region
    $region26: #{tpu_custom_call.1} parent=1 // pred_check
      _
    $region27: #{tpu_custom_call.1} parent=1 // pred_check_branch
      %64 = sbr.rel (0) target = $region29
    $region28: #{tpu_custom_call.1} parent=1 // pred_region
      _
    $region29: #{tpu_custom_call.1} parent=1 // pred_fallthru
      _
    // Predicated region
    $region30: #{tpu_custom_call.1} parent=1 // pred_check
      _
    $region31: #{tpu_custom_call.1} parent=1 // pred_check_branch
      %66 = sbr.rel (0) target = $region33
    $region32: #{tpu_custom_call.1} parent=1 // pred_region
      _
    $region33: #{tpu_custom_call.1} parent=1 // pred_fallthru
      _
    // Predicated region
    $region34: #{tpu_custom_call.1} parent=1 // pred_check
      _
    $region35: #{tpu_custom_call.1} parent=1 // pred_check_branch
      %68 = sbr.rel (0) target = $region37
    $region36: #{tpu_custom_call.1} parent=1 // pred_region
      %s70 = ssub.s32 2048, 2048
      %71 = vsyncadd [#allocation11], %s70
      %s72 = sshll.u32 [#allocation10], 4
      %s73 = int_to_ptr.vmem [resolvable:$true] %s72
      %78 = dma.hbm_to_vmem [thread:$0]  %s8, 2048, %s73, [#allocation11], 128, 128, 8
    $region37: #{tpu_custom_call.1} parent=1 // pred_fallthru
      _
    // Predicated region
    $region38: #{tpu_custom_call.1} parent=1 // pred_check
      _
    $region39: #{tpu_custom_call.1} parent=1 // pred_check_branch
      %80 = sbr.rel (0) target = $region41
    $region40: #{tpu_custom_call.1} parent=1 // pred_region
      _
    $region41: #{tpu_custom_call.1} parent=1 // pred_fallthru
      _
    // Predicated region
    $region42: #{tpu_custom_call.1} parent=1 // pred_check
      _
    $region43: #{tpu_custom_call.1} parent=1 // pred_check_branch
      %82 = sbr.rel (0) target = $region45
    $region44: #{tpu_custom_call.1} parent=1 // pred_region
      %s84 = ssub.s32 2048, 2048
      %85 = vsyncadd [#allocation11], %s84
      %s86 = sshll.u32 [#allocation12], 4
      %s87 = int_to_ptr.vmem [resolvable:$true] %s86
      %92 = dma.hbm_to_vmem [thread:$0]  %s10, 2048, %s87, [#allocation11], 128, 128, 8
    $region45: #{tpu_custom_call.1} parent=1 // pred_fallthru
      _
    // Predicated region
    $region46: #{tpu_custom_call.1} parent=1 // pred_check
      _
    $region47: #{tpu_custom_call.1} parent=1 // pred_check_branch
      %94 = sbr.rel (0) target = $region49
    $region48: #{tpu_custom_call.1} parent=1 // pred_region
      _
    $region49: #{tpu_custom_call.1} parent=1 // pred_fallthru
      _
    // Predicated region
    $region50: #{tpu_custom_call.1} parent=1 // pred_check
      _
    $region51: #{tpu_custom_call.1} parent=1 // pred_check_branch
      %96 = sbr.rel (0) target = $region53
    $region52: #{tpu_custom_call.1} parent=1 // pred_region
      %97 = dma.done [#allocation5], 8192
    $region53: #{tpu_custom_call.1} parent=1 // pred_fallthru
      _
    // Predicated region
    $region54: #{tpu_custom_call.1} parent=1 // pred_check
      _
    $region55: #{tpu_custom_call.1} parent=1 // pred_check_branch
      %99 = sbr.rel (0) target = $region57
    $region56: #{tpu_custom_call.1} parent=1 // pred_region
      %100 = dma.done [#allocation8], 6144
    $region57: #{tpu_custom_call.1} parent=1 // pred_fallthru
      _
    // Predicated region
    $region58: #{tpu_custom_call.1} parent=1 // pred_check
      _
    $region59: #{tpu_custom_call.1} parent=1 // pred_check_branch
      %102 = sbr.rel (0) target = $region61
    $region60: #{tpu_custom_call.1} parent=1 // pred_region
      %103 = dma.done [#allocation8], 6144
    $region61: #{tpu_custom_call.1} parent=1 // pred_fallthru
      _
    // Predicated region
    $region62: #{tpu_custom_call.1} parent=1 // pred_check
      _
    $region63: #{tpu_custom_call.1} parent=1 // pred_check_branch
      %105 = sbr.rel (0) target = $region65
    $region64: #{tpu_custom_call.1} parent=1 // pred_region
      %106 = dma.done [#allocation11], 2048
    $region65: #{tpu_custom_call.1} parent=1 // pred_fallthru
      _
    // Predicated region
    $region66: #{tpu_custom_call.1} parent=1 // pred_check
      _
    $region67: #{tpu_custom_call.1} parent=1 // pred_check_branch
      %108 = sbr.rel (0) target = $region69
    $region68: #{tpu_custom_call.1} parent=1 // pred_region
      %109 = dma.done [#allocation11], 2048
    $region69: #{tpu_custom_call.1} parent=1 // pred_fallthru
      _
    %v110 = vld [vmem:[%s0] sm:$0xff]
    %v111 = vld [vmem:[%s0 + $0x8] sm:$0xff]
    %v112 = vld [vmem:[%s0 + $0x10] sm:$0xff]
    %v113 = vld [vmem:[%s0 + $0x18] sm:$0xff]
    %v114 = vld [vmem:[%s0 + $0x20] sm:$0xff]
    %v115 = vld [vmem:[%s0 + $0x28] sm:$0xff]
    %v116 = vld [vmem:[%s0 + $0x30] sm:$0xff]
    %v117 = vld [vmem:[%s0 + $0x38] sm:$0xff]
    %v118 = vld [vmem:[%s1] sm:$0xff]
    %v119 = vld [vmem:[%s1 + $0x8] sm:$0xff]
    %v120 = vld [vmem:[%s1 + $0x10] sm:$0xff]
    %v121 = vld [vmem:[%s1 + $0x18] sm:$0xff]
    %v122 = vld [vmem:[%s3] sm:$0xf]
    %v124 = vlaneseq
    %v125 = vshrl.u32 %v124, 7
    %v126 = vsub.s32 0, %v125
    %v127 = vrot.slane %v122, %v126
    %v128 = vlaneseq
    %v129 = vshrl.u32 %v128, 7
    %v130 = vsub.s32 1, %v129
    %v131 = vrot.slane %v122, %v130
    %v132 = vlaneseq
    %v133 = vshrl.u32 %v132, 7
    %v134 = vsub.s32 2, %v133
    %v135 = vrot.slane %v122, %v134
    %v136 = vlaneseq
    %v137 = vshrl.u32 %v136, 7
    %v138 = vsub.s32 3, %v137
    %v139 = vrot.slane %v122, %v138
    %vm144 = vcmask 64512
    %v146 = vsel %vm144, %v110, 0
    %v149 = vsel %vm144, %v111, 0
    %v152 = vsel %vm144, %v112, 0
    %v155 = vsel %vm144, %v113, 0
    %v158 = vsel %vm144, %v114, 0
    %v161 = vsel %vm144, %v115, 0
    %v164 = vsel %vm144, %v116, 0
    %v167 = vsel %vm144, %v117, 0
    %169 = vmatprep.subr.mxu0 %v119
    %170 = vmatpush1.msra.mxu0 %v118
    %171 = vmatprep.subr.mxu0 0.0
    %172 = vmatpush1.msra.mxu0 0.0
    %173 = vmatprep.subr.mxu0 0.0
    %174 = vmatpush1.msra.mxu0 0.0
    %175 = vmatprep.subr.mxu0 0.0
    %176 = vmatpush1.msra.mxu0 0.0
    %177 = vmatprep.subr.mxu0 0.0
    %178 = vmatpush1.msra.mxu0 0.0
    %179 = vmatprep.subr.mxu0 0.0
    %180 = vmatpush1.msra.mxu0 0.0
    %181 = vmatprep.subr.mxu0 0.0
    %182 = vmatpush1.msra.mxu0 0.0
    %183 = vmatprep.subr.mxu0 0.0
    %184 = vmatpush1.msra.mxu0 0.0
    %185 = vmatprep.subr.mxu0 0.0
    %186 = vmatpush1.msra.mxu0 0.0
    %187 = vmatprep.subr.mxu0 0.0
    %188 = vmatpush1.msra.mxu0 0.0
    %189 = vmatprep.subr.mxu0 0.0
    %190 = vmatpush1.msra.mxu0 0.0
    %191 = vmatprep.subr.mxu0 0.0
    %192 = vmatpush1.msra.mxu0 0.0
    %193 = vmatprep.subr.mxu0 0.0
    %194 = vmatpush1.msra.mxu0 0.0
    %195 = vmatprep.subr.mxu0 0.0
    %196 = vmatpush1.msra.mxu0 0.0
    %197 = vmatprep.subr.mxu0 0.0
    %198 = vmatpush1.msra.mxu0 0.0
    %199 = vmatprep.subr.mxu0 0.0
    %200 = vmatpush1.msra.mxu0 0.0
    %201 = vmatprep.subr.mxu0 0.0
    %202 = vmatpush1.msra.mxu0 0.0
    %203 = vmatprep.subr.mxu0 0.0
    %204 = vmatpush1.msra.mxu0 0.0
    %205 = vmatprep.subr.mxu0 0.0
    %206 = vmatpush1.msra.mxu0 0.0
    %207 = vmatprep.subr.mxu0 0.0
    %208 = vmatpush1.msra.mxu0 0.0
    %209 = vmatprep.subr.mxu0 0.0
    %210 = vmatpush1.msra.mxu0 0.0
    %211 = vmatprep.subr.mxu0 0.0
    %212 = vmatpush1.msra.mxu0 0.0
    %213 = vmatprep.subr.mxu0 0.0
    %214 = vmatpush1.msra.mxu0 0.0
    %215 = vmatprep.subr.mxu0 0.0
    %216 = vmatpush1.msra.mxu0 0.0
    %217 = vmatprep.subr.mxu0 0.0
    %218 = vmatpush1.msra.mxu0 0.0
    %219 = vmatprep.subr.mxu0 0.0
    %220 = vmatpush1.msra.mxu0 0.0
    %221 = vmatprep.subr.mxu0 0.0
    %222 = vmatpush1.msra.mxu0 0.0
    %223 = vmatprep.subr.mxu0 0.0
    %224 = vmatpush1.msra.mxu0 0.0
    %225 = vmatprep.subr.mxu0 0.0
    %226 = vmatpush1.msra.mxu0 0.0
    %227 = vmatprep.subr.mxu0 0.0
    %228 = vmatpush1.msra.mxu0 0.0
    %229 = vmatprep.subr.mxu0 0.0
    %230 = vmatpush1.msra.mxu0 0.0
    %231 = vmatprep.subr.mxu0 0.0
    %232 = vmatpush1.msra.mxu0 0.0
    %233 = vmatprep.mubr.f32.mxu0 0.0
    %234 = vmatmul.mubr.f32.gmra.mrb[0].mxu0 %v146
    %v235 = vpop.f32.mrb[0].mxu0
    %v236 = vadd.f32 %v127, %v235
    %v237 = vpop.f32.mrb[0].mxu0
    %v238 = vadd.f32 %v131, %v237
    %239 = vmatprep.mubr.f32.mxu0 0.0
    %240 = vmatmul.mubr.f32.gmra.mrb[0].mxu0 %v149
    %v241 = vpop.f32.mrb[0].mxu0
    %v242 = vadd.f32 %v127, %v241
    %v243 = vpop.f32.mrb[0].mxu0
    %v244 = vadd.f32 %v131, %v243
    %245 = vmatprep.mubr.f32.mxu0 0.0
    %246 = vmatmul.mubr.f32.gmra.mrb[0].mxu0 %v152
    %v247 = vpop.f32.mrb[0].mxu0
    %v248 = vadd.f32 %v127, %v247
    %v249 = vpop.f32.mrb[0].mxu0
    %v250 = vadd.f32 %v131, %v249
    %251 = vmatprep.mubr.f32.mxu0 0.0
    %252 = vmatmul.mubr.f32.gmra.mrb[0].mxu0 %v155
    %v253 = vpop.f32.mrb[0].mxu0
    %v254 = vadd.f32 %v127, %v253
    %v255 = vpop.f32.mrb[0].mxu0
    %v256 = vadd.f32 %v131, %v255
    %257 = vmatprep.mubr.f32.mxu0 0.0
    %258 = vmatmul.mubr.f32.gmra.mrb[0].mxu0 %v158
    %v259 = vpop.f32.mrb[0].mxu0
    %v260 = vadd.f32 %v127, %v259
    %v261 = vpop.f32.mrb[0].mxu0
    %v262 = vadd.f32 %v131, %v261
    %263 = vmatprep.mubr.f32.mxu0 0.0
    %264 = vmatmul.mubr.f32.gmra.mrb[0].mxu0 %v161
    %v265 = vpop.f32.mrb[0].mxu0
    %v266 = vadd.f32 %v127, %v265
    %v267 = vpop.f32.mrb[0].mxu0
    %v268 = vadd.f32 %v131, %v267
    %269 = vmatprep.mubr.f32.mxu0 0.0
    %270 = vmatmul.mubr.f32.gmra.mrb[0].mxu0 %v164
    %v271 = vpop.f32.mrb[0].mxu0
    %v272 = vadd.f32 %v127, %v271
    %v273 = vpop.f32.mrb[0].mxu0
    %v274 = vadd.f32 %v131, %v273
    %275 = vmatprep.mubr.f32.mxu0 0.0
    %276 = vmatmul.mubr.f32.gmra.mrb[0].mxu0 %v167
    %v277 = vpop.f32.mrb[0].mxu0
    %v278 = vadd.f32 %v127, %v277
    %v279 = vpop.f32.mrb[0].mxu0
    %v280 = vadd.f32 %v131, %v279
    %281 = vdwg.mxu0
    %282 = vmatprep.subr.mxu0 %v121
    %283 = vmatpush1.msra.mxu0 %v120
    %284 = vmatprep.subr.mxu0 0.0
    %285 = vmatpush1.msra.mxu0 0.0
    %286 = vmatprep.subr.mxu0 0.0
    %287 = vmatpush1.msra.mxu0 0.0
    %288 = vmatprep.subr.mxu0 0.0
    %289 = vmatpush1.msra.mxu0 0.0
    %290 = vmatprep.subr.mxu0 0.0
    %291 = vmatpush1.msra.mxu0 0.0
    %292 = vmatprep.subr.mxu0 0.0
    %293 = vmatpush1.msra.mxu0 0.0
    %294 = vmatprep.subr.mxu0 0.0
    %295 = vmatpush1.msra.mxu0 0.0
    %296 = vmatprep.subr.mxu0 0.0
    %297 = vmatpush1.msra.mxu0 0.0
    %298 = vmatprep.subr.mxu0 0.0
    %299 = vmatpush1.msra.mxu0 0.0
    %300 = vmatprep.subr.mxu0 0.0
    %301 = vmatpush1.msra.mxu0 0.0
    %302 = vmatprep.subr.mxu0 0.0
    %303 = vmatpush1.msra.mxu0 0.0
    %304 = vmatprep.subr.mxu0 0.0
    %305 = vmatpush1.msra.mxu0 0.0
    %306 = vmatprep.subr.mxu0 0.0
    %307 = vmatpush1.msra.mxu0 0.0
    %308 = vmatprep.subr.mxu0 0.0
    %309 = vmatpush1.msra.mxu0 0.0
    %310 = vmatprep.subr.mxu0 0.0
    %311 = vmatpush1.msra.mxu0 0.0
    %312 = vmatprep.subr.mxu0 0.0
    %313 = vmatpush1.msra.mxu0 0.0
    %314 = vmatprep.subr.mxu0 0.0
    %315 = vmatpush1.msra.mxu0 0.0
    %316 = vmatprep.subr.mxu0 0.0
    %317 = vmatpush1.msra.mxu0 0.0
    %318 = vmatprep.subr.mxu0 0.0
    %319 = vmatpush1.msra.mxu0 0.0
    %320 = vmatprep.subr.mxu0 0.0
    %321 = vmatpush1.msra.mxu0 0.0
    %322 = vmatprep.subr.mxu0 0.0
    %323 = vmatpush1.msra.mxu0 0.0
    %324 = vmatprep.subr.mxu0 0.0
    %325 = vmatpush1.msra.mxu0 0.0
    %326 = vmatprep.subr.mxu0 0.0
    %327 = vmatpush1.msra.mxu0 0.0
    %328 = vmatprep.subr.mxu0 0.0
    %329 = vmatpush1.msra.mxu0 0.0
    %330 = vmatprep.subr.mxu0 0.0
    %331 = vmatpush1.msra.mxu0 0.0
    %332 = vmatprep.subr.mxu0 0.0
    %333 = vmatpush1.msra.mxu0 0.0
    %334 = vmatprep.subr.mxu0 0.0
    %335 = vmatpush1.msra.mxu0 0.0
    %336 = vmatprep.subr.mxu0 0.0
    %337 = vmatpush1.msra.mxu0 0.0
    %338 = vmatprep.subr.mxu0 0.0
    %339 = vmatpush1.msra.mxu0 0.0
    %340 = vmatprep.subr.mxu0 0.0
    %341 = vmatpush1.msra.mxu0 0.0
    %342 = vmatprep.subr.mxu0 0.0
    %343 = vmatpush1.msra.mxu0 0.0
    %344 = vmatprep.subr.mxu0 0.0
    %345 = vmatpush1.msra.mxu0 0.0
    %346 = vmatprep.mubr.f32.mxu0 0.0
    %347 = vmatmul.mubr.f32.gmra.mrb[0].mxu0 %v146
    %v348 = vpop.f32.mrb[0].mxu0
    %v349 = vadd.f32 %v135, %v348
    %v350 = vpop.f32.mrb[0].mxu0
    %v351 = vadd.f32 %v139, %v350
    %352 = vmatprep.mubr.f32.mxu0 0.0
    %353 = vmatmul.mubr.f32.gmra.mrb[0].mxu0 %v149
    %v354 = vpop.f32.mrb[0].mxu0
    %v355 = vadd.f32 %v135, %v354
    %v356 = vpop.f32.mrb[0].mxu0
    %v357 = vadd.f32 %v139, %v356
    %358 = vmatprep.mubr.f32.mxu0 0.0
    %359 = vmatmul.mubr.f32.gmra.mrb[0].mxu0 %v152
    %v360 = vpop.f32.mrb[0].mxu0
    %v361 = vadd.f32 %v135, %v360
    %v362 = vpop.f32.mrb[0].mxu0
    %v363 = vadd.f32 %v139, %v362
    %364 = vmatprep.mubr.f32.mxu0 0.0
    %365 = vmatmul.mubr.f32.gmra.mrb[0].mxu0 %v155
    %v366 = vpop.f32.mrb[0].mxu0
    %v367 = vadd.f32 %v135, %v366
    %v368 = vpop.f32.mrb[0].mxu0
    %v369 = vadd.f32 %v139, %v368
    %370 = vmatprep.mubr.f32.mxu0 0.0
    %371 = vmatmul.mubr.f32.gmra.mrb[0].mxu0 %v158
    %v372 = vpop.f32.mrb[0].mxu0
    %v373 = vadd.f32 %v135, %v372
    %v374 = vpop.f32.mrb[0].mxu0
    %v375 = vadd.f32 %v139, %v374
    %376 = vmatprep.mubr.f32.mxu0 0.0
    %377 = vmatmul.mubr.f32.gmra.mrb[0].mxu0 %v161
    %v378 = vpop.f32.mrb[0].mxu0
    %v379 = vadd.f32 %v135, %v378
    %v380 = vpop.f32.mrb[0].mxu0
    %v381 = vadd.f32 %v139, %v380
    %382 = vmatprep.mubr.f32.mxu0 0.0
    %383 = vmatmul.mubr.f32.gmra.mrb[0].mxu0 %v164
    %v384 = vpop.f32.mrb[0].mxu0
    %v385 = vadd.f32 %v135, %v384
    %v386 = vpop.f32.mrb[0].mxu0
    %v387 = vadd.f32 %v139, %v386
    %388 = vmatprep.mubr.f32.mxu0 0.0
    %389 = vmatmul.mubr.f32.gmra.mrb[0].mxu0 %v167
    %v390 = vpop.f32.mrb[0].mxu0
    %v391 = vadd.f32 %v135, %v390
    %v392 = vpop.f32.mrb[0].mxu0
    %v393 = vadd.f32 %v139, %v392
    %394 = vdwg.mxu0
    %395 = vst [vmem:[#allocation3] sm:$0xff] %v236
    %396 = vst [vmem:[#allocation3 + $0x8] sm:$0xff] %v238
    %397 = vst [vmem:[#allocation3 + $0x10] sm:$0xff] %v349
    %398 = vst [vmem:[#allocation3 + $0x18] sm:$0xff] %v351
    %399 = vst [vmem:[#allocation3 + $0x20] sm:$0xff] %v242
    %400 = vst [vmem:[#allocation3 + $0x28] sm:$0xff] %v244
    %401 = vst [vmem:[#allocation3 + $0x30] sm:$0xff] %v355
    %402 = vst [vmem:[#allocation3 + $0x38] sm:$0xff] %v357
    %403 = vst [vmem:[#allocation3 + $0x40] sm:$0xff] %v248
    %404 = vst [vmem:[#allocation3 + $0x48] sm:$0xff] %v250
    %405 = vst [vmem:[#allocation3 + $0x50] sm:$0xff] %v361
    %406 = vst [vmem:[#allocation3 + $0x58] sm:$0xff] %v363
    %407 = vst [vmem:[#allocation3 + $0x60] sm:$0xff] %v254
    %408 = vst [vmem:[#allocation3 + $0x68] sm:$0xff] %v256
    %409 = vst [vmem:[#allocation3 + $0x70] sm:$0xff] %v367
    %410 = vst [vmem:[#allocation3 + $0x78] sm:$0xff] %v369
    %411 = vst [vmem:[#allocation3 + $0x80] sm:$0xff] %v260
    %412 = vst [vmem:[#allocation3 + $0x88] sm:$0xff] %v262
    %413 = vst [vmem:[#allocation3 + $0x90] sm:$0xff] %v373
    %414 = vst [vmem:[#allocation3 + $0x98] sm:$0xff] %v375
    %415 = vst [vmem:[#allocation3 + $0xa0] sm:$0xff] %v266
    %416 = vst [vmem:[#allocation3 + $0xa8] sm:$0xff] %v268
    %417 = vst [vmem:[#allocation3 + $0xb0] sm:$0xff] %v379
    %418 = vst [vmem:[#allocation3 + $0xb8] sm:$0xff] %v381
    %419 = vst [vmem:[#allocation3 + $0xc0] sm:$0xff] %v272
    %420 = vst [vmem:[#allocation3 + $0xc8] sm:$0xff] %v274
    %421 = vst [vmem:[#allocation3 + $0xd0] sm:$0xff] %v385
    %422 = vst [vmem:[#allocation3 + $0xd8] sm:$0xff] %v387
    %423 = vst [vmem:[#allocation3 + $0xe0] sm:$0xff] %v278
    %424 = vst [vmem:[#allocation3 + $0xe8] sm:$0xff] %v280
    %425 = vst [vmem:[#allocation3 + $0xf0] sm:$0xff] %v391
    %426 = vst [vmem:[#allocation3 + $0xf8] sm:$0xff] %v393
    %v427 = vld [vmem:[#allocation4] sm:$0xff]
    %v428 = vld [vmem:[#allocation4 + $0x8] sm:$0xff]
    %v429 = vld [vmem:[#allocation4 + $0x10] sm:$0xff]
    %v430 = vld [vmem:[#allocation4 + $0x18] sm:$0xff]
    %v431 = vld [vmem:[#allocation4 + $0x20] sm:$0xff]
    %v432 = vld [vmem:[#allocation4 + $0x28] sm:$0xff]
    %v433 = vld [vmem:[#allocation4 + $0x30] sm:$0xff]
    %v434 = vld [vmem:[#allocation4 + $0x38] sm:$0xff]
    %v435 = vld [vmem:[#allocation4 + $0x40] sm:$0xff]
    %v436 = vld [vmem:[#allocation4 + $0x48] sm:$0xff]
    %v437 = vld [vmem:[#allocation4 + $0x50] sm:$0xff]
    %v438 = vld [vmem:[#allocation4 + $0x58] sm:$0xff]
    %v439 = vld [vmem:[#allocation4 + $0x60] sm:$0xff]
    %v440 = vld [vmem:[#allocation4 + $0x68] sm:$0xff]
    %v441 = vld [vmem:[#allocation4 + $0x70] sm:$0xff]
    %v442 = vld [vmem:[#allocation4 + $0x78] sm:$0xff]
    %v443 = vld [vmem:[#allocation4 + $0x80] sm:$0xff]
    %v444 = vld [vmem:[#allocation4 + $0x88] sm:$0xff]
    %v445 = vld [vmem:[#allocation4 + $0x90] sm:$0xff]
    %v446 = vld [vmem:[#allocation4 + $0x98] sm:$0xff]
    %v447 = vld [vmem:[#allocation4 + $0xa0] sm:$0xff]
    %v448 = vld [vmem:[#allocation4 + $0xa8] sm:$0xff]
    %v449 = vld [vmem:[#allocation4 + $0xb0] sm:$0xff]
    %v450 = vld [vmem:[#allocation4 + $0xb8] sm:$0xff]
    %v451 = vld [vmem:[#allocation4 + $0xc0] sm:$0xff]
    %v452 = vld [vmem:[#allocation4 + $0xc8] sm:$0xff]
    %v453 = vld [vmem:[#allocation4 + $0xd0] sm:$0xff]
    %v454 = vld [vmem:[#allocation4 + $0xd8] sm:$0xff]
    %v455 = vld [vmem:[#allocation4 + $0xe0] sm:$0xff]
    %v456 = vld [vmem:[#allocation4 + $0xe8] sm:$0xff]
    %v457 = vld [vmem:[#allocation4 + $0xf0] sm:$0xff]
    %v458 = vld [vmem:[#allocation4 + $0xf8] sm:$0xff]
    %v459 = vld [vmem:[#allocation4 + $0x100] sm:$0xff]
    %v460 = vld [vmem:[#allocation4 + $0x108] sm:$0xff]
    %v461 = vld [vmem:[#allocation4 + $0x110] sm:$0xff]
    %v462 = vld [vmem:[#allocation4 + $0x118] sm:$0xff]
    %v463 = vld [vmem:[#allocation4 + $0x120] sm:$0xff]
    %v464 = vld [vmem:[#allocation4 + $0x128] sm:$0xff]
    %v465 = vld [vmem:[#allocation4 + $0x130] sm:$0xff]
    %v466 = vld [vmem:[#allocation4 + $0x138] sm:$0xff]
    %v467 = vld [vmem:[#allocation4 + $0x140] sm:$0xff]
    %v468 = vld [vmem:[#allocation4 + $0x148] sm:$0xff]
    %v469 = vld [vmem:[#allocation4 + $0x150] sm:$0xff]
    %v470 = vld [vmem:[#allocation4 + $0x158] sm:$0xff]
    %v471 = vld [vmem:[#allocation4 + $0x160] sm:$0xff]
    %v472 = vld [vmem:[#allocation4 + $0x168] sm:$0xff]
    %v473 = vld [vmem:[#allocation4 + $0x170] sm:$0xff]
    %v474 = vld [vmem:[#allocation4 + $0x178] sm:$0xff]
    %v475 = vld [vmem:[#allocation4 + $0x180] sm:$0xff]
    %v476 = vld [vmem:[#allocation4 + $0x188] sm:$0xff]
    %v477 = vld [vmem:[#allocation4 + $0x190] sm:$0xff]
    %v478 = vld [vmem:[#allocation4 + $0x198] sm:$0xff]
    %v479 = vld [vmem:[#allocation4 + $0x1a0] sm:$0xff]
    %v480 = vld [vmem:[#allocation4 + $0x1a8] sm:$0xff]
    %v481 = vld [vmem:[#allocation4 + $0x1b0] sm:$0xff]
    %v482 = vld [vmem:[#allocation4 + $0x1b8] sm:$0xff]
    %v483 = vld [vmem:[#allocation4 + $0x1c0] sm:$0xff]
    %v484 = vld [vmem:[#allocation4 + $0x1c8] sm:$0xff]
    %v485 = vld [vmem:[#allocation4 + $0x1d0] sm:$0xff]
    %v486 = vld [vmem:[#allocation4 + $0x1d8] sm:$0xff]
    %v487 = vld [vmem:[#allocation4 + $0x1e0] sm:$0xff]
    %v488 = vld [vmem:[#allocation4 + $0x1e8] sm:$0xff]
    %v489 = vld [vmem:[#allocation4 + $0x1f0] sm:$0xff]
    %v490 = vld [vmem:[#allocation4 + $0x1f8] sm:$0xff]
    %s491 = smul.u32 0, 4
    %s492 = smul.addr %s491, 8
    %s493 = scalar_lea.vmem [#allocation3], %s492
    %v494 = vld [vmem:[%s493] sm:$0xff]
    %v495 = vld [vmem:[%s493 + $0x8] sm:$0xff]
    %v496 = vld [vmem:[%s493 + $0x10] sm:$0xff]
    %v497 = vld [vmem:[%s493 + $0x18] sm:$0xff]
    %498 = vmatprep.subr.mxu0 %v428
    %499 = vmatpush1.msra.mxu0 %v427
    %500 = vmatprep.subr.mxu0 %v432
    %501 = vmatpush1.msra.mxu0 %v431
    %502 = vmatprep.subr.mxu0 %v436
    %503 = vmatpush1.msra.mxu0 %v435
    %504 = vmatprep.subr.mxu0 %v440
    %505 = vmatpush1.msra.mxu0 %v439
    %506 = vmatprep.subr.mxu0 %v444
    %507 = vmatpush1.msra.mxu0 %v443
    %508 = vmatprep.subr.mxu0 %v448
    %509 = vmatpush1.msra.mxu0 %v447
    %510 = vmatprep.subr.mxu0 %v452
    %511 = vmatpush1.msra.mxu0 %v451
    %512 = vmatprep.subr.mxu0 %v456
    %513 = vmatpush1.msra.mxu0 %v455
    %514 = vmatprep.subr.mxu0 %v460
    %515 = vmatpush1.msra.mxu0 %v459
    %516 = vmatprep.subr.mxu0 %v464
    %517 = vmatpush1.msra.mxu0 %v463
    %518 = vmatprep.subr.mxu0 %v468
    %519 = vmatpush1.msra.mxu0 %v467
    %520 = vmatprep.subr.mxu0 %v472
    %521 = vmatpush1.msra.mxu0 %v471
    %522 = vmatprep.subr.mxu0 %v476
    %523 = vmatpush1.msra.mxu0 %v475
    %524 = vmatprep.subr.mxu0 %v480
    %525 = vmatpush1.msra.mxu0 %v479
    %526 = vmatprep.subr.mxu0 %v484
    %527 = vmatpush1.msra.mxu0 %v483
    %528 = vmatprep.subr.mxu0 %v488
    %529 = vmatpush1.msra.mxu0 %v487
    %530 = vmatprep.subr.mxu0 0.0
    %531 = vmatpush1.msra.mxu0 0.0
    %532 = vmatprep.subr.mxu0 0.0
    %533 = vmatpush1.msra.mxu0 0.0
    %534 = vmatprep.subr.mxu0 0.0
    %535 = vmatpush1.msra.mxu0 0.0
    %536 = vmatprep.subr.mxu0 0.0
    %537 = vmatpush1.msra.mxu0 0.0
    %538 = vmatprep.subr.mxu0 0.0
    %539 = vmatpush1.msra.mxu0 0.0
    %540 = vmatprep.subr.mxu0 0.0
    %541 = vmatpush1.msra.mxu0 0.0
    %542 = vmatprep.subr.mxu0 0.0
    %543 = vmatpush1.msra.mxu0 0.0
    %544 = vmatprep.subr.mxu0 0.0
    %545 = vmatpush1.msra.mxu0 0.0
    %546 = vmatprep.subr.mxu0 0.0
    %547 = vmatpush1.msra.mxu0 0.0
    %548 = vmatprep.subr.mxu0 0.0
    %549 = vmatpush1.msra.mxu0 0.0
    %550 = vmatprep.subr.mxu0 0.0
    %551 = vmatpush1.msra.mxu0 0.0
    %552 = vmatprep.subr.mxu0 0.0
    %553 = vmatpush1.msra.mxu0 0.0
    %554 = vmatprep.subr.mxu0 0.0
    %555 = vmatpush1.msra.mxu0 0.0
    %556 = vmatprep.subr.mxu0 0.0
    %557 = vmatpush1.msra.mxu0 0.0
    %558 = vmatprep.subr.mxu0 0.0
    %559 = vmatpush1.msra.mxu0 0.0
    %560 = vmatprep.subr.mxu0 0.0
    %561 = vmatpush1.msra.mxu0 0.0
    %562 = vmatprep.mubr.f32.mxu0 0.0
    %563 = vmatmul.mubr.f32.gmra.mrb[0].mxu0 0.0
    %v564 = vpop.f32.mrb[0].mxu0
    %v565 = vadd.f32 0.0, %v564
    %v566 = vpop.f32.mrb[0].mxu0
    %v567 = vadd.f32 0.0, %v566
    %568 = vdwg.mxu0
    %569 = vmatprep.subr.mxu0 %v430
    %570 = vmatpush1.msra.mxu0 %v429
    %571 = vmatprep.subr.mxu0 %v434
    %572 = vmatpush1.msra.mxu0 %v433
    %573 = vmatprep.subr.mxu0 %v438
    %574 = vmatpush1.msra.mxu0 %v437
    %575 = vmatprep.subr.mxu0 %v442
    %576 = vmatpush1.msra.mxu0 %v441
    %577 = vmatprep.subr.mxu0 %v446
    %578 = vmatpush1.msra.mxu0 %v445
    %579 = vmatprep.subr.mxu0 %v450
    %580 = vmatpush1.msra.mxu0 %v449
    %581 = vmatprep.subr.mxu0 %v454
    %582 = vmatpush1.msra.mxu0 %v453
    %583 = vmatprep.subr.mxu0 %v458
    %584 = vmatpush1.msra.mxu0 %v457
    %585 = vmatprep.subr.mxu0 %v462
    %586 = vmatpush1.msra.mxu0 %v461
    %587 = vmatprep.subr.mxu0 %v466
    %588 = vmatpush1.msra.mxu0 %v465
    %589 = vmatprep.subr.mxu0 %v470
    %590 = vmatpush1.msra.mxu0 %v469
    %591 = vmatprep.subr.mxu0 %v474
    %592 = vmatpush1.msra.mxu0 %v473
    %593 = vmatprep.subr.mxu0 %v478
    %594 = vmatpush1.msra.mxu0 %v477
    %595 = vmatprep.subr.mxu0 %v482
    %596 = vmatpush1.msra.mxu0 %v481
    %597 = vmatprep.subr.mxu0 %v486
    %598 = vmatpush1.msra.mxu0 %v485
    %599 = vmatprep.subr.mxu0 %v490
    %600 = vmatpush1.msra.mxu0 %v489
    %601 = vmatprep.subr.mxu0 0.0
    %602 = vmatpush1.msra.mxu0 0.0
    %603 = vmatprep.subr.mxu0 0.0
    %604 = vmatpush1.msra.mxu0 0.0
    %605 = vmatprep.subr.mxu0 0.0
    %606 = vmatpush1.msra.mxu0 0.0
    %607 = vmatprep.subr.mxu0 0.0
    %608 = vmatpush1.msra.mxu0 0.0
    %609 = vmatprep.subr.mxu0 0.0
    %610 = vmatpush1.msra.mxu0 0.0
    %611 = vmatprep.subr.mxu0 0.0
    %612 = vmatpush1.msra.mxu0 0.0
    %613 = vmatprep.subr.mxu0 0.0
    %614 = vmatpush1.msra.mxu0 0.0
    %615 = vmatprep.subr.mxu0 0.0
    %616 = vmatpush1.msra.mxu0 0.0
    %617 = vmatprep.subr.mxu0 0.0
    %618 = vmatpush1.msra.mxu0 0.0
    %619 = vmatprep.subr.mxu0 0.0
    %620 = vmatpush1.msra.mxu0 0.0
    %621 = vmatprep.subr.mxu0 0.0
    %622 = vmatpush1.msra.mxu0 0.0
    %623 = vmatprep.subr.mxu0 0.0
    %624 = vmatpush1.msra.mxu0 0.0
    %625 = vmatprep.subr.mxu0 0.0
    %626 = vmatpush1.msra.mxu0 0.0
    %627 = vmatprep.subr.mxu0 0.0
    %628 = vmatpush1.msra.mxu0 0.0
    %629 = vmatprep.subr.mxu0 0.0
    %630 = vmatpush1.msra.mxu0 0.0
    %631 = vmatprep.subr.mxu0 0.0
    %632 = vmatpush1.msra.mxu0 0.0
    %633 = vmatprep.mubr.f32.mxu0 0.0
    %634 = vmatmul.mubr.f32.gmra.mrb[0].mxu0 0.0
    %v635 = vpop.f32.mrb[0].mxu0
    %v636 = vadd.f32 0.0, %v635
    %v637 = vpop.f32.mrb[0].mxu0
    %v638 = vadd.f32 0.0, %v637
    %639 = vdwg.mxu0
    %v640 = vadd.f32 %v494, %v565
    %v641 = vadd.f32 %v495, %v567
    %v642 = vadd.f32 %v496, %v636
    %v643 = vadd.f32 %v497, %v638
    %v644 = vxor.u32 %v640, 2147483648
    %v645 = vmul.f32 %v644, 1.442695
    %v646 = vpow.pop %v645
    %v647 = vadd.f32 %v646, 1.0
    %v648 = vrcp.pop %v647
    %v649 = vmul.f32 1.0, %v648
    %v650 = vxor.u32 %v641, 2147483648
    %v651 = vmul.f32 %v650, 1.442695
    %v652 = vpow.pop %v651
    %v653 = vadd.f32 %v652, 1.0
    %v654 = vrcp.pop %v653
    %v655 = vmul.f32 1.0, %v654
    %v656 = vtanh.pop %v642
    %v657 = vxor.u32 %v643, 2147483648
    %v658 = vmul.f32 %v657, 1.442695
    %v659 = vpow.pop %v658
    %v660 = vadd.f32 %v659, 1.0
    %v661 = vrcp.pop %v660
    %v662 = vmul.f32 1.0, %v661
    %v663 = vmul.f32 %v655, 0.0
    %v664 = vmul.f32 %v649, %v656
    %v665 = vadd.f32 %v663, %v664
    %v666 = vtanh.pop %v665
    %v667 = vmul.f32 %v662, %v666
    %v668 = vmax.f32 %v667, 0.0
    %669 = vst [vmem:[#allocation2] sm:$0xff] %v668
    %s670 = smul.u32 1, 4
    %s671 = smul.addr %s670, 8
    %s672 = scalar_lea.vmem [#allocation3], %s671
    %v673 = vld [vmem:[%s672] sm:$0xff]
    %v674 = vld [vmem:[%s672 + $0x8] sm:$0xff]
    %v675 = vld [vmem:[%s672 + $0x10] sm:$0xff]
    %v676 = vld [vmem:[%s672 + $0x18] sm:$0xff]
    %677 = vmatprep.subr.mxu0 %v428
    %678 = vmatpush1.msra.mxu0 %v427
    %679 = vmatprep.subr.mxu0 %v432
    %680 = vmatpush1.msra.mxu0 %v431
    %681 = vmatprep.subr.mxu0 %v436
    %682 = vmatpush1.msra.mxu0 %v435
    %683 = vmatprep.subr.mxu0 %v440
    %684 = vmatpush1.msra.mxu0 %v439
    %685 = vmatprep.subr.mxu0 %v444
    %686 = vmatpush1.msra.mxu0 %v443
    %687 = vmatprep.subr.mxu0 %v448
    %688 = vmatpush1.msra.mxu0 %v447
    %689 = vmatprep.subr.mxu0 %v452
    %690 = vmatpush1.msra.mxu0 %v451
    %691 = vmatprep.subr.mxu0 %v456
    %692 = vmatpush1.msra.mxu0 %v455
    %693 = vmatprep.subr.mxu0 %v460
    %694 = vmatpush1.msra.mxu0 %v459
    %695 = vmatprep.subr.mxu0 %v464
    %696 = vmatpush1.msra.mxu0 %v463
    %697 = vmatprep.subr.mxu0 %v468
    %698 = vmatpush1.msra.mxu0 %v467
    %699 = vmatprep.subr.mxu0 %v472
    %700 = vmatpush1.msra.mxu0 %v471
    %701 = vmatprep.subr.mxu0 %v476
    %702 = vmatpush1.msra.mxu0 %v475
    %703 = vmatprep.subr.mxu0 %v480
    %704 = vmatpush1.msra.mxu0 %v479
    %705 = vmatprep.subr.mxu0 %v484
    %706 = vmatpush1.msra.mxu0 %v483
    %707 = vmatprep.subr.mxu0 %v488
    %708 = vmatpush1.msra.mxu0 %v487
    %709 = vmatprep.subr.mxu0 0.0
    %710 = vmatpush1.msra.mxu0 0.0
    %711 = vmatprep.subr.mxu0 0.0
    %712 = vmatpush1.msra.mxu0 0.0
    %713 = vmatprep.subr.mxu0 0.0
    %714 = vmatpush1.msra.mxu0 0.0
    %715 = vmatprep.subr.mxu0 0.0
    %716 = vmatpush1.msra.mxu0 0.0
    %717 = vmatprep.subr.mxu0 0.0
    %718 = vmatpush1.msra.mxu0 0.0
    %719 = vmatprep.subr.mxu0 0.0
    %720 = vmatpush1.msra.mxu0 0.0
    %721 = vmatprep.subr.mxu0 0.0
    %722 = vmatpush1.msra.mxu0 0.0
    %723 = vmatprep.subr.mxu0 0.0
    %724 = vmatpush1.msra.mxu0 0.0
    %725 = vmatprep.subr.mxu0 0.0
    %726 = vmatpush1.msra.mxu0 0.0
    %727 = vmatprep.subr.mxu0 0.0
    %728 = vmatpush1.msra.mxu0 0.0
    %729 = vmatprep.subr.mxu0 0.0
    %730 = vmatpush1.msra.mxu0 0.0
    %731 = vmatprep.subr.mxu0 0.0
    %732 = vmatpush1.msra.mxu0 0.0
    %733 = vmatprep.subr.mxu0 0.0
    %734 = vmatpush1.msra.mxu0 0.0
    %735 = vmatprep.subr.mxu0 0.0
    %736 = vmatpush1.msra.mxu0 0.0
    %737 = vmatprep.subr.mxu0 0.0
    %738 = vmatpush1.msra.mxu0 0.0
    %739 = vmatprep.subr.mxu0 0.0
    %740 = vmatpush1.msra.mxu0 0.0
    %741 = vmatprep.mubr.f32.mxu0 0.0
    %742 = vmatmul.mubr.f32.gmra.mrb[0].mxu0 %v667
    %v743 = vpop.f32.mrb[0].mxu0
    %v744 = vadd.f32 0.0, %v743
    %v745 = vpop.f32.mrb[0].mxu0
    %v746 = vadd.f32 0.0, %v745
    %747 = vdwg.mxu0
    %748 = vmatprep.subr.mxu0 %v430
    %749 = vmatpush1.msra.mxu0 %v429
    %750 = vmatprep.subr.mxu0 %v434
    %751 = vmatpush1.msra.mxu0 %v433
    %752 = vmatprep.subr.mxu0 %v438
    %753 = vmatpush1.msra.mxu0 %v437
    %754 = vmatprep.subr.mxu0 %v442
    %755 = vmatpush1.msra.mxu0 %v441
    %756 = vmatprep.subr.mxu0 %v446
    %757 = vmatpush1.msra.mxu0 %v445
    %758 = vmatprep.subr.mxu0 %v450
    %759 = vmatpush1.msra.mxu0 %v449
    %760 = vmatprep.subr.mxu0 %v454
    %761 = vmatpush1.msra.mxu0 %v453
    %762 = vmatprep.subr.mxu0 %v458
    %763 = vmatpush1.msra.mxu0 %v457
    %764 = vmatprep.subr.mxu0 %v462
    %765 = vmatpush1.msra.mxu0 %v461
    %766 = vmatprep.subr.mxu0 %v466
    %767 = vmatpush1.msra.mxu0 %v465
    %768 = vmatprep.subr.mxu0 %v470
    %769 = vmatpush1.msra.mxu0 %v469
    %770 = vmatprep.subr.mxu0 %v474
    %771 = vmatpush1.msra.mxu0 %v473
    %772 = vmatprep.subr.mxu0 %v478
    %773 = vmatpush1.msra.mxu0 %v477
    %774 = vmatprep.subr.mxu0 %v482
    %775 = vmatpush1.msra.mxu0 %v481
    %776 = vmatprep.subr.mxu0 %v486
    %777 = vmatpush1.msra.mxu0 %v485
    %778 = vmatprep.subr.mxu0 %v490
    %779 = vmatpush1.msra.mxu0 %v489
    %780 = vmatprep.subr.mxu0 0.0
    %781 = vmatpush1.msra.mxu0 0.0
    %782 = vmatprep.subr.mxu0 0.0
    %783 = vmatpush1.msra.mxu0 0.0
    %784 = vmatprep.subr.mxu0 0.0
    %785 = vmatpush1.msra.mxu0 0.0
    %786 = vmatprep.subr.mxu0 0.0
    %787 = vmatpush1.msra.mxu0 0.0
    %788 = vmatprep.subr.mxu0 0.0
    %789 = vmatpush1.msra.mxu0 0.0
    %790 = vmatprep.subr.mxu0 0.0
    %791 = vmatpush1.msra.mxu0 0.0
    %792 = vmatprep.subr.mxu0 0.0
    %793 = vmatpush1.msra.mxu0 0.0
    %794 = vmatprep.subr.mxu0 0.0
    %795 = vmatpush1.msra.mxu0 0.0
    %796 = vmatprep.subr.mxu0 0.0
    %797 = vmatpush1.msra.mxu0 0.0
    %798 = vmatprep.subr.mxu0 0.0
    %799 = vmatpush1.msra.mxu0 0.0
    %800 = vmatprep.subr.mxu0 0.0
    %801 = vmatpush1.msra.mxu0 0.0
    %802 = vmatprep.subr.mxu0 0.0
    %803 = vmatpush1.msra.mxu0 0.0
    %804 = vmatprep.subr.mxu0 0.0
    %805 = vmatpush1.msra.mxu0 0.0
    %806 = vmatprep.subr.mxu0 0.0
    %807 = vmatpush1.msra.mxu0 0.0
    %808 = vmatprep.subr.mxu0 0.0
    %809 = vmatpush1.msra.mxu0 0.0
    %810 = vmatprep.subr.mxu0 0.0
    %811 = vmatpush1.msra.mxu0 0.0
    %812 = vmatprep.mubr.f32.mxu0 0.0
    %813 = vmatmul.mubr.f32.gmra.mrb[0].mxu0 %v667
    %v814 = vpop.f32.mrb[0].mxu0
    %v815 = vadd.f32 0.0, %v814
    %v816 = vpop.f32.mrb[0].mxu0
    %v817 = vadd.f32 0.0, %v816
    %818 = vdwg.mxu0
    %v819 = vadd.f32 %v673, %v744
    %v820 = vadd.f32 %v674, %v746
    %v821 = vadd.f32 %v675, %v815
    %v822 = vadd.f32 %v676, %v817
    %v823 = vxor.u32 %v819, 2147483648
    %v824 = vmul.f32 %v823, 1.442695
    %v825 = vpow.pop %v824
    %v826 = vadd.f32 %v825, 1.0
    %v827 = vrcp.pop %v826
    %v828 = vmul.f32 1.0, %v827
    %v829 = vxor.u32 %v820, 2147483648
    %v830 = vmul.f32 %v829, 1.442695
    %v831 = vpow.pop %v830
    %v832 = vadd.f32 %v831, 1.0
    %v833 = vrcp.pop %v832
    %v834 = vmul.f32 1.0, %v833
    %v835 = vtanh.pop %v821
    %v836 = vxor.u32 %v822, 2147483648
    %v837 = vmul.f32 %v836, 1.442695
    %v838 = vpow.pop %v837
    %v839 = vadd.f32 %v838, 1.0
    %v840 = vrcp.pop %v839
    %v841 = vmul.f32 1.0, %v840
    %v842 = vmul.f32 %v834, %v665
    %v843 = vmul.f32 %v828, %v835
    %v844 = vadd.f32 %v842, %v843
    %v845 = vtanh.pop %v844
    %v846 = vmul.f32 %v841, %v845
    %v847 = vmax.f32 %v846, 0.0
    %s848 = scalar_lea.vmem [#allocation2], 8
    %849 = vst [vmem:[%s848] sm:$0xff] %v847
    %s850 = smul.u32 2, 4
    %s851 = smul.addr %s850, 8
    %s852 = scalar_lea.vmem [#allocation3], %s851
    %v853 = vld [vmem:[%s852] sm:$0xff]
    %v854 = vld [vmem:[%s852 + $0x8] sm:$0xff]
    %v855 = vld [vmem:[%s852 + $0x10] sm:$0xff]
    %v856 = vld [vmem:[%s852 + $0x18] sm:$0xff]
    %857 = vmatprep.subr.mxu0 %v428
    %858 = vmatpush1.msra.mxu0 %v427
    %859 = vmatprep.subr.mxu0 %v432
    %860 = vmatpush1.msra.mxu0 %v431
    %861 = vmatprep.subr.mxu0 %v436
    %862 = vmatpush1.msra.mxu0 %v435
    %863 = vmatprep.subr.mxu0 %v440
    %864 = vmatpush1.msra.mxu0 %v439
    %865 = vmatprep.subr.mxu0 %v444
    %866 = vmatpush1.msra.mxu0 %v443
    %867 = vmatprep.subr.mxu0 %v448
    %868 = vmatpush1.msra.mxu0 %v447
    %869 = vmatprep.subr.mxu0 %v452
    %870 = vmatpush1.msra.mxu0 %v451
    %871 = vmatprep.subr.mxu0 %v456
    %872 = vmatpush1.msra.mxu0 %v455
    %873 = vmatprep.subr.mxu0 %v460
    %874 = vmatpush1.msra.mxu0 %v459
    %875 = vmatprep.subr.mxu0 %v464
    %876 = vmatpush1.msra.mxu0 %v463
    %877 = vmatprep.subr.mxu0 %v468
    %878 = vmatpush1.msra.mxu0 %v467
    %879 = vmatprep.subr.mxu0 %v472
    %880 = vmatpush1.msra.mxu0 %v471
    %881 = vmatprep.subr.mxu0 %v476
    %882 = vmatpush1.msra.mxu0 %v475
    %883 = vmatprep.subr.mxu0 %v480
    %884 = vmatpush1.msra.mxu0 %v479
    %885 = vmatprep.subr.mxu0 %v484
    %886 = vmatpush1.msra.mxu0 %v483
    %887 = vmatprep.subr.mxu0 %v488
    %888 = vmatpush1.msra.mxu0 %v487
    %889 = vmatprep.subr.mxu0 0.0
    %890 = vmatpush1.msra.mxu0 0.0
    %891 = vmatprep.subr.mxu0 0.0
    %892 = vmatpush1.msra.mxu0 0.0
    %893 = vmatprep.subr.mxu0 0.0
    %894 = vmatpush1.msra.mxu0 0.0
    %895 = vmatprep.subr.mxu0 0.0
    %896 = vmatpush1.msra.mxu0 0.0
    %897 = vmatprep.subr.mxu0 0.0
    %898 = vmatpush1.msra.mxu0 0.0
    %899 = vmatprep.subr.mxu0 0.0
    %900 = vmatpush1.msra.mxu0 0.0
    %901 = vmatprep.subr.mxu0 0.0
    %902 = vmatpush1.msra.mxu0 0.0
    %903 = vmatprep.subr.mxu0 0.0
    %904 = vmatpush1.msra.mxu0 0.0
    %905 = vmatprep.subr.mxu0 0.0
    %906 = vmatpush1.msra.mxu0 0.0
    %907 = vmatprep.subr.mxu0 0.0
    %908 = vmatpush1.msra.mxu0 0.0
    %909 = vmatprep.subr.mxu0 0.0
    %910 = vmatpush1.msra.mxu0 0.0
    %911 = vmatprep.subr.mxu0 0.0
    %912 = vmatpush1.msra.mxu0 0.0
    %913 = vmatprep.subr.mxu0 0.0
    %914 = vmatpush1.msra.mxu0 0.0
    %915 = vmatprep.subr.mxu0 0.0
    %916 = vmatpush1.msra.mxu0 0.0
    %917 = vmatprep.subr.mxu0 0.0
    %918 = vmatpush1.msra.mxu0 0.0
    %919 = vmatprep.subr.mxu0 0.0
    %920 = vmatpush1.msra.mxu0 0.0
    %921 = vmatprep.mubr.f32.mxu0 0.0
    %922 = vmatmul.mubr.f32.gmra.mrb[0].mxu0 %v846
    %v923 = vpop.f32.mrb[0].mxu0
    %v924 = vadd.f32 0.0, %v923
    %v925 = vpop.f32.mrb[0].mxu0
    %v926 = vadd.f32 0.0, %v925
    %927 = vdwg.mxu0
    %928 = vmatprep.subr.mxu0 %v430
    %929 = vmatpush1.msra.mxu0 %v429
    %930 = vmatprep.subr.mxu0 %v434
    %931 = vmatpush1.msra.mxu0 %v433
    %932 = vmatprep.subr.mxu0 %v438
    %933 = vmatpush1.msra.mxu0 %v437
    %934 = vmatprep.subr.mxu0 %v442
    %935 = vmatpush1.msra.mxu0 %v441
    %936 = vmatprep.subr.mxu0 %v446
    %937 = vmatpush1.msra.mxu0 %v445
    %938 = vmatprep.subr.mxu0 %v450
    %939 = vmatpush1.msra.mxu0 %v449
    %940 = vmatprep.subr.mxu0 %v454
    %941 = vmatpush1.msra.mxu0 %v453
    %942 = vmatprep.subr.mxu0 %v458
    %943 = vmatpush1.msra.mxu0 %v457
    %944 = vmatprep.subr.mxu0 %v462
    %945 = vmatpush1.msra.mxu0 %v461
    %946 = vmatprep.subr.mxu0 %v466
    %947 = vmatpush1.msra.mxu0 %v465
    %948 = vmatprep.subr.mxu0 %v470
    %949 = vmatpush1.msra.mxu0 %v469
    %950 = vmatprep.subr.mxu0 %v474
    %951 = vmatpush1.msra.mxu0 %v473
    %952 = vmatprep.subr.mxu0 %v478
    %953 = vmatpush1.msra.mxu0 %v477
    %954 = vmatprep.subr.mxu0 %v482
    %955 = vmatpush1.msra.mxu0 %v481
    %956 = vmatprep.subr.mxu0 %v486
    %957 = vmatpush1.msra.mxu0 %v485
    %958 = vmatprep.subr.mxu0 %v490
    %959 = vmatpush1.msra.mxu0 %v489
    %960 = vmatprep.subr.mxu0 0.0
    %961 = vmatpush1.msra.mxu0 0.0
    %962 = vmatprep.subr.mxu0 0.0
    %963 = vmatpush1.msra.mxu0 0.0
    %964 = vmatprep.subr.mxu0 0.0
    %965 = vmatpush1.msra.mxu0 0.0
    %966 = vmatprep.subr.mxu0 0.0
    %967 = vmatpush1.msra.mxu0 0.0
    %968 = vmatprep.subr.mxu0 0.0
    %969 = vmatpush1.msra.mxu0 0.0
    %970 = vmatprep.subr.mxu0 0.0
    %971 = vmatpush1.msra.mxu0 0.0
    %972 = vmatprep.subr.mxu0 0.0
    %973 = vmatpush1.msra.mxu0 0.0
    %974 = vmatprep.subr.mxu0 0.0
    %975 = vmatpush1.msra.mxu0 0.0
    %976 = vmatprep.subr.mxu0 0.0
    %977 = vmatpush1.msra.mxu0 0.0
    %978 = vmatprep.subr.mxu0 0.0
    %979 = vmatpush1.msra.mxu0 0.0
    %980 = vmatprep.subr.mxu0 0.0
    %981 = vmatpush1.msra.mxu0 0.0
    %982 = vmatprep.subr.mxu0 0.0
    %983 = vmatpush1.msra.mxu0 0.0
    %984 = vmatprep.subr.mxu0 0.0
    %985 = vmatpush1.msra.mxu0 0.0
    %986 = vmatprep.subr.mxu0 0.0
    %987 = vmatpush1.msra.mxu0 0.0
    %988 = vmatprep.subr.mxu0 0.0
    %989 = vmatpush1.msra.mxu0 0.0
    %990 = vmatprep.subr.mxu0 0.0
    %991 = vmatpush1.msra.mxu0 0.0
    %992 = vmatprep.mubr.f32.mxu0 0.0
    %993 = vmatmul.mubr.f32.gmra.mrb[0].mxu0 %v846
    %v994 = vpop.f32.mrb[0].mxu0
    %v995 = vadd.f32 0.0, %v994
    %v996 = vpop.f32.mrb[0].mxu0
    %v997 = vadd.f32 0.0, %v996
    %998 = vdwg.mxu0
    %v999 = vadd.f32 %v853, %v924
    %v1000 = vadd.f32 %v854, %v926
    %v1001 = vadd.f32 %v855, %v995
    %v1002 = vadd.f32 %v856, %v997
    %v1003 = vxor.u32 %v999, 2147483648
    %v1004 = vmul.f32 %v1003, 1.442695
    %v1005 = vpow.pop %v1004
    %v1006 = vadd.f32 %v1005, 1.0
    %v1007 = vrcp.pop %v1006
    %v1008 = vmul.f32 1.0, %v1007
    %v1009 = vxor.u32 %v1000, 2147483648
    %v1010 = vmul.f32 %v1009, 1.442695
    %v1011 = vpow.pop %v1010
    %v1012 = vadd.f32 %v1011, 1.0
    %v1013 = vrcp.pop %v1012
    %v1014 = vmul.f32 1.0, %v1013
    %v1015 = vtanh.pop %v1001
    %v1016 = vxor.u32 %v1002, 2147483648
    %v1017 = vmul.f32 %v1016, 1.442695
    %v1018 = vpow.pop %v1017
    %v1019 = vadd.f32 %v1018, 1.0
    %v1020 = vrcp.pop %v1019
    %v1021 = vmul.f32 1.0, %v1020
    %v1022 = vmul.f32 %v1014, %v844
    %v1023 = vmul.f32 %v1008, %v1015
    %v1024 = vadd.f32 %v1022, %v1023
    %v1025 = vtanh.pop %v1024
    %v1026 = vmul.f32 %v1021, %v1025
    %v1027 = vmax.f32 %v1026, 0.0
    %s1028 = scalar_lea.vmem [#allocation2], 16
    %1029 = vst [vmem:[%s1028] sm:$0xff] %v1027
    %s1030 = smul.u32 3, 4
    %s1031 = smul.addr %s1030, 8
    %s1032 = scalar_lea.vmem [#allocation3], %s1031
    %v1033 = vld [vmem:[%s1032] sm:$0xff]
    %v1034 = vld [vmem:[%s1032 + $0x8] sm:$0xff]
    %v1035 = vld [vmem:[%s1032 + $0x10] sm:$0xff]
    %v1036 = vld [vmem:[%s1032 + $0x18] sm:$0xff]
    %1037 = vmatprep.subr.mxu0 %v428
    %1038 = vmatpush1.msra.mxu0 %v427
    %1039 = vmatprep.subr.mxu0 %v432
    %1040 = vmatpush1.msra.mxu0 %v431
    %1041 = vmatprep.subr.mxu0 %v436
    %1042 = vmatpush1.msra.mxu0 %v435
    %1043 = vmatprep.subr.mxu0 %v440
    %1044 = vmatpush1.msra.mxu0 %v439
    %1045 = vmatprep.subr.mxu0 %v444
    %1046 = vmatpush1.msra.mxu0 %v443
    %1047 = vmatprep.subr.mxu0 %v448
    %1048 = vmatpush1.msra.mxu0 %v447
    %1049 = vmatprep.subr.mxu0 %v452
    %1050 = vmatpush1.msra.mxu0 %v451
    %1051 = vmatprep.subr.mxu0 %v456
    %1052 = vmatpush1.msra.mxu0 %v455
    %1053 = vmatprep.subr.mxu0 %v460
    %1054 = vmatpush1.msra.mxu0 %v459
    %1055 = vmatprep.subr.mxu0 %v464
    %1056 = vmatpush1.msra.mxu0 %v463
    %1057 = vmatprep.subr.mxu0 %v468
    %1058 = vmatpush1.msra.mxu0 %v467
    %1059 = vmatprep.subr.mxu0 %v472
    %1060 = vmatpush1.msra.mxu0 %v471
    %1061 = vmatprep.subr.mxu0 %v476
    %1062 = vmatpush1.msra.mxu0 %v475
    %1063 = vmatprep.subr.mxu0 %v480
    %1064 = vmatpush1.msra.mxu0 %v479
    %1065 = vmatprep.subr.mxu0 %v484
    %1066 = vmatpush1.msra.mxu0 %v483
    %1067 = vmatprep.subr.mxu0 %v488
    %1068 = vmatpush1.msra.mxu0 %v487
    %1069 = vmatprep.subr.mxu0 0.0
    %1070 = vmatpush1.msra.mxu0 0.0
    %1071 = vmatprep.subr.mxu0 0.0
    %1072 = vmatpush1.msra.mxu0 0.0
    %1073 = vmatprep.subr.mxu0 0.0
    %1074 = vmatpush1.msra.mxu0 0.0
    %1075 = vmatprep.subr.mxu0 0.0
    %1076 = vmatpush1.msra.mxu0 0.0
    %1077 = vmatprep.subr.mxu0 0.0
    %1078 = vmatpush1.msra.mxu0 0.0
    %1079 = vmatprep.subr.mxu0 0.0
    %1080 = vmatpush1.msra.mxu0 0.0
    %1081 = vmatprep.subr.mxu0 0.0
    %1082 = vmatpush1.msra.mxu0 0.0
    %1083 = vmatprep.subr.mxu0 0.0
    %1084 = vmatpush1.msra.mxu0 0.0
    %1085 = vmatprep.subr.mxu0 0.0
    %1086 = vmatpush1.msra.mxu0 0.0
    %1087 = vmatprep.subr.mxu0 0.0
    %1088 = vmatpush1.msra.mxu0 0.0
    %1089 = vmatprep.subr.mxu0 0.0
    %1090 = vmatpush1.msra.mxu0 0.0
    %1091 = vmatprep.subr.mxu0 0.0
    %1092 = vmatpush1.msra.mxu0 0.0
    %1093 = vmatprep.subr.mxu0 0.0
    %1094 = vmatpush1.msra.mxu0 0.0
    %1095 = vmatprep.subr.mxu0 0.0
    %1096 = vmatpush1.msra.mxu0 0.0
    %1097 = vmatprep.subr.mxu0 0.0
    %1098 = vmatpush1.msra.mxu0 0.0
    %1099 = vmatprep.subr.mxu0 0.0
    %1100 = vmatpush1.msra.mxu0 0.0
    %1101 = vmatprep.mubr.f32.mxu0 0.0
    %1102 = vmatmul.mubr.f32.gmra.mrb[0].mxu0 %v1026
    %v1103 = vpop.f32.mrb[0].mxu0
    %v1104 = vadd.f32 0.0, %v1103
    %v1105 = vpop.f32.mrb[0].mxu0
    %v1106 = vadd.f32 0.0, %v1105
    %1107 = vdwg.mxu0
    %1108 = vmatprep.subr.mxu0 %v430
    %1109 = vmatpush1.msra.mxu0 %v429
    %1110 = vmatprep.subr.mxu0 %v434
    %1111 = vmatpush1.msra.mxu0 %v433
    %1112 = vmatprep.subr.mxu0 %v438
    %1113 = vmatpush1.msra.mxu0 %v437
    %1114 = vmatprep.subr.mxu0 %v442
    %1115 = vmatpush1.msra.mxu0 %v441
    %1116 = vmatprep.subr.mxu0 %v446
    %1117 = vmatpush1.msra.mxu0 %v445
    %1118 = vmatprep.subr.mxu0 %v450
    %1119 = vmatpush1.msra.mxu0 %v449
    %1120 = vmatprep.subr.mxu0 %v454
    %1121 = vmatpush1.msra.mxu0 %v453
    %1122 = vmatprep.subr.mxu0 %v458
    %1123 = vmatpush1.msra.mxu0 %v457
    %1124 = vmatprep.subr.mxu0 %v462
    %1125 = vmatpush1.msra.mxu0 %v461
    %1126 = vmatprep.subr.mxu0 %v466
    %1127 = vmatpush1.msra.mxu0 %v465
    %1128 = vmatprep.subr.mxu0 %v470
    %1129 = vmatpush1.msra.mxu0 %v469
    %1130 = vmatprep.subr.mxu0 %v474
    %1131 = vmatpush1.msra.mxu0 %v473
    %1132 = vmatprep.subr.mxu0 %v478
    %1133 = vmatpush1.msra.mxu0 %v477
    %1134 = vmatprep.subr.mxu0 %v482
    %1135 = vmatpush1.msra.mxu0 %v481
    %1136 = vmatprep.subr.mxu0 %v486
    %1137 = vmatpush1.msra.mxu0 %v485
    %1138 = vmatprep.subr.mxu0 %v490
    %1139 = vmatpush1.msra.mxu0 %v489
    %1140 = vmatprep.subr.mxu0 0.0
    %1141 = vmatpush1.msra.mxu0 0.0
    %1142 = vmatprep.subr.mxu0 0.0
    %1143 = vmatpush1.msra.mxu0 0.0
    %1144 = vmatprep.subr.mxu0 0.0
    %1145 = vmatpush1.msra.mxu0 0.0
    %1146 = vmatprep.subr.mxu0 0.0
    %1147 = vmatpush1.msra.mxu0 0.0
    %1148 = vmatprep.subr.mxu0 0.0
    %1149 = vmatpush1.msra.mxu0 0.0
    %1150 = vmatprep.subr.mxu0 0.0
    %1151 = vmatpush1.msra.mxu0 0.0
    %1152 = vmatprep.subr.mxu0 0.0
    %1153 = vmatpush1.msra.mxu0 0.0
    %1154 = vmatprep.subr.mxu0 0.0
    %1155 = vmatpush1.msra.mxu0 0.0
    %1156 = vmatprep.subr.mxu0 0.0
    %1157 = vmatpush1.msra.mxu0 0.0
    %1158 = vmatprep.subr.mxu0 0.0
    %1159 = vmatpush1.msra.mxu0 0.0
    %1160 = vmatprep.subr.mxu0 0.0
    %1161 = vmatpush1.msra.mxu0 0.0
    %1162 = vmatprep.subr.mxu0 0.0
    %1163 = vmatpush1.msra.mxu0 0.0
    %1164 = vmatprep.subr.mxu0 0.0
    %1165 = vmatpush1.msra.mxu0 0.0
    %1166 = vmatprep.subr.mxu0 0.0
    %1167 = vmatpush1.msra.mxu0 0.0
    %1168 = vmatprep.subr.mxu0 0.0
    %1169 = vmatpush1.msra.mxu0 0.0
    %1170 = vmatprep.subr.mxu0 0.0
    %1171 = vmatpush1.msra.mxu0 0.0
    %1172 = vmatprep.mubr.f32.mxu0 0.0
    %1173 = vmatmul.mubr.f32.gmra.mrb[0].mxu0 %v1026
    %v1174 = vpop.f32.mrb[0].mxu0
    %v1175 = vadd.f32 0.0, %v1174
    %v1176 = vpop.f32.mrb[0].mxu0
    %v1177 = vadd.f32 0.0, %v1176
    %1178 = vdwg.mxu0
    %v1179 = vadd.f32 %v1033, %v1104
    %v1180 = vadd.f32 %v1034, %v1106
    %v1181 = vadd.f32 %v1035, %v1175
    %v1182 = vadd.f32 %v1036, %v1177
    %v1183 = vxor.u32 %v1179, 2147483648
    %v1184 = vmul.f32 %v1183, 1.442695
    %v1185 = vpow.pop %v1184
    %v1186 = vadd.f32 %v1185, 1.0
    %v1187 = vrcp.pop %v1186
    %v1188 = vmul.f32 1.0, %v1187
    %v1189 = vxor.u32 %v1180, 2147483648
    %v1190 = vmul.f32 %v1189, 1.442695
    %v1191 = vpow.pop %v1190
    %v1192 = vadd.f32 %v1191, 1.0
    %v1193 = vrcp.pop %v1192
    %v1194 = vmul.f32 1.0, %v1193
    %v1195 = vtanh.pop %v1181
    %v1196 = vxor.u32 %v1182, 2147483648
    %v1197 = vmul.f32 %v1196, 1.442695
    %v1198 = vpow.pop %v1197
    %v1199 = vadd.f32 %v1198, 1.0
    %v1200 = vrcp.pop %v1199
    %v1201 = vmul.f32 1.0, %v1200
    %v1202 = vmul.f32 %v1194, %v1024
    %v1203 = vmul.f32 %v1188, %v1195
    %v1204 = vadd.f32 %v1202, %v1203
    %v1205 = vtanh.pop %v1204
    %v1206 = vmul.f32 %v1201, %v1205
    %v1207 = vmax.f32 %v1206, 0.0
    %s1208 = scalar_lea.vmem [#allocation2], 24
    %1209 = vst [vmem:[%s1208] sm:$0xff] %v1207
    %s1210 = smul.u32 4, 4
    %s1211 = smul.addr %s1210, 8
    %s1212 = scalar_lea.vmem [#allocation3], %s1211
    %v1213 = vld [vmem:[%s1212] sm:$0xff]
    %v1214 = vld [vmem:[%s1212 + $0x8] sm:$0xff]
    %v1215 = vld [vmem:[%s1212 + $0x10] sm:$0xff]
    %v1216 = vld [vmem:[%s1212 + $0x18] sm:$0xff]
    %1217 = vmatprep.subr.mxu0 %v428
    %1218 = vmatpush1.msra.mxu0 %v427
    %1219 = vmatprep.subr.mxu0 %v432
    %1220 = vmatpush1.msra.mxu0 %v431
    %1221 = vmatprep.subr.mxu0 %v436
    %1222 = vmatpush1.msra.mxu0 %v435
    %1223 = vmatprep.subr.mxu0 %v440
    %1224 = vmatpush1.msra.mxu0 %v439
    %1225 = vmatprep.subr.mxu0 %v444
    %1226 = vmatpush1.msra.mxu0 %v443
    %1227 = vmatprep.subr.mxu0 %v448
    %1228 = vmatpush1.msra.mxu0 %v447
    %1229 = vmatprep.subr.mxu0 %v452
    %1230 = vmatpush1.msra.mxu0 %v451
    %1231 = vmatprep.subr.mxu0 %v456
    %1232 = vmatpush1.msra.mxu0 %v455
    %1233 = vmatprep.subr.mxu0 %v460
    %1234 = vmatpush1.msra.mxu0 %v459
    %1235 = vmatprep.subr.mxu0 %v464
    %1236 = vmatpush1.msra.mxu0 %v463
    %1237 = vmatprep.subr.mxu0 %v468
    %1238 = vmatpush1.msra.mxu0 %v467
    %1239 = vmatprep.subr.mxu0 %v472
    %1240 = vmatpush1.msra.mxu0 %v471
    %1241 = vmatprep.subr.mxu0 %v476
    %1242 = vmatpush1.msra.mxu0 %v475
    %1243 = vmatprep.subr.mxu0 %v480
    %1244 = vmatpush1.msra.mxu0 %v479
    %1245 = vmatprep.subr.mxu0 %v484
    %1246 = vmatpush1.msra.mxu0 %v483
    %1247 = vmatprep.subr.mxu0 %v488
    %1248 = vmatpush1.msra.mxu0 %v487
    %1249 = vmatprep.subr.mxu0 0.0
    %1250 = vmatpush1.msra.mxu0 0.0
    %1251 = vmatprep.subr.mxu0 0.0
    %1252 = vmatpush1.msra.mxu0 0.0
    %1253 = vmatprep.subr.mxu0 0.0
    %1254 = vmatpush1.msra.mxu0 0.0
    %1255 = vmatprep.subr.mxu0 0.0
    %1256 = vmatpush1.msra.mxu0 0.0
    %1257 = vmatprep.subr.mxu0 0.0
    %1258 = vmatpush1.msra.mxu0 0.0
    %1259 = vmatprep.subr.mxu0 0.0
    %1260 = vmatpush1.msra.mxu0 0.0
    %1261 = vmatprep.subr.mxu0 0.0
    %1262 = vmatpush1.msra.mxu0 0.0
    %1263 = vmatprep.subr.mxu0 0.0
    %1264 = vmatpush1.msra.mxu0 0.0
    %1265 = vmatprep.subr.mxu0 0.0
    %1266 = vmatpush1.msra.mxu0 0.0
    %1267 = vmatprep.subr.mxu0 0.0
    %1268 = vmatpush1.msra.mxu0 0.0
    %1269 = vmatprep.subr.mxu0 0.0
    %1270 = vmatpush1.msra.mxu0 0.0
    %1271 = vmatprep.subr.mxu0 0.0
    %1272 = vmatpush1.msra.mxu0 0.0
    %1273 = vmatprep.subr.mxu0 0.0
    %1274 = vmatpush1.msra.mxu0 0.0
    %1275 = vmatprep.subr.mxu0 0.0
    %1276 = vmatpush1.msra.mxu0 0.0
    %1277 = vmatprep.subr.mxu0 0.0
    %1278 = vmatpush1.msra.mxu0 0.0
    %1279 = vmatprep.subr.mxu0 0.0
    %1280 = vmatpush1.msra.mxu0 0.0
    %1281 = vmatprep.mubr.f32.mxu0 0.0
    %1282 = vmatmul.mubr.f32.gmra.mrb[0].mxu0 %v1206
    %v1283 = vpop.f32.mrb[0].mxu0
    %v1284 = vadd.f32 0.0, %v1283
    %v1285 = vpop.f32.mrb[0].mxu0
    %v1286 = vadd.f32 0.0, %v1285
    %1287 = vdwg.mxu0
    %1288 = vmatprep.subr.mxu0 %v430
    %1289 = vmatpush1.msra.mxu0 %v429
    %1290 = vmatprep.subr.mxu0 %v434
    %1291 = vmatpush1.msra.mxu0 %v433
    %1292 = vmatprep.subr.mxu0 %v438
    %1293 = vmatpush1.msra.mxu0 %v437
    %1294 = vmatprep.subr.mxu0 %v442
    %1295 = vmatpush1.msra.mxu0 %v441
    %1296 = vmatprep.subr.mxu0 %v446
    %1297 = vmatpush1.msra.mxu0 %v445
    %1298 = vmatprep.subr.mxu0 %v450
    %1299 = vmatpush1.msra.mxu0 %v449
    %1300 = vmatprep.subr.mxu0 %v454
    %1301 = vmatpush1.msra.mxu0 %v453
    %1302 = vmatprep.subr.mxu0 %v458
    %1303 = vmatpush1.msra.mxu0 %v457
    %1304 = vmatprep.subr.mxu0 %v462
    %1305 = vmatpush1.msra.mxu0 %v461
    %1306 = vmatprep.subr.mxu0 %v466
    %1307 = vmatpush1.msra.mxu0 %v465
    %1308 = vmatprep.subr.mxu0 %v470
    %1309 = vmatpush1.msra.mxu0 %v469
    %1310 = vmatprep.subr.mxu0 %v474
    %1311 = vmatpush1.msra.mxu0 %v473
    %1312 = vmatprep.subr.mxu0 %v478
    %1313 = vmatpush1.msra.mxu0 %v477
    %1314 = vmatprep.subr.mxu0 %v482
    %1315 = vmatpush1.msra.mxu0 %v481
    %1316 = vmatprep.subr.mxu0 %v486
    %1317 = vmatpush1.msra.mxu0 %v485
    %1318 = vmatprep.subr.mxu0 %v490
    %1319 = vmatpush1.msra.mxu0 %v489
    %1320 = vmatprep.subr.mxu0 0.0
    %1321 = vmatpush1.msra.mxu0 0.0
    %1322 = vmatprep.subr.mxu0 0.0
    %1323 = vmatpush1.msra.mxu0 0.0
    %1324 = vmatprep.subr.mxu0 0.0
    %1325 = vmatpush1.msra.mxu0 0.0
    %1326 = vmatprep.subr.mxu0 0.0
    %1327 = vmatpush1.msra.mxu0 0.0
    %1328 = vmatprep.subr.mxu0 0.0
    %1329 = vmatpush1.msra.mxu0 0.0
    %1330 = vmatprep.subr.mxu0 0.0
    %1331 = vmatpush1.msra.mxu0 0.0
    %1332 = vmatprep.subr.mxu0 0.0
    %1333 = vmatpush1.msra.mxu0 0.0
    %1334 = vmatprep.subr.mxu0 0.0
    %1335 = vmatpush1.msra.mxu0 0.0
    %1336 = vmatprep.subr.mxu0 0.0
    %1337 = vmatpush1.msra.mxu0 0.0
    %1338 = vmatprep.subr.mxu0 0.0
    %1339 = vmatpush1.msra.mxu0 0.0
    %1340 = vmatprep.subr.mxu0 0.0
    %1341 = vmatpush1.msra.mxu0 0.0
    %1342 = vmatprep.subr.mxu0 0.0
    %1343 = vmatpush1.msra.mxu0 0.0
    %1344 = vmatprep.subr.mxu0 0.0
    %1345 = vmatpush1.msra.mxu0 0.0
    %1346 = vmatprep.subr.mxu0 0.0
    %1347 = vmatpush1.msra.mxu0 0.0
    %1348 = vmatprep.subr.mxu0 0.0
    %1349 = vmatpush1.msra.mxu0 0.0
    %1350 = vmatprep.subr.mxu0 0.0
    %1351 = vmatpush1.msra.mxu0 0.0
    %1352 = vmatprep.mubr.f32.mxu0 0.0
    %1353 = vmatmul.mubr.f32.gmra.mrb[0].mxu0 %v1206
    %v1354 = vpop.f32.mrb[0].mxu0
    %v1355 = vadd.f32 0.0, %v1354
    %v1356 = vpop.f32.mrb[0].mxu0
    %v1357 = vadd.f32 0.0, %v1356
    %1358 = vdwg.mxu0
    %v1359 = vadd.f32 %v1213, %v1284
    %v1360 = vadd.f32 %v1214, %v1286
    %v1361 = vadd.f32 %v1215, %v1355
    %v1362 = vadd.f32 %v1216, %v1357
    %v1363 = vxor.u32 %v1359, 2147483648
    %v1364 = vmul.f32 %v1363, 1.442695
    %v1365 = vpow.pop %v1364
    %v1366 = vadd.f32 %v1365, 1.0
    %v1367 = vrcp.pop %v1366
    %v1368 = vmul.f32 1.0, %v1367
    %v1369 = vxor.u32 %v1360, 2147483648
    %v1370 = vmul.f32 %v1369, 1.442695
    %v1371 = vpow.pop %v1370
    %v1372 = vadd.f32 %v1371, 1.0
    %v1373 = vrcp.pop %v1372
    %v1374 = vmul.f32 1.0, %v1373
    %v1375 = vtanh.pop %v1361
    %v1376 = vxor.u32 %v1362, 2147483648
    %v1377 = vmul.f32 %v1376, 1.442695
    %v1378 = vpow.pop %v1377
    %v1379 = vadd.f32 %v1378, 1.0
    %v1380 = vrcp.pop %v1379
    %v1381 = vmul.f32 1.0, %v1380
    %v1382 = vmul.f32 %v1374, %v1204
    %v1383 = vmul.f32 %v1368, %v1375
    %v1384 = vadd.f32 %v1382, %v1383
    %v1385 = vtanh.pop %v1384
    %v1386 = vmul.f32 %v1381, %v1385
    %v1387 = vmax.f32 %v1386, 0.0
    %s1388 = scalar_lea.vmem [#allocation2], 32
    %1389 = vst [vmem:[%s1388] sm:$0xff] %v1387
    %s1390 = smul.u32 5, 4
    %s1391 = smul.addr %s1390, 8
    %s1392 = scalar_lea.vmem [#allocation3], %s1391
    %v1393 = vld [vmem:[%s1392] sm:$0xff]
    %v1394 = vld [vmem:[%s1392 + $0x8] sm:$0xff]
    %v1395 = vld [vmem:[%s1392 + $0x10] sm:$0xff]
    %v1396 = vld [vmem:[%s1392 + $0x18] sm:$0xff]
    %1397 = vmatprep.subr.mxu0 %v428
    %1398 = vmatpush1.msra.mxu0 %v427
    %1399 = vmatprep.subr.mxu0 %v432
    %1400 = vmatpush1.msra.mxu0 %v431
    %1401 = vmatprep.subr.mxu0 %v436
    %1402 = vmatpush1.msra.mxu0 %v435
    %1403 = vmatprep.subr.mxu0 %v440
    %1404 = vmatpush1.msra.mxu0 %v439
    %1405 = vmatprep.subr.mxu0 %v444
    %1406 = vmatpush1.msra.mxu0 %v443
    %1407 = vmatprep.subr.mxu0 %v448
    %1408 = vmatpush1.msra.mxu0 %v447
    %1409 = vmatprep.subr.mxu0 %v452
    %1410 = vmatpush1.msra.mxu0 %v451
    %1411 = vmatprep.subr.mxu0 %v456
    %1412 = vmatpush1.msra.mxu0 %v455
    %1413 = vmatprep.subr.mxu0 %v460
    %1414 = vmatpush1.msra.mxu0 %v459
    %1415 = vmatprep.subr.mxu0 %v464
    %1416 = vmatpush1.msra.mxu0 %v463
    %1417 = vmatprep.subr.mxu0 %v468
    %1418 = vmatpush1.msra.mxu0 %v467
    %1419 = vmatprep.subr.mxu0 %v472
    %1420 = vmatpush1.msra.mxu0 %v471
    %1421 = vmatprep.subr.mxu0 %v476
    %1422 = vmatpush1.msra.mxu0 %v475
    %1423 = vmatprep.subr.mxu0 %v480
    %1424 = vmatpush1.msra.mxu0 %v479
    %1425 = vmatprep.subr.mxu0 %v484
    %1426 = vmatpush1.msra.mxu0 %v483
    %1427 = vmatprep.subr.mxu0 %v488
    %1428 = vmatpush1.msra.mxu0 %v487
    %1429 = vmatprep.subr.mxu0 0.0
    %1430 = vmatpush1.msra.mxu0 0.0
    %1431 = vmatprep.subr.mxu0 0.0
    %1432 = vmatpush1.msra.mxu0 0.0
    %1433 = vmatprep.subr.mxu0 0.0
    %1434 = vmatpush1.msra.mxu0 0.0
    %1435 = vmatprep.subr.mxu0 0.0
    %1436 = vmatpush1.msra.mxu0 0.0
    %1437 = vmatprep.subr.mxu0 0.0
    %1438 = vmatpush1.msra.mxu0 0.0
    %1439 = vmatprep.subr.mxu0 0.0
    %1440 = vmatpush1.msra.mxu0 0.0
    %1441 = vmatprep.subr.mxu0 0.0
    %1442 = vmatpush1.msra.mxu0 0.0
    %1443 = vmatprep.subr.mxu0 0.0
    %1444 = vmatpush1.msra.mxu0 0.0
    %1445 = vmatprep.subr.mxu0 0.0
    %1446 = vmatpush1.msra.mxu0 0.0
    %1447 = vmatprep.subr.mxu0 0.0
    %1448 = vmatpush1.msra.mxu0 0.0
    %1449 = vmatprep.subr.mxu0 0.0
    %1450 = vmatpush1.msra.mxu0 0.0
    %1451 = vmatprep.subr.mxu0 0.0
    %1452 = vmatpush1.msra.mxu0 0.0
    %1453 = vmatprep.subr.mxu0 0.0
    %1454 = vmatpush1.msra.mxu0 0.0
    %1455 = vmatprep.subr.mxu0 0.0
    %1456 = vmatpush1.msra.mxu0 0.0
    %1457 = vmatprep.subr.mxu0 0.0
    %1458 = vmatpush1.msra.mxu0 0.0
    %1459 = vmatprep.subr.mxu0 0.0
    %1460 = vmatpush1.msra.mxu0 0.0
    %1461 = vmatprep.mubr.f32.mxu0 0.0
    %1462 = vmatmul.mubr.f32.gmra.mrb[0].mxu0 %v1386
    %v1463 = vpop.f32.mrb[0].mxu0
    %v1464 = vadd.f32 0.0, %v1463
    %v1465 = vpop.f32.mrb[0].mxu0
    %v1466 = vadd.f32 0.0, %v1465
    %1467 = vdwg.mxu0
    %1468 = vmatprep.subr.mxu0 %v430
    %1469 = vmatpush1.msra.mxu0 %v429
    %1470 = vmatprep.subr.mxu0 %v434
    %1471 = vmatpush1.msra.mxu0 %v433
    %1472 = vmatprep.subr.mxu0 %v438
    %1473 = vmatpush1.msra.mxu0 %v437
    %1474 = vmatprep.subr.mxu0 %v442
    %1475 = vmatpush1.msra.mxu0 %v441
    %1476 = vmatprep.subr.mxu0 %v446
    %1477 = vmatpush1.msra.mxu0 %v445
    %1478 = vmatprep.subr.mxu0 %v450
    %1479 = vmatpush1.msra.mxu0 %v449
    %1480 = vmatprep.subr.mxu0 %v454
    %1481 = vmatpush1.msra.mxu0 %v453
    %1482 = vmatprep.subr.mxu0 %v458
    %1483 = vmatpush1.msra.mxu0 %v457
    %1484 = vmatprep.subr.mxu0 %v462
    %1485 = vmatpush1.msra.mxu0 %v461
    %1486 = vmatprep.subr.mxu0 %v466
    %1487 = vmatpush1.msra.mxu0 %v465
    %1488 = vmatprep.subr.mxu0 %v470
    %1489 = vmatpush1.msra.mxu0 %v469
    %1490 = vmatprep.subr.mxu0 %v474
    %1491 = vmatpush1.msra.mxu0 %v473
    %1492 = vmatprep.subr.mxu0 %v478
    %1493 = vmatpush1.msra.mxu0 %v477
    %1494 = vmatprep.subr.mxu0 %v482
    %1495 = vmatpush1.msra.mxu0 %v481
    %1496 = vmatprep.subr.mxu0 %v486
    %1497 = vmatpush1.msra.mxu0 %v485
    %1498 = vmatprep.subr.mxu0 %v490
    %1499 = vmatpush1.msra.mxu0 %v489
    %1500 = vmatprep.subr.mxu0 0.0
    %1501 = vmatpush1.msra.mxu0 0.0
    %1502 = vmatprep.subr.mxu0 0.0
    %1503 = vmatpush1.msra.mxu0 0.0
    %1504 = vmatprep.subr.mxu0 0.0
    %1505 = vmatpush1.msra.mxu0 0.0
    %1506 = vmatprep.subr.mxu0 0.0
    %1507 = vmatpush1.msra.mxu0 0.0
    %1508 = vmatprep.subr.mxu0 0.0
    %1509 = vmatpush1.msra.mxu0 0.0
    %1510 = vmatprep.subr.mxu0 0.0
    %1511 = vmatpush1.msra.mxu0 0.0
    %1512 = vmatprep.subr.mxu0 0.0
    %1513 = vmatpush1.msra.mxu0 0.0
    %1514 = vmatprep.subr.mxu0 0.0
    %1515 = vmatpush1.msra.mxu0 0.0
    %1516 = vmatprep.subr.mxu0 0.0
    %1517 = vmatpush1.msra.mxu0 0.0
    %1518 = vmatprep.subr.mxu0 0.0
    %1519 = vmatpush1.msra.mxu0 0.0
    %1520 = vmatprep.subr.mxu0 0.0
    %1521 = vmatpush1.msra.mxu0 0.0
    %1522 = vmatprep.subr.mxu0 0.0
    %1523 = vmatpush1.msra.mxu0 0.0
    %1524 = vmatprep.subr.mxu0 0.0
    %1525 = vmatpush1.msra.mxu0 0.0
    %1526 = vmatprep.subr.mxu0 0.0
    %1527 = vmatpush1.msra.mxu0 0.0
    %1528 = vmatprep.subr.mxu0 0.0
    %1529 = vmatpush1.msra.mxu0 0.0
    %1530 = vmatprep.subr.mxu0 0.0
    %1531 = vmatpush1.msra.mxu0 0.0
    %1532 = vmatprep.mubr.f32.mxu0 0.0
    %1533 = vmatmul.mubr.f32.gmra.mrb[0].mxu0 %v1386
    %v1534 = vpop.f32.mrb[0].mxu0
    %v1535 = vadd.f32 0.0, %v1534
    %v1536 = vpop.f32.mrb[0].mxu0
    %v1537 = vadd.f32 0.0, %v1536
    %1538 = vdwg.mxu0
    %v1539 = vadd.f32 %v1393, %v1464
    %v1540 = vadd.f32 %v1394, %v1466
    %v1541 = vadd.f32 %v1395, %v1535
    %v1542 = vadd.f32 %v1396, %v1537
    %v1543 = vxor.u32 %v1539, 2147483648
    %v1544 = vmul.f32 %v1543, 1.442695
    %v1545 = vpow.pop %v1544
    %v1546 = vadd.f32 %v1545, 1.0
    %v1547 = vrcp.pop %v1546
    %v1548 = vmul.f32 1.0, %v1547
    %v1549 = vxor.u32 %v1540, 2147483648
    %v1550 = vmul.f32 %v1549, 1.442695
    %v1551 = vpow.pop %v1550
    %v1552 = vadd.f32 %v1551, 1.0
    %v1553 = vrcp.pop %v1552
    %v1554 = vmul.f32 1.0, %v1553
    %v1555 = vtanh.pop %v1541
    %v1556 = vxor.u32 %v1542, 2147483648
    %v1557 = vmul.f32 %v1556, 1.442695
    %v1558 = vpow.pop %v1557
    %v1559 = vadd.f32 %v1558, 1.0
    %v1560 = vrcp.pop %v1559
    %v1561 = vmul.f32 1.0, %v1560
    %v1562 = vmul.f32 %v1554, %v1384
    %v1563 = vmul.f32 %v1548, %v1555
    %v1564 = vadd.f32 %v1562, %v1563
    %v1565 = vtanh.pop %v1564
    %v1566 = vmul.f32 %v1561, %v1565
    %v1567 = vmax.f32 %v1566, 0.0
    %s1568 = scalar_lea.vmem [#allocation2], 40
    %1569 = vst [vmem:[%s1568] sm:$0xff] %v1567
    %s1570 = smul.u32 6, 4
    %s1571 = smul.addr %s1570, 8
    %s1572 = scalar_lea.vmem [#allocation3], %s1571
    %v1573 = vld [vmem:[%s1572] sm:$0xff]
    %v1574 = vld [vmem:[%s1572 + $0x8] sm:$0xff]
    %v1575 = vld [vmem:[%s1572 + $0x10] sm:$0xff]
    %v1576 = vld [vmem:[%s1572 + $0x18] sm:$0xff]
    %1577 = vmatprep.subr.mxu0 %v428
    %1578 = vmatpush1.msra.mxu0 %v427
    %1579 = vmatprep.subr.mxu0 %v432
    %1580 = vmatpush1.msra.mxu0 %v431
    %1581 = vmatprep.subr.mxu0 %v436
    %1582 = vmatpush1.msra.mxu0 %v435
    %1583 = vmatprep.subr.mxu0 %v440
    %1584 = vmatpush1.msra.mxu0 %v439
    %1585 = vmatprep.subr.mxu0 %v444
    %1586 = vmatpush1.msra.mxu0 %v443
    %1587 = vmatprep.subr.mxu0 %v448
    %1588 = vmatpush1.msra.mxu0 %v447
    %1589 = vmatprep.subr.mxu0 %v452
    %1590 = vmatpush1.msra.mxu0 %v451
    %1591 = vmatprep.subr.mxu0 %v456
    %1592 = vmatpush1.msra.mxu0 %v455
    %1593 = vmatprep.subr.mxu0 %v460
    %1594 = vmatpush1.msra.mxu0 %v459
    %1595 = vmatprep.subr.mxu0 %v464
    %1596 = vmatpush1.msra.mxu0 %v463
    %1597 = vmatprep.subr.mxu0 %v468
    %1598 = vmatpush1.msra.mxu0 %v467
    %1599 = vmatprep.subr.mxu0 %v472
    %1600 = vmatpush1.msra.mxu0 %v471
    %1601 = vmatprep.subr.mxu0 %v476
    %1602 = vmatpush1.msra.mxu0 %v475
    %1603 = vmatprep.subr.mxu0 %v480
    %1604 = vmatpush1.msra.mxu0 %v479
    %1605 = vmatprep.subr.mxu0 %v484
    %1606 = vmatpush1.msra.mxu0 %v483
    %1607 = vmatprep.subr.mxu0 %v488
    %1608 = vmatpush1.msra.mxu0 %v487
    %1609 = vmatprep.subr.mxu0 0.0
    %1610 = vmatpush1.msra.mxu0 0.0
    %1611 = vmatprep.subr.mxu0 0.0
    %1612 = vmatpush1.msra.mxu0 0.0
    %1613 = vmatprep.subr.mxu0 0.0
    %1614 = vmatpush1.msra.mxu0 0.0
    %1615 = vmatprep.subr.mxu0 0.0
    %1616 = vmatpush1.msra.mxu0 0.0
    %1617 = vmatprep.subr.mxu0 0.0
    %1618 = vmatpush1.msra.mxu0 0.0
    %1619 = vmatprep.subr.mxu0 0.0
    %1620 = vmatpush1.msra.mxu0 0.0
    %1621 = vmatprep.subr.mxu0 0.0
    %1622 = vmatpush1.msra.mxu0 0.0
    %1623 = vmatprep.subr.mxu0 0.0
    %1624 = vmatpush1.msra.mxu0 0.0
    %1625 = vmatprep.subr.mxu0 0.0
    %1626 = vmatpush1.msra.mxu0 0.0
    %1627 = vmatprep.subr.mxu0 0.0
    %1628 = vmatpush1.msra.mxu0 0.0
    %1629 = vmatprep.subr.mxu0 0.0
    %1630 = vmatpush1.msra.mxu0 0.0
    %1631 = vmatprep.subr.mxu0 0.0
    %1632 = vmatpush1.msra.mxu0 0.0
    %1633 = vmatprep.subr.mxu0 0.0
    %1634 = vmatpush1.msra.mxu0 0.0
    %1635 = vmatprep.subr.mxu0 0.0
    %1636 = vmatpush1.msra.mxu0 0.0
    %1637 = vmatprep.subr.mxu0 0.0
    %1638 = vmatpush1.msra.mxu0 0.0
    %1639 = vmatprep.subr.mxu0 0.0
    %1640 = vmatpush1.msra.mxu0 0.0
    %1641 = vmatprep.mubr.f32.mxu0 0.0
    %1642 = vmatmul.mubr.f32.gmra.mrb[0].mxu0 %v1566
    %v1643 = vpop.f32.mrb[0].mxu0
    %v1644 = vadd.f32 0.0, %v1643
    %v1645 = vpop.f32.mrb[0].mxu0
    %v1646 = vadd.f32 0.0, %v1645
    %1647 = vdwg.mxu0
    %1648 = vmatprep.subr.mxu0 %v430
    %1649 = vmatpush1.msra.mxu0 %v429
    %1650 = vmatprep.subr.mxu0 %v434
    %1651 = vmatpush1.msra.mxu0 %v433
    %1652 = vmatprep.subr.mxu0 %v438
    %1653 = vmatpush1.msra.mxu0 %v437
    %1654 = vmatprep.subr.mxu0 %v442
    %1655 = vmatpush1.msra.mxu0 %v441
    %1656 = vmatprep.subr.mxu0 %v446
    %1657 = vmatpush1.msra.mxu0 %v445
    %1658 = vmatprep.subr.mxu0 %v450
    %1659 = vmatpush1.msra.mxu0 %v449
    %1660 = vmatprep.subr.mxu0 %v454
    %1661 = vmatpush1.msra.mxu0 %v453
    %1662 = vmatprep.subr.mxu0 %v458
    %1663 = vmatpush1.msra.mxu0 %v457
    %1664 = vmatprep.subr.mxu0 %v462
    %1665 = vmatpush1.msra.mxu0 %v461
    %1666 = vmatprep.subr.mxu0 %v466
    %1667 = vmatpush1.msra.mxu0 %v465
    %1668 = vmatprep.subr.mxu0 %v470
    %1669 = vmatpush1.msra.mxu0 %v469
    %1670 = vmatprep.subr.mxu0 %v474
    %1671 = vmatpush1.msra.mxu0 %v473
    %1672 = vmatprep.subr.mxu0 %v478
    %1673 = vmatpush1.msra.mxu0 %v477
    %1674 = vmatprep.subr.mxu0 %v482
    %1675 = vmatpush1.msra.mxu0 %v481
    %1676 = vmatprep.subr.mxu0 %v486
    %1677 = vmatpush1.msra.mxu0 %v485
    %1678 = vmatprep.subr.mxu0 %v490
    %1679 = vmatpush1.msra.mxu0 %v489
    %1680 = vmatprep.subr.mxu0 0.0
    %1681 = vmatpush1.msra.mxu0 0.0
    %1682 = vmatprep.subr.mxu0 0.0
    %1683 = vmatpush1.msra.mxu0 0.0
    %1684 = vmatprep.subr.mxu0 0.0
    %1685 = vmatpush1.msra.mxu0 0.0
    %1686 = vmatprep.subr.mxu0 0.0
    %1687 = vmatpush1.msra.mxu0 0.0
    %1688 = vmatprep.subr.mxu0 0.0
    %1689 = vmatpush1.msra.mxu0 0.0
    %1690 = vmatprep.subr.mxu0 0.0
    %1691 = vmatpush1.msra.mxu0 0.0
    %1692 = vmatprep.subr.mxu0 0.0
    %1693 = vmatpush1.msra.mxu0 0.0
    %1694 = vmatprep.subr.mxu0 0.0
    %1695 = vmatpush1.msra.mxu0 0.0
    %1696 = vmatprep.subr.mxu0 0.0
    %1697 = vmatpush1.msra.mxu0 0.0
    %1698 = vmatprep.subr.mxu0 0.0
    %1699 = vmatpush1.msra.mxu0 0.0
    %1700 = vmatprep.subr.mxu0 0.0
    %1701 = vmatpush1.msra.mxu0 0.0
    %1702 = vmatprep.subr.mxu0 0.0
    %1703 = vmatpush1.msra.mxu0 0.0
    %1704 = vmatprep.subr.mxu0 0.0
    %1705 = vmatpush1.msra.mxu0 0.0
    %1706 = vmatprep.subr.mxu0 0.0
    %1707 = vmatpush1.msra.mxu0 0.0
    %1708 = vmatprep.subr.mxu0 0.0
    %1709 = vmatpush1.msra.mxu0 0.0
    %1710 = vmatprep.subr.mxu0 0.0
    %1711 = vmatpush1.msra.mxu0 0.0
    %1712 = vmatprep.mubr.f32.mxu0 0.0
    %1713 = vmatmul.mubr.f32.gmra.mrb[0].mxu0 %v1566
    %v1714 = vpop.f32.mrb[0].mxu0
    %v1715 = vadd.f32 0.0, %v1714
    %v1716 = vpop.f32.mrb[0].mxu0
    %v1717 = vadd.f32 0.0, %v1716
    %1718 = vdwg.mxu0
    %v1719 = vadd.f32 %v1573, %v1644
    %v1720 = vadd.f32 %v1574, %v1646
    %v1721 = vadd.f32 %v1575, %v1715
    %v1722 = vadd.f32 %v1576, %v1717
    %v1723 = vxor.u32 %v1719, 2147483648
    %v1724 = vmul.f32 %v1723, 1.442695
    %v1725 = vpow.pop %v1724
    %v1726 = vadd.f32 %v1725, 1.0
    %v1727 = vrcp.pop %v1726
    %v1728 = vmul.f32 1.0, %v1727
    %v1729 = vxor.u32 %v1720, 2147483648
    %v1730 = vmul.f32 %v1729, 1.442695
    %v1731 = vpow.pop %v1730
    %v1732 = vadd.f32 %v1731, 1.0
    %v1733 = vrcp.pop %v1732
    %v1734 = vmul.f32 1.0, %v1733
    %v1735 = vtanh.pop %v1721
    %v1736 = vxor.u32 %v1722, 2147483648
    %v1737 = vmul.f32 %v1736, 1.442695
    %v1738 = vpow.pop %v1737
    %v1739 = vadd.f32 %v1738, 1.0
    %v1740 = vrcp.pop %v1739
    %v1741 = vmul.f32 1.0, %v1740
    %v1742 = vmul.f32 %v1734, %v1564
    %v1743 = vmul.f32 %v1728, %v1735
    %v1744 = vadd.f32 %v1742, %v1743
    %v1745 = vtanh.pop %v1744
    %v1746 = vmul.f32 %v1741, %v1745
    %v1747 = vmax.f32 %v1746, 0.0
    %s1748 = scalar_lea.vmem [#allocation2], 48
    %1749 = vst [vmem:[%s1748] sm:$0xff] %v1747
    %s1750 = smul.u32 7, 4
    %s1751 = smul.addr %s1750, 8
    %s1752 = scalar_lea.vmem [#allocation3], %s1751
    %v1753 = vld [vmem:[%s1752] sm:$0xff]
    %v1754 = vld [vmem:[%s1752 + $0x8] sm:$0xff]
    %v1755 = vld [vmem:[%s1752 + $0x10] sm:$0xff]
    %v1756 = vld [vmem:[%s1752 + $0x18] sm:$0xff]
    %1757 = vmatprep.subr.mxu0 %v428
    %1758 = vmatpush1.msra.mxu0 %v427
    %1759 = vmatprep.subr.mxu0 %v432
    %1760 = vmatpush1.msra.mxu0 %v431
    %1761 = vmatprep.subr.mxu0 %v436
    %1762 = vmatpush1.msra.mxu0 %v435
    %1763 = vmatprep.subr.mxu0 %v440
    %1764 = vmatpush1.msra.mxu0 %v439
    %1765 = vmatprep.subr.mxu0 %v444
    %1766 = vmatpush1.msra.mxu0 %v443
    %1767 = vmatprep.subr.mxu0 %v448
    %1768 = vmatpush1.msra.mxu0 %v447
    %1769 = vmatprep.subr.mxu0 %v452
    %1770 = vmatpush1.msra.mxu0 %v451
    %1771 = vmatprep.subr.mxu0 %v456
    %1772 = vmatpush1.msra.mxu0 %v455
    %1773 = vmatprep.subr.mxu0 %v460
    %1774 = vmatpush1.msra.mxu0 %v459
    %1775 = vmatprep.subr.mxu0 %v464
    %1776 = vmatpush1.msra.mxu0 %v463
    %1777 = vmatprep.subr.mxu0 %v468
    %1778 = vmatpush1.msra.mxu0 %v467
    %1779 = vmatprep.subr.mxu0 %v472
    %1780 = vmatpush1.msra.mxu0 %v471
    %1781 = vmatprep.subr.mxu0 %v476
    %1782 = vmatpush1.msra.mxu0 %v475
    %1783 = vmatprep.subr.mxu0 %v480
    %1784 = vmatpush1.msra.mxu0 %v479
    %1785 = vmatprep.subr.mxu0 %v484
    %1786 = vmatpush1.msra.mxu0 %v483
    %1787 = vmatprep.subr.mxu0 %v488
    %1788 = vmatpush1.msra.mxu0 %v487
    %1789 = vmatprep.subr.mxu0 0.0
    %1790 = vmatpush1.msra.mxu0 0.0
    %1791 = vmatprep.subr.mxu0 0.0
    %1792 = vmatpush1.msra.mxu0 0.0
    %1793 = vmatprep.subr.mxu0 0.0
    %1794 = vmatpush1.msra.mxu0 0.0
    %1795 = vmatprep.subr.mxu0 0.0
    %1796 = vmatpush1.msra.mxu0 0.0
    %1797 = vmatprep.subr.mxu0 0.0
    %1798 = vmatpush1.msra.mxu0 0.0
    %1799 = vmatprep.subr.mxu0 0.0
    %1800 = vmatpush1.msra.mxu0 0.0
    %1801 = vmatprep.subr.mxu0 0.0
    %1802 = vmatpush1.msra.mxu0 0.0
    %1803 = vmatprep.subr.mxu0 0.0
    %1804 = vmatpush1.msra.mxu0 0.0
    %1805 = vmatprep.subr.mxu0 0.0
    %1806 = vmatpush1.msra.mxu0 0.0
    %1807 = vmatprep.subr.mxu0 0.0
    %1808 = vmatpush1.msra.mxu0 0.0
    %1809 = vmatprep.subr.mxu0 0.0
    %1810 = vmatpush1.msra.mxu0 0.0
    %1811 = vmatprep.subr.mxu0 0.0
    %1812 = vmatpush1.msra.mxu0 0.0
    %1813 = vmatprep.subr.mxu0 0.0
    %1814 = vmatpush1.msra.mxu0 0.0
    %1815 = vmatprep.subr.mxu0 0.0
    %1816 = vmatpush1.msra.mxu0 0.0
    %1817 = vmatprep.subr.mxu0 0.0
    %1818 = vmatpush1.msra.mxu0 0.0
    %1819 = vmatprep.subr.mxu0 0.0
    %1820 = vmatpush1.msra.mxu0 0.0
    %1821 = vmatprep.mubr.f32.mxu0 0.0
    %1822 = vmatmul.mubr.f32.gmra.mrb[0].mxu0 %v1746
    %v1823 = vpop.f32.mrb[0].mxu0
    %v1824 = vadd.f32 0.0, %v1823
    %v1825 = vpop.f32.mrb[0].mxu0
    %v1826 = vadd.f32 0.0, %v1825
    %1827 = vdwg.mxu0
    %1828 = vmatprep.subr.mxu0 %v430
    %1829 = vmatpush1.msra.mxu0 %v429
    %1830 = vmatprep.subr.mxu0 %v434
    %1831 = vmatpush1.msra.mxu0 %v433
    %1832 = vmatprep.subr.mxu0 %v438
    %1833 = vmatpush1.msra.mxu0 %v437
    %1834 = vmatprep.subr.mxu0 %v442
    %1835 = vmatpush1.msra.mxu0 %v441
    %1836 = vmatprep.subr.mxu0 %v446
    %1837 = vmatpush1.msra.mxu0 %v445
    %1838 = vmatprep.subr.mxu0 %v450
    %1839 = vmatpush1.msra.mxu0 %v449
    %1840 = vmatprep.subr.mxu0 %v454
    %1841 = vmatpush1.msra.mxu0 %v453
    %1842 = vmatprep.subr.mxu0 %v458
    %1843 = vmatpush1.msra.mxu0 %v457
    %1844 = vmatprep.subr.mxu0 %v462
    %1845 = vmatpush1.msra.mxu0 %v461
    %1846 = vmatprep.subr.mxu0 %v466
    %1847 = vmatpush1.msra.mxu0 %v465
    %1848 = vmatprep.subr.mxu0 %v470
    %1849 = vmatpush1.msra.mxu0 %v469
    %1850 = vmatprep.subr.mxu0 %v474
    %1851 = vmatpush1.msra.mxu0 %v473
    %1852 = vmatprep.subr.mxu0 %v478
    %1853 = vmatpush1.msra.mxu0 %v477
    %1854 = vmatprep.subr.mxu0 %v482
    %1855 = vmatpush1.msra.mxu0 %v481
    %1856 = vmatprep.subr.mxu0 %v486
    %1857 = vmatpush1.msra.mxu0 %v485
    %1858 = vmatprep.subr.mxu0 %v490
    %1859 = vmatpush1.msra.mxu0 %v489
    %1860 = vmatprep.subr.mxu0 0.0
    %1861 = vmatpush1.msra.mxu0 0.0
    %1862 = vmatprep.subr.mxu0 0.0
    %1863 = vmatpush1.msra.mxu0 0.0
    %1864 = vmatprep.subr.mxu0 0.0
    %1865 = vmatpush1.msra.mxu0 0.0
    %1866 = vmatprep.subr.mxu0 0.0
    %1867 = vmatpush1.msra.mxu0 0.0
    %1868 = vmatprep.subr.mxu0 0.0
    %1869 = vmatpush1.msra.mxu0 0.0
    %1870 = vmatprep.subr.mxu0 0.0
    %1871 = vmatpush1.msra.mxu0 0.0
    %1872 = vmatprep.subr.mxu0 0.0
    %1873 = vmatpush1.msra.mxu0 0.0
    %1874 = vmatprep.subr.mxu0 0.0
    %1875 = vmatpush1.msra.mxu0 0.0
    %1876 = vmatprep.subr.mxu0 0.0
    %1877 = vmatpush1.msra.mxu0 0.0
    %1878 = vmatprep.subr.mxu0 0.0
    %1879 = vmatpush1.msra.mxu0 0.0
    %1880 = vmatprep.subr.mxu0 0.0
    %1881 = vmatpush1.msra.mxu0 0.0
    %1882 = vmatprep.subr.mxu0 0.0
    %1883 = vmatpush1.msra.mxu0 0.0
    %1884 = vmatprep.subr.mxu0 0.0
    %1885 = vmatpush1.msra.mxu0 0.0
    %1886 = vmatprep.subr.mxu0 0.0
    %1887 = vmatpush1.msra.mxu0 0.0
    %1888 = vmatprep.subr.mxu0 0.0
    %1889 = vmatpush1.msra.mxu0 0.0
    %1890 = vmatprep.subr.mxu0 0.0
    %1891 = vmatpush1.msra.mxu0 0.0
    %1892 = vmatprep.mubr.f32.mxu0 0.0
    %1893 = vmatmul.mubr.f32.gmra.mrb[0].mxu0 %v1746
    %v1894 = vpop.f32.mrb[0].mxu0
    %v1895 = vadd.f32 0.0, %v1894
    %v1896 = vpop.f32.mrb[0].mxu0
    %v1897 = vadd.f32 0.0, %v1896
    %1898 = vdwg.mxu0
    %v1899 = vadd.f32 %v1753, %v1824
    %v1900 = vadd.f32 %v1754, %v1826
    %v1901 = vadd.f32 %v1755, %v1895
    %v1902 = vadd.f32 %v1756, %v1897
    %v1903 = vxor.u32 %v1899, 2147483648
    %v1904 = vmul.f32 %v1903, 1.442695
    %v1905 = vpow.pop %v1904
    %v1906 = vadd.f32 %v1905, 1.0
    %v1907 = vrcp.pop %v1906
    %v1908 = vmul.f32 1.0, %v1907
    %v1909 = vxor.u32 %v1900, 2147483648
    %v1910 = vmul.f32 %v1909, 1.442695
    %v1911 = vpow.pop %v1910
    %v1912 = vadd.f32 %v1911, 1.0
    %v1913 = vrcp.pop %v1912
    %v1914 = vmul.f32 1.0, %v1913
    %v1915 = vtanh.pop %v1901
    %v1916 = vxor.u32 %v1902, 2147483648
    %v1917 = vmul.f32 %v1916, 1.442695
    %v1918 = vpow.pop %v1917
    %v1919 = vadd.f32 %v1918, 1.0
    %v1920 = vrcp.pop %v1919
    %v1921 = vmul.f32 1.0, %v1920
    %v1922 = vmul.f32 %v1914, %v1744
    %v1923 = vmul.f32 %v1908, %v1915
    %v1924 = vadd.f32 %v1922, %v1923
    %v1925 = vtanh.pop %v1924
    %v1926 = vmul.f32 %v1921, %v1925
    %v1927 = vmax.f32 %v1926, 0.0
    %s1928 = scalar_lea.vmem [#allocation2], 56
    %1929 = vst [vmem:[%s1928] sm:$0xff] %v1927
    %v1930 = vld [vmem:[#allocation2] sm:$0xff]
    %v1931 = vld [vmem:[#allocation2 + $0x8] sm:$0xff]
    %v1932 = vld [vmem:[#allocation2 + $0x10] sm:$0xff]
    %v1933 = vld [vmem:[#allocation2 + $0x18] sm:$0xff]
    %v1934 = vld [vmem:[#allocation2 + $0x20] sm:$0xff]
    %v1935 = vld [vmem:[#allocation2 + $0x28] sm:$0xff]
    %v1936 = vld [vmem:[#allocation2 + $0x30] sm:$0xff]
    %v1937 = vld [vmem:[#allocation2 + $0x38] sm:$0xff]
    %v1938 = vld [vmem:[#allocation7] sm:$0xff]
    %v1939 = vld [vmem:[#allocation7 + $0x8] sm:$0xff]
    %v1940 = vld [vmem:[#allocation7 + $0x10] sm:$0xff]
    %v1941 = vld [vmem:[#allocation7 + $0x18] sm:$0xff]
    %v1942 = vld [vmem:[#allocation7 + $0x20] sm:$0xff]
    %v1943 = vld [vmem:[#allocation7 + $0x28] sm:$0xff]
    %v1944 = vld [vmem:[#allocation7 + $0x30] sm:$0xff]
    %v1945 = vld [vmem:[#allocation7 + $0x38] sm:$0xff]
    %v1946 = vld [vmem:[#allocation7 + $0x40] sm:$0xff]
    %v1947 = vld [vmem:[#allocation7 + $0x48] sm:$0xff]
    %v1948 = vld [vmem:[#allocation7 + $0x50] sm:$0xff]
    %v1949 = vld [vmem:[#allocation7 + $0x58] sm:$0xff]
    %v1950 = vld [vmem:[#allocation7 + $0x60] sm:$0xff]
    %v1951 = vld [vmem:[#allocation7 + $0x68] sm:$0xff]
    %v1952 = vld [vmem:[#allocation7 + $0x70] sm:$0xff]
    %v1953 = vld [vmem:[#allocation7 + $0x78] sm:$0xff]
    %v1954 = vld [vmem:[#allocation7 + $0x80] sm:$0xff]
    %v1955 = vld [vmem:[#allocation7 + $0x88] sm:$0xff]
    %v1956 = vld [vmem:[#allocation7 + $0x90] sm:$0xff]
    %v1957 = vld [vmem:[#allocation7 + $0x98] sm:$0xff]
    %v1958 = vld [vmem:[#allocation7 + $0xa0] sm:$0xff]
    %v1959 = vld [vmem:[#allocation7 + $0xa8] sm:$0xff]
    %v1960 = vld [vmem:[#allocation7 + $0xb0] sm:$0xff]
    %v1961 = vld [vmem:[#allocation7 + $0xb8] sm:$0xff]
    %v1962 = vld [vmem:[#allocation7 + $0xc0] sm:$0xff]
    %v1963 = vld [vmem:[#allocation7 + $0xc8] sm:$0xff]
    %v1964 = vld [vmem:[#allocation7 + $0xd0] sm:$0xff]
    %v1965 = vld [vmem:[#allocation7 + $0xd8] sm:$0xff]
    %v1966 = vld [vmem:[#allocation7 + $0xe0] sm:$0xff]
    %v1967 = vld [vmem:[#allocation7 + $0xe8] sm:$0xff]
    %v1968 = vld [vmem:[#allocation7 + $0xf0] sm:$0xff]
    %v1969 = vld [vmem:[#allocation7 + $0xf8] sm:$0xff]
    %v1970 = vld [vmem:[#allocation7 + $0x100] sm:$0xff]
    %v1971 = vld [vmem:[#allocation7 + $0x108] sm:$0xff]
    %v1972 = vld [vmem:[#allocation7 + $0x110] sm:$0xff]
    %v1973 = vld [vmem:[#allocation7 + $0x118] sm:$0xff]
    %v1974 = vld [vmem:[#allocation7 + $0x120] sm:$0xff]
    %v1975 = vld [vmem:[#allocation7 + $0x128] sm:$0xff]
    %v1976 = vld [vmem:[#allocation7 + $0x130] sm:$0xff]
    %v1977 = vld [vmem:[#allocation7 + $0x138] sm:$0xff]
    %v1978 = vld [vmem:[#allocation7 + $0x140] sm:$0xff]
    %v1979 = vld [vmem:[#allocation7 + $0x148] sm:$0xff]
    %v1980 = vld [vmem:[#allocation7 + $0x150] sm:$0xff]
    %v1981 = vld [vmem:[#allocation7 + $0x158] sm:$0xff]
    %v1982 = vld [vmem:[#allocation7 + $0x160] sm:$0xff]
    %v1983 = vld [vmem:[#allocation7 + $0x168] sm:$0xff]
    %v1984 = vld [vmem:[#allocation7 + $0x170] sm:$0xff]
    %v1985 = vld [vmem:[#allocation7 + $0x178] sm:$0xff]
    %v1986 = vld [vmem:[%s6] sm:$0x7]
    %v1988 = vlaneseq
    %v1989 = vshrl.u32 %v1988, 7
    %v1990 = vsub.s32 0, %v1989
    %v1991 = vrot.slane %v1986, %v1990
    %v1992 = vlaneseq
    %v1993 = vshrl.u32 %v1992, 7
    %v1994 = vsub.s32 1, %v1993
    %v1995 = vrot.slane %v1986, %v1994
    %v1996 = vlaneseq
    %v1997 = vshrl.u32 %v1996, 7
    %v1998 = vsub.s32 2, %v1997
    %v1999 = vrot.slane %v1986, %v1998
    %2003 = vmatprep.subr.mxu0 %v1939
    %2004 = vmatpush1.msra.mxu0 %v1938
    %2005 = vmatprep.subr.mxu0 %v1942
    %2006 = vmatpush1.msra.mxu0 %v1941
    %2007 = vmatprep.subr.mxu0 %v1945
    %2008 = vmatpush1.msra.mxu0 %v1944
    %2009 = vmatprep.subr.mxu0 %v1948
    %2010 = vmatpush1.msra.mxu0 %v1947
    %2011 = vmatprep.subr.mxu0 %v1951
    %2012 = vmatpush1.msra.mxu0 %v1950
    %2013 = vmatprep.subr.mxu0 %v1954
    %2014 = vmatpush1.msra.mxu0 %v1953
    %2015 = vmatprep.subr.mxu0 %v1957
    %2016 = vmatpush1.msra.mxu0 %v1956
    %2017 = vmatprep.subr.mxu0 %v1960
    %2018 = vmatpush1.msra.mxu0 %v1959
    %2019 = vmatprep.subr.mxu0 %v1963
    %2020 = vmatpush1.msra.mxu0 %v1962
    %2021 = vmatprep.subr.mxu0 %v1966
    %2022 = vmatpush1.msra.mxu0 %v1965
    %2023 = vmatprep.subr.mxu0 %v1969
    %2024 = vmatpush1.msra.mxu0 %v1968
    %2025 = vmatprep.subr.mxu0 %v1972
    %2026 = vmatpush1.msra.mxu0 %v1971
    %2027 = vmatprep.subr.mxu0 %v1975
    %2028 = vmatpush1.msra.mxu0 %v1974
    %2029 = vmatprep.subr.mxu0 %v1978
    %2030 = vmatpush1.msra.mxu0 %v1977
    %2031 = vmatprep.subr.mxu0 %v1981
    %2032 = vmatpush1.msra.mxu0 %v1980
    %2033 = vmatprep.subr.mxu0 %v1984
    %2034 = vmatpush1.msra.mxu0 %v1983
    %2035 = vmatprep.subr.mxu0 0.0
    %2036 = vmatpush1.msra.mxu0 0.0
    %2037 = vmatprep.subr.mxu0 0.0
    %2038 = vmatpush1.msra.mxu0 0.0
    %2039 = vmatprep.subr.mxu0 0.0
    %2040 = vmatpush1.msra.mxu0 0.0
    %2041 = vmatprep.subr.mxu0 0.0
    %2042 = vmatpush1.msra.mxu0 0.0
    %2043 = vmatprep.subr.mxu0 0.0
    %2044 = vmatpush1.msra.mxu0 0.0
    %2045 = vmatprep.subr.mxu0 0.0
    %2046 = vmatpush1.msra.mxu0 0.0
    %2047 = vmatprep.subr.mxu0 0.0
    %2048 = vmatpush1.msra.mxu0 0.0
    %2049 = vmatprep.subr.mxu0 0.0
    %2050 = vmatpush1.msra.mxu0 0.0
    %2051 = vmatprep.subr.mxu0 0.0
    %2052 = vmatpush1.msra.mxu0 0.0
    %2053 = vmatprep.subr.mxu0 0.0
    %2054 = vmatpush1.msra.mxu0 0.0
    %2055 = vmatprep.subr.mxu0 0.0
    %2056 = vmatpush1.msra.mxu0 0.0
    %2057 = vmatprep.subr.mxu0 0.0
    %2058 = vmatpush1.msra.mxu0 0.0
    %2059 = vmatprep.subr.mxu0 0.0
    %2060 = vmatpush1.msra.mxu0 0.0
    %2061 = vmatprep.subr.mxu0 0.0
    %2062 = vmatpush1.msra.mxu0 0.0
    %2063 = vmatprep.subr.mxu0 0.0
    %2064 = vmatpush1.msra.mxu0 0.0
    %2065 = vmatprep.subr.mxu0 0.0
    %2066 = vmatpush1.msra.mxu0 0.0
    %2067 = vmatprep.mubr.f32.mxu0 0.0
    %2068 = vmatmul.mubr.f32.gmra.mrb[0].mxu0 %v1930
    %v2069 = vpop.f32.mrb[0].mxu0
    %v2070 = vadd.f32 %v1991, %v2069
    %v2071 = vpop.f32.mrb[0].mxu0
    %v2072 = vadd.f32 %v1995, %v2071
    %2073 = vmatprep.mubr.f32.mxu0 0.0
    %2074 = vmatmul.mubr.f32.gmra.mrb[0].mxu0 %v1931
    %v2075 = vpop.f32.mrb[0].mxu0
    %v2076 = vadd.f32 %v1991, %v2075
    %v2077 = vpop.f32.mrb[0].mxu0
    %v2078 = vadd.f32 %v1995, %v2077
    %2079 = vmatprep.mubr.f32.mxu0 0.0
    %2080 = vmatmul.mubr.f32.gmra.mrb[0].mxu0 %v1932
    %v2081 = vpop.f32.mrb[0].mxu0
    %v2082 = vadd.f32 %v1991, %v2081
    %v2083 = vpop.f32.mrb[0].mxu0
    %v2084 = vadd.f32 %v1995, %v2083
    %2085 = vmatprep.mubr.f32.mxu0 0.0
    %2086 = vmatmul.mubr.f32.gmra.mrb[0].mxu0 %v1933
    %v2087 = vpop.f32.mrb[0].mxu0
    %v2088 = vadd.f32 %v1991, %v2087
    %v2089 = vpop.f32.mrb[0].mxu0
    %v2090 = vadd.f32 %v1995, %v2089
    %2091 = vmatprep.mubr.f32.mxu0 0.0
    %2092 = vmatmul.mubr.f32.gmra.mrb[0].mxu0 %v1934
    %v2093 = vpop.f32.mrb[0].mxu0
    %v2094 = vadd.f32 %v1991, %v2093
    %v2095 = vpop.f32.mrb[0].mxu0
    %v2096 = vadd.f32 %v1995, %v2095
    %2097 = vmatprep.mubr.f32.mxu0 0.0
    %2098 = vmatmul.mubr.f32.gmra.mrb[0].mxu0 %v1935
    %v2099 = vpop.f32.mrb[0].mxu0
    %v2100 = vadd.f32 %v1991, %v2099
    %v2101 = vpop.f32.mrb[0].mxu0
    %v2102 = vadd.f32 %v1995, %v2101
    %2103 = vmatprep.mubr.f32.mxu0 0.0
    %2104 = vmatmul.mubr.f32.gmra.mrb[0].mxu0 %v1936
    %v2105 = vpop.f32.mrb[0].mxu0
    %v2106 = vadd.f32 %v1991, %v2105
    %v2107 = vpop.f32.mrb[0].mxu0
    %v2108 = vadd.f32 %v1995, %v2107
    %2109 = vmatprep.mubr.f32.mxu0 0.0
    %2110 = vmatmul.mubr.f32.gmra.mrb[0].mxu0 %v1937
    %v2111 = vpop.f32.mrb[0].mxu0
    %v2112 = vadd.f32 %v1991, %v2111
    %v2113 = vpop.f32.mrb[0].mxu0
    %v2114 = vadd.f32 %v1995, %v2113
    %2115 = vdwg.mxu0
    %2116 = vmatprep.subr.mxu0 0.0
    %2117 = vmatpush1.msra.mxu0 %v1940
    %2118 = vmatprep.subr.mxu0 0.0
    %2119 = vmatpush1.msra.mxu0 %v1943
    %2120 = vmatprep.subr.mxu0 0.0
    %2121 = vmatpush1.msra.mxu0 %v1946
    %2122 = vmatprep.subr.mxu0 0.0
    %2123 = vmatpush1.msra.mxu0 %v1949
    %2124 = vmatprep.subr.mxu0 0.0
    %2125 = vmatpush1.msra.mxu0 %v1952
    %2126 = vmatprep.subr.mxu0 0.0
    %2127 = vmatpush1.msra.mxu0 %v1955
    %2128 = vmatprep.subr.mxu0 0.0
    %2129 = vmatpush1.msra.mxu0 %v1958
    %2130 = vmatprep.subr.mxu0 0.0
    %2131 = vmatpush1.msra.mxu0 %v1961
    %2132 = vmatprep.subr.mxu0 0.0
    %2133 = vmatpush1.msra.mxu0 %v1964
    %2134 = vmatprep.subr.mxu0 0.0
    %2135 = vmatpush1.msra.mxu0 %v1967
    %2136 = vmatprep.subr.mxu0 0.0
    %2137 = vmatpush1.msra.mxu0 %v1970
    %2138 = vmatprep.subr.mxu0 0.0
    %2139 = vmatpush1.msra.mxu0 %v1973
    %2140 = vmatprep.subr.mxu0 0.0
    %2141 = vmatpush1.msra.mxu0 %v1976
    %2142 = vmatprep.subr.mxu0 0.0
    %2143 = vmatpush1.msra.mxu0 %v1979
    %2144 = vmatprep.subr.mxu0 0.0
    %2145 = vmatpush1.msra.mxu0 %v1982
    %2146 = vmatprep.subr.mxu0 0.0
    %2147 = vmatpush1.msra.mxu0 %v1985
    %2148 = vmatprep.subr.mxu0 0.0
    %2149 = vmatpush1.msra.mxu0 0.0
    %2150 = vmatprep.subr.mxu0 0.0
    %2151 = vmatpush1.msra.mxu0 0.0
    %2152 = vmatprep.subr.mxu0 0.0
    %2153 = vmatpush1.msra.mxu0 0.0
    %2154 = vmatprep.subr.mxu0 0.0
    %2155 = vmatpush1.msra.mxu0 0.0
    %2156 = vmatprep.subr.mxu0 0.0
    %2157 = vmatpush1.msra.mxu0 0.0
    %2158 = vmatprep.subr.mxu0 0.0
    %2159 = vmatpush1.msra.mxu0 0.0
    %2160 = vmatprep.subr.mxu0 0.0
    %2161 = vmatpush1.msra.mxu0 0.0
    %2162 = vmatprep.subr.mxu0 0.0
    %2163 = vmatpush1.msra.mxu0 0.0
    %2164 = vmatprep.subr.mxu0 0.0
    %2165 = vmatpush1.msra.mxu0 0.0
    %2166 = vmatprep.subr.mxu0 0.0
    %2167 = vmatpush1.msra.mxu0 0.0
    %2168 = vmatprep.subr.mxu0 0.0
    %2169 = vmatpush1.msra.mxu0 0.0
    %2170 = vmatprep.subr.mxu0 0.0
    %2171 = vmatpush1.msra.mxu0 0.0
    %2172 = vmatprep.subr.mxu0 0.0
    %2173 = vmatpush1.msra.mxu0 0.0
    %2174 = vmatprep.subr.mxu0 0.0
    %2175 = vmatpush1.msra.mxu0 0.0
    %2176 = vmatprep.subr.mxu0 0.0
    %2177 = vmatpush1.msra.mxu0 0.0
    %2178 = vmatprep.subr.mxu0 0.0
    %2179 = vmatpush1.msra.mxu0 0.0
    %2180 = vmatprep.mubr.f32.mxu0 0.0
    %2181 = vmatmul.mubr.f32.gmra.mrb[0].mxu0 %v1930
    %v2182 = vpop.f32.mrb[0].mxu0
    %v2183 = vadd.f32 %v1999, %v2182
    %v2184 = vpop.f32.mrb[0].mxu0
    %2185 = vmatprep.mubr.f32.mxu0 0.0
    %2186 = vmatmul.mubr.f32.gmra.mrb[0].mxu0 %v1931
    %v2187 = vpop.f32.mrb[0].mxu0
    %v2188 = vadd.f32 %v1999, %v2187
    %v2189 = vpop.f32.mrb[0].mxu0
    %2190 = vmatprep.mubr.f32.mxu0 0.0
    %2191 = vmatmul.mubr.f32.gmra.mrb[0].mxu0 %v1932
    %v2192 = vpop.f32.mrb[0].mxu0
    %v2193 = vadd.f32 %v1999, %v2192
    %v2194 = vpop.f32.mrb[0].mxu0
    %2195 = vmatprep.mubr.f32.mxu0 0.0
    %2196 = vmatmul.mubr.f32.gmra.mrb[0].mxu0 %v1933
    %v2197 = vpop.f32.mrb[0].mxu0
    %v2198 = vadd.f32 %v1999, %v2197
    %v2199 = vpop.f32.mrb[0].mxu0
    %2200 = vmatprep.mubr.f32.mxu0 0.0
    %2201 = vmatmul.mubr.f32.gmra.mrb[0].mxu0 %v1934
    %v2202 = vpop.f32.mrb[0].mxu0
    %v2203 = vadd.f32 %v1999, %v2202
    %v2204 = vpop.f32.mrb[0].mxu0
    %2205 = vmatprep.mubr.f32.mxu0 0.0
    %2206 = vmatmul.mubr.f32.gmra.mrb[0].mxu0 %v1935
    %v2207 = vpop.f32.mrb[0].mxu0
    %v2208 = vadd.f32 %v1999, %v2207
    %v2209 = vpop.f32.mrb[0].mxu0
    %2210 = vmatprep.mubr.f32.mxu0 0.0
    %2211 = vmatmul.mubr.f32.gmra.mrb[0].mxu0 %v1936
    %v2212 = vpop.f32.mrb[0].mxu0
    %v2213 = vadd.f32 %v1999, %v2212
    %v2214 = vpop.f32.mrb[0].mxu0
    %2215 = vmatprep.mubr.f32.mxu0 0.0
    %2216 = vmatmul.mubr.f32.gmra.mrb[0].mxu0 %v1937
    %v2217 = vpop.f32.mrb[0].mxu0
    %v2218 = vadd.f32 %v1999, %v2217
    %v2219 = vpop.f32.mrb[0].mxu0
    %2220 = vdwg.mxu0
    %2221 = vst [vmem:[#allocation3] sm:$0xff] %v2070
    %2222 = vst [vmem:[#allocation3 + $0x8] sm:$0xff] %v2072
    %2223 = vst [vmem:[#allocation3 + $0x10] sm:$0xff] %v2183
    %2224 = vst [vmem:[#allocation3 + $0x20] sm:$0xff] %v2076
    %2225 = vst [vmem:[#allocation3 + $0x28] sm:$0xff] %v2078
    %2226 = vst [vmem:[#allocation3 + $0x30] sm:$0xff] %v2188
    %2227 = vst [vmem:[#allocation3 + $0x40] sm:$0xff] %v2082
    %2228 = vst [vmem:[#allocation3 + $0x48] sm:$0xff] %v2084
    %2229 = vst [vmem:[#allocation3 + $0x50] sm:$0xff] %v2193
    %2230 = vst [vmem:[#allocation3 + $0x60] sm:$0xff] %v2088
    %2231 = vst [vmem:[#allocation3 + $0x68] sm:$0xff] %v2090
    %2232 = vst [vmem:[#allocation3 + $0x70] sm:$0xff] %v2198
    %2233 = vst [vmem:[#allocation3 + $0x80] sm:$0xff] %v2094
    %2234 = vst [vmem:[#allocation3 + $0x88] sm:$0xff] %v2096
    %2235 = vst [vmem:[#allocation3 + $0x90] sm:$0xff] %v2203
    %2236 = vst [vmem:[#allocation3 + $0xa0] sm:$0xff] %v2100
    %2237 = vst [vmem:[#allocation3 + $0xa8] sm:$0xff] %v2102
    %2238 = vst [vmem:[#allocation3 + $0xb0] sm:$0xff] %v2208
    %2239 = vst [vmem:[#allocation3 + $0xc0] sm:$0xff] %v2106
    %2240 = vst [vmem:[#allocation3 + $0xc8] sm:$0xff] %v2108
    %2241 = vst [vmem:[#allocation3 + $0xd0] sm:$0xff] %v2213
    %2242 = vst [vmem:[#allocation3 + $0xe0] sm:$0xff] %v2112
    %2243 = vst [vmem:[#allocation3 + $0xe8] sm:$0xff] %v2114
    %2244 = vst [vmem:[#allocation3 + $0xf0] sm:$0xff] %v2218
    %v2245 = vld [vmem:[#allocation9] sm:$0xff]
    %v2246 = vld [vmem:[#allocation9 + $0x8] sm:$0xff]
    %v2247 = vld [vmem:[#allocation9 + $0x10] sm:$0xff]
    %v2248 = vld [vmem:[#allocation9 + $0x18] sm:$0xff]
    %v2249 = vld [vmem:[#allocation9 + $0x20] sm:$0xff]
    %v2250 = vld [vmem:[#allocation9 + $0x28] sm:$0xff]
    %v2251 = vld [vmem:[#allocation9 + $0x30] sm:$0xff]
    %v2252 = vld [vmem:[#allocation9 + $0x38] sm:$0xff]
    %v2253 = vld [vmem:[#allocation9 + $0x40] sm:$0xff]
    %v2254 = vld [vmem:[#allocation9 + $0x48] sm:$0xff]
    %v2255 = vld [vmem:[#allocation9 + $0x50] sm:$0xff]
    %v2256 = vld [vmem:[#allocation9 + $0x58] sm:$0xff]
    %v2257 = vld [vmem:[#allocation9 + $0x60] sm:$0xff]
    %v2258 = vld [vmem:[#allocation9 + $0x68] sm:$0xff]
    %v2259 = vld [vmem:[#allocation9 + $0x70] sm:$0xff]
    %v2260 = vld [vmem:[#allocation9 + $0x78] sm:$0xff]
    %v2261 = vld [vmem:[#allocation9 + $0x80] sm:$0xff]
    %v2262 = vld [vmem:[#allocation9 + $0x88] sm:$0xff]
    %v2263 = vld [vmem:[#allocation9 + $0x90] sm:$0xff]
    %v2264 = vld [vmem:[#allocation9 + $0x98] sm:$0xff]
    %v2265 = vld [vmem:[#allocation9 + $0xa0] sm:$0xff]
    %v2266 = vld [vmem:[#allocation9 + $0xa8] sm:$0xff]
    %v2267 = vld [vmem:[#allocation9 + $0xb0] sm:$0xff]
    %v2268 = vld [vmem:[#allocation9 + $0xb8] sm:$0xff]
    %v2269 = vld [vmem:[#allocation9 + $0xc0] sm:$0xff]
    %v2270 = vld [vmem:[#allocation9 + $0xc8] sm:$0xff]
    %v2271 = vld [vmem:[#allocation9 + $0xd0] sm:$0xff]
    %v2272 = vld [vmem:[#allocation9 + $0xd8] sm:$0xff]
    %v2273 = vld [vmem:[#allocation9 + $0xe0] sm:$0xff]
    %v2274 = vld [vmem:[#allocation9 + $0xe8] sm:$0xff]
    %v2275 = vld [vmem:[#allocation9 + $0xf0] sm:$0xff]
    %v2276 = vld [vmem:[#allocation9 + $0xf8] sm:$0xff]
    %v2277 = vld [vmem:[#allocation9 + $0x100] sm:$0xff]
    %v2278 = vld [vmem:[#allocation9 + $0x108] sm:$0xff]
    %v2279 = vld [vmem:[#allocation9 + $0x110] sm:$0xff]
    %v2280 = vld [vmem:[#allocation9 + $0x118] sm:$0xff]
    %v2281 = vld [vmem:[#allocation9 + $0x120] sm:$0xff]
    %v2282 = vld [vmem:[#allocation9 + $0x128] sm:$0xff]
    %v2283 = vld [vmem:[#allocation9 + $0x130] sm:$0xff]
    %v2284 = vld [vmem:[#allocation9 + $0x138] sm:$0xff]
    %v2285 = vld [vmem:[#allocation9 + $0x140] sm:$0xff]
    %v2286 = vld [vmem:[#allocation9 + $0x148] sm:$0xff]
    %v2287 = vld [vmem:[#allocation9 + $0x150] sm:$0xff]
    %v2288 = vld [vmem:[#allocation9 + $0x158] sm:$0xff]
    %v2289 = vld [vmem:[#allocation9 + $0x160] sm:$0xff]
    %v2290 = vld [vmem:[#allocation9 + $0x168] sm:$0xff]
    %v2291 = vld [vmem:[#allocation9 + $0x170] sm:$0xff]
    %v2292 = vld [vmem:[#allocation9 + $0x178] sm:$0xff]
    %v2293 = vld [vmem:[%s7] sm:$0x1]
    %v2295 = vlaneseq
    %v2296 = vshrl.u32 %v2295, 7
    %v2297 = vsub.s32 0, %v2296
    %v2298 = vrot.slane %v2293, %v2297
    %v2300 = vld [vmem:[%s493] sm:$0xff]
    %v2301 = vld [vmem:[%s493 + $0x8] sm:$0xff]
    %v2302 = vld [vmem:[%s493 + $0x10] sm:$0xff]
    %2303 = vmatprep.subr.mxu0 %v2246
    %2304 = vmatpush1.msra.mxu0 %v2245
    %2305 = vmatprep.subr.mxu0 %v2249
    %2306 = vmatpush1.msra.mxu0 %v2248
    %2307 = vmatprep.subr.mxu0 %v2252
    %2308 = vmatpush1.msra.mxu0 %v2251
    %2309 = vmatprep.subr.mxu0 %v2255
    %2310 = vmatpush1.msra.mxu0 %v2254
    %2311 = vmatprep.subr.mxu0 %v2258
    %2312 = vmatpush1.msra.mxu0 %v2257
    %2313 = vmatprep.subr.mxu0 %v2261
    %2314 = vmatpush1.msra.mxu0 %v2260
    %2315 = vmatprep.subr.mxu0 %v2264
    %2316 = vmatpush1.msra.mxu0 %v2263
    %2317 = vmatprep.subr.mxu0 %v2267
    %2318 = vmatpush1.msra.mxu0 %v2266
    %2319 = vmatprep.subr.mxu0 %v2270
    %2320 = vmatpush1.msra.mxu0 %v2269
    %2321 = vmatprep.subr.mxu0 %v2273
    %2322 = vmatpush1.msra.mxu0 %v2272
    %2323 = vmatprep.subr.mxu0 %v2276
    %2324 = vmatpush1.msra.mxu0 %v2275
    %2325 = vmatprep.subr.mxu0 %v2279
    %2326 = vmatpush1.msra.mxu0 %v2278
    %2327 = vmatprep.subr.mxu0 %v2282
    %2328 = vmatpush1.msra.mxu0 %v2281
    %2329 = vmatprep.subr.mxu0 %v2285
    %2330 = vmatpush1.msra.mxu0 %v2284
    %2331 = vmatprep.subr.mxu0 %v2288
    %2332 = vmatpush1.msra.mxu0 %v2287
    %2333 = vmatprep.subr.mxu0 %v2291
    %2334 = vmatpush1.msra.mxu0 %v2290
    %2335 = vmatprep.subr.mxu0 0.0
    %2336 = vmatpush1.msra.mxu0 0.0
    %2337 = vmatprep.subr.mxu0 0.0
    %2338 = vmatpush1.msra.mxu0 0.0
    %2339 = vmatprep.subr.mxu0 0.0
    %2340 = vmatpush1.msra.mxu0 0.0
    %2341 = vmatprep.subr.mxu0 0.0
    %2342 = vmatpush1.msra.mxu0 0.0
    %2343 = vmatprep.subr.mxu0 0.0
    %2344 = vmatpush1.msra.mxu0 0.0
    %2345 = vmatprep.subr.mxu0 0.0
    %2346 = vmatpush1.msra.mxu0 0.0
    %2347 = vmatprep.subr.mxu0 0.0
    %2348 = vmatpush1.msra.mxu0 0.0
    %2349 = vmatprep.subr.mxu0 0.0
    %2350 = vmatpush1.msra.mxu0 0.0
    %2351 = vmatprep.subr.mxu0 0.0
    %2352 = vmatpush1.msra.mxu0 0.0
    %2353 = vmatprep.subr.mxu0 0.0
    %2354 = vmatpush1.msra.mxu0 0.0
    %2355 = vmatprep.subr.mxu0 0.0
    %2356 = vmatpush1.msra.mxu0 0.0
    %2357 = vmatprep.subr.mxu0 0.0
    %2358 = vmatpush1.msra.mxu0 0.0
    %2359 = vmatprep.subr.mxu0 0.0
    %2360 = vmatpush1.msra.mxu0 0.0
    %2361 = vmatprep.subr.mxu0 0.0
    %2362 = vmatpush1.msra.mxu0 0.0
    %2363 = vmatprep.subr.mxu0 0.0
    %2364 = vmatpush1.msra.mxu0 0.0
    %2365 = vmatprep.subr.mxu0 0.0
    %2366 = vmatpush1.msra.mxu0 0.0
    %2367 = vmatprep.mubr.f32.mxu0 0.0
    %2368 = vmatmul.mubr.f32.gmra.mrb[0].mxu0 0.0
    %v2369 = vpop.f32.mrb[0].mxu0
    %v2370 = vadd.f32 0.0, %v2369
    %v2371 = vpop.f32.mrb[0].mxu0
    %v2372 = vadd.f32 0.0, %v2371
    %2373 = vdwg.mxu0
    %2374 = vmatprep.subr.mxu0 0.0
    %2375 = vmatpush1.msra.mxu0 %v2247
    %2376 = vmatprep.subr.mxu0 0.0
    %2377 = vmatpush1.msra.mxu0 %v2250
    %2378 = vmatprep.subr.mxu0 0.0
    %2379 = vmatpush1.msra.mxu0 %v2253
    %2380 = vmatprep.subr.mxu0 0.0
    %2381 = vmatpush1.msra.mxu0 %v2256
    %2382 = vmatprep.subr.mxu0 0.0
    %2383 = vmatpush1.msra.mxu0 %v2259
    %2384 = vmatprep.subr.mxu0 0.0
    %2385 = vmatpush1.msra.mxu0 %v2262
    %2386 = vmatprep.subr.mxu0 0.0
    %2387 = vmatpush1.msra.mxu0 %v2265
    %2388 = vmatprep.subr.mxu0 0.0
    %2389 = vmatpush1.msra.mxu0 %v2268
    %2390 = vmatprep.subr.mxu0 0.0
    %2391 = vmatpush1.msra.mxu0 %v2271
    %2392 = vmatprep.subr.mxu0 0.0
    %2393 = vmatpush1.msra.mxu0 %v2274
    %2394 = vmatprep.subr.mxu0 0.0
    %2395 = vmatpush1.msra.mxu0 %v2277
    %2396 = vmatprep.subr.mxu0 0.0
    %2397 = vmatpush1.msra.mxu0 %v2280
    %2398 = vmatprep.subr.mxu0 0.0
    %2399 = vmatpush1.msra.mxu0 %v2283
    %2400 = vmatprep.subr.mxu0 0.0
    %2401 = vmatpush1.msra.mxu0 %v2286
    %2402 = vmatprep.subr.mxu0 0.0
    %2403 = vmatpush1.msra.mxu0 %v2289
    %2404 = vmatprep.subr.mxu0 0.0
    %2405 = vmatpush1.msra.mxu0 %v2292
    %2406 = vmatprep.subr.mxu0 0.0
    %2407 = vmatpush1.msra.mxu0 0.0
    %2408 = vmatprep.subr.mxu0 0.0
    %2409 = vmatpush1.msra.mxu0 0.0
    %2410 = vmatprep.subr.mxu0 0.0
    %2411 = vmatpush1.msra.mxu0 0.0
    %2412 = vmatprep.subr.mxu0 0.0
    %2413 = vmatpush1.msra.mxu0 0.0
    %2414 = vmatprep.subr.mxu0 0.0
    %2415 = vmatpush1.msra.mxu0 0.0
    %2416 = vmatprep.subr.mxu0 0.0
    %2417 = vmatpush1.msra.mxu0 0.0
    %2418 = vmatprep.subr.mxu0 0.0
    %2419 = vmatpush1.msra.mxu0 0.0
    %2420 = vmatprep.subr.mxu0 0.0
    %2421 = vmatpush1.msra.mxu0 0.0
    %2422 = vmatprep.subr.mxu0 0.0
    %2423 = vmatpush1.msra.mxu0 0.0
    %2424 = vmatprep.subr.mxu0 0.0
    %2425 = vmatpush1.msra.mxu0 0.0
    %2426 = vmatprep.subr.mxu0 0.0
    %2427 = vmatpush1.msra.mxu0 0.0
    %2428 = vmatprep.subr.mxu0 0.0
    %2429 = vmatpush1.msra.mxu0 0.0
    %2430 = vmatprep.subr.mxu0 0.0
    %2431 = vmatpush1.msra.mxu0 0.0
    %2432 = vmatprep.subr.mxu0 0.0
    %2433 = vmatpush1.msra.mxu0 0.0
    %2434 = vmatprep.subr.mxu0 0.0
    %2435 = vmatpush1.msra.mxu0 0.0
    %2436 = vmatprep.subr.mxu0 0.0
    %2437 = vmatpush1.msra.mxu0 0.0
    %2438 = vmatprep.mubr.f32.mxu0 0.0
    %2439 = vmatmul.mubr.f32.gmra.mrb[0].mxu0 0.0
    %v2440 = vpop.f32.mrb[0].mxu0
    %v2441 = vadd.f32 0.0, %v2440
    %v2442 = vpop.f32.mrb[0].mxu0
    %2443 = vdwg.mxu0
    %v2444 = vadd.f32 %v2300, %v2370
    %v2445 = vxor.u32 %v2444, 2147483648
    %v2446 = vmul.f32 %v2445, 1.442695
    %v2447 = vpow.pop %v2446
    %v2448 = vadd.f32 %v2447, 1.0
    %v2449 = vrcp.pop %v2448
    %v2450 = vmul.f32 1.0, %v2449
    %v2451 = vadd.f32 %v2301, %v2372
    %v2452 = vxor.u32 %v2451, 2147483648
    %v2453 = vmul.f32 %v2452, 1.442695
    %v2454 = vpow.pop %v2453
    %v2455 = vadd.f32 %v2454, 1.0
    %v2456 = vrcp.pop %v2455
    %v2457 = vmul.f32 1.0, %v2456
    %v2458 = vadd.f32 %v2441, %v2298
    %v2459 = vmul.f32 %v2450, %v2458
    %v2460 = vadd.f32 %v2302, %v2459
    %v2461 = vtanh.pop %v2460
    %v2462 = vsub.f32 1.0, %v2457
    %v2463 = vmul.f32 %v2462, %v2461
    %v2464 = vmul.f32 %v2457, 0.0
    %v2465 = vadd.f32 %v2463, %v2464
    %2466 = vst [vmem:[#allocation2] sm:$0xff] %v2465
    %v2467 = vld [vmem:[%s672] sm:$0xff]
    %v2468 = vld [vmem:[%s672 + $0x8] sm:$0xff]
    %v2469 = vld [vmem:[%s672 + $0x10] sm:$0xff]
    %2470 = vmatprep.subr.mxu0 %v2246
    %2471 = vmatpush1.msra.mxu0 %v2245
    %2472 = vmatprep.subr.mxu0 %v2249
    %2473 = vmatpush1.msra.mxu0 %v2248
    %2474 = vmatprep.subr.mxu0 %v2252
    %2475 = vmatpush1.msra.mxu0 %v2251
    %2476 = vmatprep.subr.mxu0 %v2255
    %2477 = vmatpush1.msra.mxu0 %v2254
    %2478 = vmatprep.subr.mxu0 %v2258
    %2479 = vmatpush1.msra.mxu0 %v2257
    %2480 = vmatprep.subr.mxu0 %v2261
    %2481 = vmatpush1.msra.mxu0 %v2260
    %2482 = vmatprep.subr.mxu0 %v2264
    %2483 = vmatpush1.msra.mxu0 %v2263
    %2484 = vmatprep.subr.mxu0 %v2267
    %2485 = vmatpush1.msra.mxu0 %v2266
    %2486 = vmatprep.subr.mxu0 %v2270
    %2487 = vmatpush1.msra.mxu0 %v2269
    %2488 = vmatprep.subr.mxu0 %v2273
    %2489 = vmatpush1.msra.mxu0 %v2272
    %2490 = vmatprep.subr.mxu0 %v2276
    %2491 = vmatpush1.msra.mxu0 %v2275
    %2492 = vmatprep.subr.mxu0 %v2279
    %2493 = vmatpush1.msra.mxu0 %v2278
    %2494 = vmatprep.subr.mxu0 %v2282
    %2495 = vmatpush1.msra.mxu0 %v2281
    %2496 = vmatprep.subr.mxu0 %v2285
    %2497 = vmatpush1.msra.mxu0 %v2284
    %2498 = vmatprep.subr.mxu0 %v2288
    %2499 = vmatpush1.msra.mxu0 %v2287
    %2500 = vmatprep.subr.mxu0 %v2291
    %2501 = vmatpush1.msra.mxu0 %v2290
    %2502 = vmatprep.subr.mxu0 0.0
    %2503 = vmatpush1.msra.mxu0 0.0
    %2504 = vmatprep.subr.mxu0 0.0
    %2505 = vmatpush1.msra.mxu0 0.0
    %2506 = vmatprep.subr.mxu0 0.0
    %2507 = vmatpush1.msra.mxu0 0.0
    %2508 = vmatprep.subr.mxu0 0.0
    %2509 = vmatpush1.msra.mxu0 0.0
    %2510 = vmatprep.subr.mxu0 0.0
    %2511 = vmatpush1.msra.mxu0 0.0
    %2512 = vmatprep.subr.mxu0 0.0
    %2513 = vmatpush1.msra.mxu0 0.0
    %2514 = vmatprep.subr.mxu0 0.0
    %2515 = vmatpush1.msra.mxu0 0.0
    %2516 = vmatprep.subr.mxu0 0.0
    %2517 = vmatpush1.msra.mxu0 0.0
    %2518 = vmatprep.subr.mxu0 0.0
    %2519 = vmatpush1.msra.mxu0 0.0
    %2520 = vmatprep.subr.mxu0 0.0
    %2521 = vmatpush1.msra.mxu0 0.0
    %2522 = vmatprep.subr.mxu0 0.0
    %2523 = vmatpush1.msra.mxu0 0.0
    %2524 = vmatprep.subr.mxu0 0.0
    %2525 = vmatpush1.msra.mxu0 0.0
    %2526 = vmatprep.subr.mxu0 0.0
    %2527 = vmatpush1.msra.mxu0 0.0
    %2528 = vmatprep.subr.mxu0 0.0
    %2529 = vmatpush1.msra.mxu0 0.0
    %2530 = vmatprep.subr.mxu0 0.0
    %2531 = vmatpush1.msra.mxu0 0.0
    %2532 = vmatprep.subr.mxu0 0.0
    %2533 = vmatpush1.msra.mxu0 0.0
    %2534 = vmatprep.mubr.f32.mxu0 0.0
    %2535 = vmatmul.mubr.f32.gmra.mrb[0].mxu0 %v2465
    %v2536 = vpop.f32.mrb[0].mxu0
    %v2537 = vadd.f32 0.0, %v2536
    %v2538 = vpop.f32.mrb[0].mxu0
    %v2539 = vadd.f32 0.0, %v2538
    %2540 = vdwg.mxu0
    %2541 = vmatprep.subr.mxu0 0.0
    %2542 = vmatpush1.msra.mxu0 %v2247
    %2543 = vmatprep.subr.mxu0 0.0
    %2544 = vmatpush1.msra.mxu0 %v2250
    %2545 = vmatprep.subr.mxu0 0.0
    %2546 = vmatpush1.msra.mxu0 %v2253
    %2547 = vmatprep.subr.mxu0 0.0
    %2548 = vmatpush1.msra.mxu0 %v2256
    %2549 = vmatprep.subr.mxu0 0.0
    %2550 = vmatpush1.msra.mxu0 %v2259
    %2551 = vmatprep.subr.mxu0 0.0
    %2552 = vmatpush1.msra.mxu0 %v2262
    %2553 = vmatprep.subr.mxu0 0.0
    %2554 = vmatpush1.msra.mxu0 %v2265
    %2555 = vmatprep.subr.mxu0 0.0
    %2556 = vmatpush1.msra.mxu0 %v2268
    %2557 = vmatprep.subr.mxu0 0.0
    %2558 = vmatpush1.msra.mxu0 %v2271
    %2559 = vmatprep.subr.mxu0 0.0
    %2560 = vmatpush1.msra.mxu0 %v2274
    %2561 = vmatprep.subr.mxu0 0.0
    %2562 = vmatpush1.msra.mxu0 %v2277
    %2563 = vmatprep.subr.mxu0 0.0
    %2564 = vmatpush1.msra.mxu0 %v2280
    %2565 = vmatprep.subr.mxu0 0.0
    %2566 = vmatpush1.msra.mxu0 %v2283
    %2567 = vmatprep.subr.mxu0 0.0
    %2568 = vmatpush1.msra.mxu0 %v2286
    %2569 = vmatprep.subr.mxu0 0.0
    %2570 = vmatpush1.msra.mxu0 %v2289
    %2571 = vmatprep.subr.mxu0 0.0
    %2572 = vmatpush1.msra.mxu0 %v2292
    %2573 = vmatprep.subr.mxu0 0.0
    %2574 = vmatpush1.msra.mxu0 0.0
    %2575 = vmatprep.subr.mxu0 0.0
    %2576 = vmatpush1.msra.mxu0 0.0
    %2577 = vmatprep.subr.mxu0 0.0
    %2578 = vmatpush1.msra.mxu0 0.0
    %2579 = vmatprep.subr.mxu0 0.0
    %2580 = vmatpush1.msra.mxu0 0.0
    %2581 = vmatprep.subr.mxu0 0.0
    %2582 = vmatpush1.msra.mxu0 0.0
    %2583 = vmatprep.subr.mxu0 0.0
    %2584 = vmatpush1.msra.mxu0 0.0
    %2585 = vmatprep.subr.mxu0 0.0
    %2586 = vmatpush1.msra.mxu0 0.0
    %2587 = vmatprep.subr.mxu0 0.0
    %2588 = vmatpush1.msra.mxu0 0.0
    %2589 = vmatprep.subr.mxu0 0.0
    %2590 = vmatpush1.msra.mxu0 0.0
    %2591 = vmatprep.subr.mxu0 0.0
    %2592 = vmatpush1.msra.mxu0 0.0
    %2593 = vmatprep.subr.mxu0 0.0
    %2594 = vmatpush1.msra.mxu0 0.0
    %2595 = vmatprep.subr.mxu0 0.0
    %2596 = vmatpush1.msra.mxu0 0.0
    %2597 = vmatprep.subr.mxu0 0.0
    %2598 = vmatpush1.msra.mxu0 0.0
    %2599 = vmatprep.subr.mxu0 0.0
    %2600 = vmatpush1.msra.mxu0 0.0
    %2601 = vmatprep.subr.mxu0 0.0
    %2602 = vmatpush1.msra.mxu0 0.0
    %2603 = vmatprep.subr.mxu0 0.0
    %2604 = vmatpush1.msra.mxu0 0.0
    %2605 = vmatprep.mubr.f32.mxu0 0.0
    %2606 = vmatmul.mubr.f32.gmra.mrb[0].mxu0 %v2465
    %v2607 = vpop.f32.mrb[0].mxu0
    %v2608 = vadd.f32 0.0, %v2607
    %v2609 = vpop.f32.mrb[0].mxu0
    %2610 = vdwg.mxu0
    %v2611 = vadd.f32 %v2467, %v2537
    %v2612 = vxor.u32 %v2611, 2147483648
    %v2613 = vmul.f32 %v2612, 1.442695
    %v2614 = vpow.pop %v2613
    %v2615 = vadd.f32 %v2614, 1.0
    %v2616 = vrcp.pop %v2615
    %v2617 = vmul.f32 1.0, %v2616
    %v2618 = vadd.f32 %v2468, %v2539
    %v2619 = vxor.u32 %v2618, 2147483648
    %v2620 = vmul.f32 %v2619, 1.442695
    %v2621 = vpow.pop %v2620
    %v2622 = vadd.f32 %v2621, 1.0
    %v2623 = vrcp.pop %v2622
    %v2624 = vmul.f32 1.0, %v2623
    %v2625 = vadd.f32 %v2608, %v2298
    %v2626 = vmul.f32 %v2617, %v2625
    %v2627 = vadd.f32 %v2469, %v2626
    %v2628 = vtanh.pop %v2627
    %v2629 = vsub.f32 1.0, %v2624
    %v2630 = vmul.f32 %v2629, %v2628
    %v2631 = vmul.f32 %v2624, %v2465
    %v2632 = vadd.f32 %v2630, %v2631
    %2633 = vst [vmem:[%s848] sm:$0xff] %v2632
    %v2634 = vld [vmem:[%s852] sm:$0xff]
    %v2635 = vld [vmem:[%s852 + $0x8] sm:$0xff]
    %v2636 = vld [vmem:[%s852 + $0x10] sm:$0xff]
    %2637 = vmatprep.subr.mxu0 %v2246
    %2638 = vmatpush1.msra.mxu0 %v2245
    %2639 = vmatprep.subr.mxu0 %v2249
    %2640 = vmatpush1.msra.mxu0 %v2248
    %2641 = vmatprep.subr.mxu0 %v2252
    %2642 = vmatpush1.msra.mxu0 %v2251
    %2643 = vmatprep.subr.mxu0 %v2255
    %2644 = vmatpush1.msra.mxu0 %v2254
    %2645 = vmatprep.subr.mxu0 %v2258
    %2646 = vmatpush1.msra.mxu0 %v2257
    %2647 = vmatprep.subr.mxu0 %v2261
    %2648 = vmatpush1.msra.mxu0 %v2260
    %2649 = vmatprep.subr.mxu0 %v2264
    %2650 = vmatpush1.msra.mxu0 %v2263
    %2651 = vmatprep.subr.mxu0 %v2267
    %2652 = vmatpush1.msra.mxu0 %v2266
    %2653 = vmatprep.subr.mxu0 %v2270
    %2654 = vmatpush1.msra.mxu0 %v2269
    %2655 = vmatprep.subr.mxu0 %v2273
    %2656 = vmatpush1.msra.mxu0 %v2272
    %2657 = vmatprep.subr.mxu0 %v2276
    %2658 = vmatpush1.msra.mxu0 %v2275
    %2659 = vmatprep.subr.mxu0 %v2279
    %2660 = vmatpush1.msra.mxu0 %v2278
    %2661 = vmatprep.subr.mxu0 %v2282
    %2662 = vmatpush1.msra.mxu0 %v2281
    %2663 = vmatprep.subr.mxu0 %v2285
    %2664 = vmatpush1.msra.mxu0 %v2284
    %2665 = vmatprep.subr.mxu0 %v2288
    %2666 = vmatpush1.msra.mxu0 %v2287
    %2667 = vmatprep.subr.mxu0 %v2291
    %2668 = vmatpush1.msra.mxu0 %v2290
    %2669 = vmatprep.subr.mxu0 0.0
    %2670 = vmatpush1.msra.mxu0 0.0
    %2671 = vmatprep.subr.mxu0 0.0
    %2672 = vmatpush1.msra.mxu0 0.0
    %2673 = vmatprep.subr.mxu0 0.0
    %2674 = vmatpush1.msra.mxu0 0.0
    %2675 = vmatprep.subr.mxu0 0.0
    %2676 = vmatpush1.msra.mxu0 0.0
    %2677 = vmatprep.subr.mxu0 0.0
    %2678 = vmatpush1.msra.mxu0 0.0
    %2679 = vmatprep.subr.mxu0 0.0
    %2680 = vmatpush1.msra.mxu0 0.0
    %2681 = vmatprep.subr.mxu0 0.0
    %2682 = vmatpush1.msra.mxu0 0.0
    %2683 = vmatprep.subr.mxu0 0.0
    %2684 = vmatpush1.msra.mxu0 0.0
    %2685 = vmatprep.subr.mxu0 0.0
    %2686 = vmatpush1.msra.mxu0 0.0
    %2687 = vmatprep.subr.mxu0 0.0
    %2688 = vmatpush1.msra.mxu0 0.0
    %2689 = vmatprep.subr.mxu0 0.0
    %2690 = vmatpush1.msra.mxu0 0.0
    %2691 = vmatprep.subr.mxu0 0.0
    %2692 = vmatpush1.msra.mxu0 0.0
    %2693 = vmatprep.subr.mxu0 0.0
    %2694 = vmatpush1.msra.mxu0 0.0
    %2695 = vmatprep.subr.mxu0 0.0
    %2696 = vmatpush1.msra.mxu0 0.0
    %2697 = vmatprep.subr.mxu0 0.0
    %2698 = vmatpush1.msra.mxu0 0.0
    %2699 = vmatprep.subr.mxu0 0.0
    %2700 = vmatpush1.msra.mxu0 0.0
    %2701 = vmatprep.mubr.f32.mxu0 0.0
    %2702 = vmatmul.mubr.f32.gmra.mrb[0].mxu0 %v2632
    %v2703 = vpop.f32.mrb[0].mxu0
    %v2704 = vadd.f32 0.0, %v2703
    %v2705 = vpop.f32.mrb[0].mxu0
    %v2706 = vadd.f32 0.0, %v2705
    %2707 = vdwg.mxu0
    %2708 = vmatprep.subr.mxu0 0.0
    %2709 = vmatpush1.msra.mxu0 %v2247
    %2710 = vmatprep.subr.mxu0 0.0
    %2711 = vmatpush1.msra.mxu0 %v2250
    %2712 = vmatprep.subr.mxu0 0.0
    %2713 = vmatpush1.msra.mxu0 %v2253
    %2714 = vmatprep.subr.mxu0 0.0
    %2715 = vmatpush1.msra.mxu0 %v2256
    %2716 = vmatprep.subr.mxu0 0.0
    %2717 = vmatpush1.msra.mxu0 %v2259
    %2718 = vmatprep.subr.mxu0 0.0
    %2719 = vmatpush1.msra.mxu0 %v2262
    %2720 = vmatprep.subr.mxu0 0.0
    %2721 = vmatpush1.msra.mxu0 %v2265
    %2722 = vmatprep.subr.mxu0 0.0
    %2723 = vmatpush1.msra.mxu0 %v2268
    %2724 = vmatprep.subr.mxu0 0.0
    %2725 = vmatpush1.msra.mxu0 %v2271
    %2726 = vmatprep.subr.mxu0 0.0
    %2727 = vmatpush1.msra.mxu0 %v2274
    %2728 = vmatprep.subr.mxu0 0.0
    %2729 = vmatpush1.msra.mxu0 %v2277
    %2730 = vmatprep.subr.mxu0 0.0
    %2731 = vmatpush1.msra.mxu0 %v2280
    %2732 = vmatprep.subr.mxu0 0.0
    %2733 = vmatpush1.msra.mxu0 %v2283
    %2734 = vmatprep.subr.mxu0 0.0
    %2735 = vmatpush1.msra.mxu0 %v2286
    %2736 = vmatprep.subr.mxu0 0.0
    %2737 = vmatpush1.msra.mxu0 %v2289
    %2738 = vmatprep.subr.mxu0 0.0
    %2739 = vmatpush1.msra.mxu0 %v2292
    %2740 = vmatprep.subr.mxu0 0.0
    %2741 = vmatpush1.msra.mxu0 0.0
    %2742 = vmatprep.subr.mxu0 0.0
    %2743 = vmatpush1.msra.mxu0 0.0
    %2744 = vmatprep.subr.mxu0 0.0
    %2745 = vmatpush1.msra.mxu0 0.0
    %2746 = vmatprep.subr.mxu0 0.0
    %2747 = vmatpush1.msra.mxu0 0.0
    %2748 = vmatprep.subr.mxu0 0.0
    %2749 = vmatpush1.msra.mxu0 0.0
    %2750 = vmatprep.subr.mxu0 0.0
    %2751 = vmatpush1.msra.mxu0 0.0
    %2752 = vmatprep.subr.mxu0 0.0
    %2753 = vmatpush1.msra.mxu0 0.0
    %2754 = vmatprep.subr.mxu0 0.0
    %2755 = vmatpush1.msra.mxu0 0.0
    %2756 = vmatprep.subr.mxu0 0.0
    %2757 = vmatpush1.msra.mxu0 0.0
    %2758 = vmatprep.subr.mxu0 0.0
    %2759 = vmatpush1.msra.mxu0 0.0
    %2760 = vmatprep.subr.mxu0 0.0
    %2761 = vmatpush1.msra.mxu0 0.0
    %2762 = vmatprep.subr.mxu0 0.0
    %2763 = vmatpush1.msra.mxu0 0.0
    %2764 = vmatprep.subr.mxu0 0.0
    %2765 = vmatpush1.msra.mxu0 0.0
    %2766 = vmatprep.subr.mxu0 0.0
    %2767 = vmatpush1.msra.mxu0 0.0
    %2768 = vmatprep.subr.mxu0 0.0
    %2769 = vmatpush1.msra.mxu0 0.0
    %2770 = vmatprep.subr.mxu0 0.0
    %2771 = vmatpush1.msra.mxu0 0.0
    %2772 = vmatprep.mubr.f32.mxu0 0.0
    %2773 = vmatmul.mubr.f32.gmra.mrb[0].mxu0 %v2632
    %v2774 = vpop.f32.mrb[0].mxu0
    %v2775 = vadd.f32 0.0, %v2774
    %v2776 = vpop.f32.mrb[0].mxu0
    %2777 = vdwg.mxu0
    %v2778 = vadd.f32 %v2634, %v2704
    %v2779 = vxor.u32 %v2778, 2147483648
    %v2780 = vmul.f32 %v2779, 1.442695
    %v2781 = vpow.pop %v2780
    %v2782 = vadd.f32 %v2781, 1.0
    %v2783 = vrcp.pop %v2782
    %v2784 = vmul.f32 1.0, %v2783
    %v2785 = vadd.f32 %v2635, %v2706
    %v2786 = vxor.u32 %v2785, 2147483648
    %v2787 = vmul.f32 %v2786, 1.442695
    %v2788 = vpow.pop %v2787
    %v2789 = vadd.f32 %v2788, 1.0
    %v2790 = vrcp.pop %v2789
    %v2791 = vmul.f32 1.0, %v2790
    %v2792 = vadd.f32 %v2775, %v2298
    %v2793 = vmul.f32 %v2784, %v2792
    %v2794 = vadd.f32 %v2636, %v2793
    %v2795 = vtanh.pop %v2794
    %v2796 = vsub.f32 1.0, %v2791
    %v2797 = vmul.f32 %v2796, %v2795
    %v2798 = vmul.f32 %v2791, %v2632
    %v2799 = vadd.f32 %v2797, %v2798
    %2800 = vst [vmem:[%s1028] sm:$0xff] %v2799
    %v2801 = vld [vmem:[%s1032] sm:$0xff]
    %v2802 = vld [vmem:[%s1032 + $0x8] sm:$0xff]
    %v2803 = vld [vmem:[%s1032 + $0x10] sm:$0xff]
    %2804 = vmatprep.subr.mxu0 %v2246
    %2805 = vmatpush1.msra.mxu0 %v2245
    %2806 = vmatprep.subr.mxu0 %v2249
    %2807 = vmatpush1.msra.mxu0 %v2248
    %2808 = vmatprep.subr.mxu0 %v2252
    %2809 = vmatpush1.msra.mxu0 %v2251
    %2810 = vmatprep.subr.mxu0 %v2255
    %2811 = vmatpush1.msra.mxu0 %v2254
    %2812 = vmatprep.subr.mxu0 %v2258
    %2813 = vmatpush1.msra.mxu0 %v2257
    %2814 = vmatprep.subr.mxu0 %v2261
    %2815 = vmatpush1.msra.mxu0 %v2260
    %2816 = vmatprep.subr.mxu0 %v2264
    %2817 = vmatpush1.msra.mxu0 %v2263
    %2818 = vmatprep.subr.mxu0 %v2267
    %2819 = vmatpush1.msra.mxu0 %v2266
    %2820 = vmatprep.subr.mxu0 %v2270
    %2821 = vmatpush1.msra.mxu0 %v2269
    %2822 = vmatprep.subr.mxu0 %v2273
    %2823 = vmatpush1.msra.mxu0 %v2272
    %2824 = vmatprep.subr.mxu0 %v2276
    %2825 = vmatpush1.msra.mxu0 %v2275
    %2826 = vmatprep.subr.mxu0 %v2279
    %2827 = vmatpush1.msra.mxu0 %v2278
    %2828 = vmatprep.subr.mxu0 %v2282
    %2829 = vmatpush1.msra.mxu0 %v2281
    %2830 = vmatprep.subr.mxu0 %v2285
    %2831 = vmatpush1.msra.mxu0 %v2284
    %2832 = vmatprep.subr.mxu0 %v2288
    %2833 = vmatpush1.msra.mxu0 %v2287
    %2834 = vmatprep.subr.mxu0 %v2291
    %2835 = vmatpush1.msra.mxu0 %v2290
    %2836 = vmatprep.subr.mxu0 0.0
    %2837 = vmatpush1.msra.mxu0 0.0
    %2838 = vmatprep.subr.mxu0 0.0
    %2839 = vmatpush1.msra.mxu0 0.0
    %2840 = vmatprep.subr.mxu0 0.0
    %2841 = vmatpush1.msra.mxu0 0.0
    %2842 = vmatprep.subr.mxu0 0.0
    %2843 = vmatpush1.msra.mxu0 0.0
    %2844 = vmatprep.subr.mxu0 0.0
    %2845 = vmatpush1.msra.mxu0 0.0
    %2846 = vmatprep.subr.mxu0 0.0
    %2847 = vmatpush1.msra.mxu0 0.0
    %2848 = vmatprep.subr.mxu0 0.0
    %2849 = vmatpush1.msra.mxu0 0.0
    %2850 = vmatprep.subr.mxu0 0.0
    %2851 = vmatpush1.msra.mxu0 0.0
    %2852 = vmatprep.subr.mxu0 0.0
    %2853 = vmatpush1.msra.mxu0 0.0
    %2854 = vmatprep.subr.mxu0 0.0
    %2855 = vmatpush1.msra.mxu0 0.0
    %2856 = vmatprep.subr.mxu0 0.0
    %2857 = vmatpush1.msra.mxu0 0.0
    %2858 = vmatprep.subr.mxu0 0.0
    %2859 = vmatpush1.msra.mxu0 0.0
    %2860 = vmatprep.subr.mxu0 0.0
    %2861 = vmatpush1.msra.mxu0 0.0
    %2862 = vmatprep.subr.mxu0 0.0
    %2863 = vmatpush1.msra.mxu0 0.0
    %2864 = vmatprep.subr.mxu0 0.0
    %2865 = vmatpush1.msra.mxu0 0.0
    %2866 = vmatprep.subr.mxu0 0.0
    %2867 = vmatpush1.msra.mxu0 0.0
    %2868 = vmatprep.mubr.f32.mxu0 0.0
    %2869 = vmatmul.mubr.f32.gmra.mrb[0].mxu0 %v2799
    %v2870 = vpop.f32.mrb[0].mxu0
    %v2871 = vadd.f32 0.0, %v2870
    %v2872 = vpop.f32.mrb[0].mxu0
    %v2873 = vadd.f32 0.0, %v2872
    %2874 = vdwg.mxu0
    %2875 = vmatprep.subr.mxu0 0.0
    %2876 = vmatpush1.msra.mxu0 %v2247
    %2877 = vmatprep.subr.mxu0 0.0
    %2878 = vmatpush1.msra.mxu0 %v2250
    %2879 = vmatprep.subr.mxu0 0.0
    %2880 = vmatpush1.msra.mxu0 %v2253
    %2881 = vmatprep.subr.mxu0 0.0
    %2882 = vmatpush1.msra.mxu0 %v2256
    %2883 = vmatprep.subr.mxu0 0.0
    %2884 = vmatpush1.msra.mxu0 %v2259
    %2885 = vmatprep.subr.mxu0 0.0
    %2886 = vmatpush1.msra.mxu0 %v2262
    %2887 = vmatprep.subr.mxu0 0.0
    %2888 = vmatpush1.msra.mxu0 %v2265
    %2889 = vmatprep.subr.mxu0 0.0
    %2890 = vmatpush1.msra.mxu0 %v2268
    %2891 = vmatprep.subr.mxu0 0.0
    %2892 = vmatpush1.msra.mxu0 %v2271
    %2893 = vmatprep.subr.mxu0 0.0
    %2894 = vmatpush1.msra.mxu0 %v2274
    %2895 = vmatprep.subr.mxu0 0.0
    %2896 = vmatpush1.msra.mxu0 %v2277
    %2897 = vmatprep.subr.mxu0 0.0
    %2898 = vmatpush1.msra.mxu0 %v2280
    %2899 = vmatprep.subr.mxu0 0.0
    %2900 = vmatpush1.msra.mxu0 %v2283
    %2901 = vmatprep.subr.mxu0 0.0
    %2902 = vmatpush1.msra.mxu0 %v2286
    %2903 = vmatprep.subr.mxu0 0.0
    %2904 = vmatpush1.msra.mxu0 %v2289
    %2905 = vmatprep.subr.mxu0 0.0
    %2906 = vmatpush1.msra.mxu0 %v2292
    %2907 = vmatprep.subr.mxu0 0.0
    %2908 = vmatpush1.msra.mxu0 0.0
    %2909 = vmatprep.subr.mxu0 0.0
    %2910 = vmatpush1.msra.mxu0 0.0
    %2911 = vmatprep.subr.mxu0 0.0
    %2912 = vmatpush1.msra.mxu0 0.0
    %2913 = vmatprep.subr.mxu0 0.0
    %2914 = vmatpush1.msra.mxu0 0.0
    %2915 = vmatprep.subr.mxu0 0.0
    %2916 = vmatpush1.msra.mxu0 0.0
    %2917 = vmatprep.subr.mxu0 0.0
    %2918 = vmatpush1.msra.mxu0 0.0
    %2919 = vmatprep.subr.mxu0 0.0
    %2920 = vmatpush1.msra.mxu0 0.0
    %2921 = vmatprep.subr.mxu0 0.0
    %2922 = vmatpush1.msra.mxu0 0.0
    %2923 = vmatprep.subr.mxu0 0.0
    %2924 = vmatpush1.msra.mxu0 0.0
    %2925 = vmatprep.subr.mxu0 0.0
    %2926 = vmatpush1.msra.mxu0 0.0
    %2927 = vmatprep.subr.mxu0 0.0
    %2928 = vmatpush1.msra.mxu0 0.0
    %2929 = vmatprep.subr.mxu0 0.0
    %2930 = vmatpush1.msra.mxu0 0.0
    %2931 = vmatprep.subr.mxu0 0.0
    %2932 = vmatpush1.msra.mxu0 0.0
    %2933 = vmatprep.subr.mxu0 0.0
    %2934 = vmatpush1.msra.mxu0 0.0
    %2935 = vmatprep.subr.mxu0 0.0
    %2936 = vmatpush1.msra.mxu0 0.0
    %2937 = vmatprep.subr.mxu0 0.0
    %2938 = vmatpush1.msra.mxu0 0.0
    %2939 = vmatprep.mubr.f32.mxu0 0.0
    %2940 = vmatmul.mubr.f32.gmra.mrb[0].mxu0 %v2799
    %v2941 = vpop.f32.mrb[0].mxu0
    %v2942 = vadd.f32 0.0, %v2941
    %v2943 = vpop.f32.mrb[0].mxu0
    %2944 = vdwg.mxu0
    %v2945 = vadd.f32 %v2801, %v2871
    %v2946 = vxor.u32 %v2945, 2147483648
    %v2947 = vmul.f32 %v2946, 1.442695
    %v2948 = vpow.pop %v2947
    %v2949 = vadd.f32 %v2948, 1.0
    %v2950 = vrcp.pop %v2949
    %v2951 = vmul.f32 1.0, %v2950
    %v2952 = vadd.f32 %v2802, %v2873
    %v2953 = vxor.u32 %v2952, 2147483648
    %v2954 = vmul.f32 %v2953, 1.442695
    %v2955 = vpow.pop %v2954
    %v2956 = vadd.f32 %v2955, 1.0
    %v2957 = vrcp.pop %v2956
    %v2958 = vmul.f32 1.0, %v2957
    %v2959 = vadd.f32 %v2942, %v2298
    %v2960 = vmul.f32 %v2951, %v2959
    %v2961 = vadd.f32 %v2803, %v2960
    %v2962 = vtanh.pop %v2961
    %v2963 = vsub.f32 1.0, %v2958
    %v2964 = vmul.f32 %v2963, %v2962
    %v2965 = vmul.f32 %v2958, %v2799
    %v2966 = vadd.f32 %v2964, %v2965
    %2967 = vst [vmem:[%s1208] sm:$0xff] %v2966
    %v2968 = vld [vmem:[%s1212] sm:$0xff]
    %v2969 = vld [vmem:[%s1212 + $0x8] sm:$0xff]
    %v2970 = vld [vmem:[%s1212 + $0x10] sm:$0xff]
    %2971 = vmatprep.subr.mxu0 %v2246
    %2972 = vmatpush1.msra.mxu0 %v2245
    %2973 = vmatprep.subr.mxu0 %v2249
    %2974 = vmatpush1.msra.mxu0 %v2248
    %2975 = vmatprep.subr.mxu0 %v2252
    %2976 = vmatpush1.msra.mxu0 %v2251
    %2977 = vmatprep.subr.mxu0 %v2255
    %2978 = vmatpush1.msra.mxu0 %v2254
    %2979 = vmatprep.subr.mxu0 %v2258
    %2980 = vmatpush1.msra.mxu0 %v2257
    %2981 = vmatprep.subr.mxu0 %v2261
    %2982 = vmatpush1.msra.mxu0 %v2260
    %2983 = vmatprep.subr.mxu0 %v2264
    %2984 = vmatpush1.msra.mxu0 %v2263
    %2985 = vmatprep.subr.mxu0 %v2267
    %2986 = vmatpush1.msra.mxu0 %v2266
    %2987 = vmatprep.subr.mxu0 %v2270
    %2988 = vmatpush1.msra.mxu0 %v2269
    %2989 = vmatprep.subr.mxu0 %v2273
    %2990 = vmatpush1.msra.mxu0 %v2272
    %2991 = vmatprep.subr.mxu0 %v2276
    %2992 = vmatpush1.msra.mxu0 %v2275
    %2993 = vmatprep.subr.mxu0 %v2279
    %2994 = vmatpush1.msra.mxu0 %v2278
    %2995 = vmatprep.subr.mxu0 %v2282
    %2996 = vmatpush1.msra.mxu0 %v2281
    %2997 = vmatprep.subr.mxu0 %v2285
    %2998 = vmatpush1.msra.mxu0 %v2284
    %2999 = vmatprep.subr.mxu0 %v2288
    %3000 = vmatpush1.msra.mxu0 %v2287
    %3001 = vmatprep.subr.mxu0 %v2291
    %3002 = vmatpush1.msra.mxu0 %v2290
    %3003 = vmatprep.subr.mxu0 0.0
    %3004 = vmatpush1.msra.mxu0 0.0
    %3005 = vmatprep.subr.mxu0 0.0
    %3006 = vmatpush1.msra.mxu0 0.0
    %3007 = vmatprep.subr.mxu0 0.0
    %3008 = vmatpush1.msra.mxu0 0.0
    %3009 = vmatprep.subr.mxu0 0.0
    %3010 = vmatpush1.msra.mxu0 0.0
    %3011 = vmatprep.subr.mxu0 0.0
    %3012 = vmatpush1.msra.mxu0 0.0
    %3013 = vmatprep.subr.mxu0 0.0
    %3014 = vmatpush1.msra.mxu0 0.0
    %3015 = vmatprep.subr.mxu0 0.0
    %3016 = vmatpush1.msra.mxu0 0.0
    %3017 = vmatprep.subr.mxu0 0.0
    %3018 = vmatpush1.msra.mxu0 0.0
    %3019 = vmatprep.subr.mxu0 0.0
    %3020 = vmatpush1.msra.mxu0 0.0
    %3021 = vmatprep.subr.mxu0 0.0
    %3022 = vmatpush1.msra.mxu0 0.0
    %3023 = vmatprep.subr.mxu0 0.0
    %3024 = vmatpush1.msra.mxu0 0.0
    %3025 = vmatprep.subr.mxu0 0.0
    %3026 = vmatpush1.msra.mxu0 0.0
    %3027 = vmatprep.subr.mxu0 0.0
    %3028 = vmatpush1.msra.mxu0 0.0
    %3029 = vmatprep.subr.mxu0 0.0
    %3030 = vmatpush1.msra.mxu0 0.0
    %3031 = vmatprep.subr.mxu0 0.0
    %3032 = vmatpush1.msra.mxu0 0.0
    %3033 = vmatprep.subr.mxu0 0.0
    %3034 = vmatpush1.msra.mxu0 0.0
    %3035 = vmatprep.mubr.f32.mxu0 0.0
    %3036 = vmatmul.mubr.f32.gmra.mrb[0].mxu0 %v2966
    %v3037 = vpop.f32.mrb[0].mxu0
    %v3038 = vadd.f32 0.0, %v3037
    %v3039 = vpop.f32.mrb[0].mxu0
    %v3040 = vadd.f32 0.0, %v3039
    %3041 = vdwg.mxu0
    %3042 = vmatprep.subr.mxu0 0.0
    %3043 = vmatpush1.msra.mxu0 %v2247
    %3044 = vmatprep.subr.mxu0 0.0
    %3045 = vmatpush1.msra.mxu0 %v2250
    %3046 = vmatprep.subr.mxu0 0.0
    %3047 = vmatpush1.msra.mxu0 %v2253
    %3048 = vmatprep.subr.mxu0 0.0
    %3049 = vmatpush1.msra.mxu0 %v2256
    %3050 = vmatprep.subr.mxu0 0.0
    %3051 = vmatpush1.msra.mxu0 %v2259
    %3052 = vmatprep.subr.mxu0 0.0
    %3053 = vmatpush1.msra.mxu0 %v2262
    %3054 = vmatprep.subr.mxu0 0.0
    %3055 = vmatpush1.msra.mxu0 %v2265
    %3056 = vmatprep.subr.mxu0 0.0
    %3057 = vmatpush1.msra.mxu0 %v2268
    %3058 = vmatprep.subr.mxu0 0.0
    %3059 = vmatpush1.msra.mxu0 %v2271
    %3060 = vmatprep.subr.mxu0 0.0
    %3061 = vmatpush1.msra.mxu0 %v2274
    %3062 = vmatprep.subr.mxu0 0.0
    %3063 = vmatpush1.msra.mxu0 %v2277
    %3064 = vmatprep.subr.mxu0 0.0
    %3065 = vmatpush1.msra.mxu0 %v2280
    %3066 = vmatprep.subr.mxu0 0.0
    %3067 = vmatpush1.msra.mxu0 %v2283
    %3068 = vmatprep.subr.mxu0 0.0
    %3069 = vmatpush1.msra.mxu0 %v2286
    %3070 = vmatprep.subr.mxu0 0.0
    %3071 = vmatpush1.msra.mxu0 %v2289
    %3072 = vmatprep.subr.mxu0 0.0
    %3073 = vmatpush1.msra.mxu0 %v2292
    %3074 = vmatprep.subr.mxu0 0.0
    %3075 = vmatpush1.msra.mxu0 0.0
    %3076 = vmatprep.subr.mxu0 0.0
    %3077 = vmatpush1.msra.mxu0 0.0
    %3078 = vmatprep.subr.mxu0 0.0
    %3079 = vmatpush1.msra.mxu0 0.0
    %3080 = vmatprep.subr.mxu0 0.0
    %3081 = vmatpush1.msra.mxu0 0.0
    %3082 = vmatprep.subr.mxu0 0.0
    %3083 = vmatpush1.msra.mxu0 0.0
    %3084 = vmatprep.subr.mxu0 0.0
    %3085 = vmatpush1.msra.mxu0 0.0
    %3086 = vmatprep.subr.mxu0 0.0
    %3087 = vmatpush1.msra.mxu0 0.0
    %3088 = vmatprep.subr.mxu0 0.0
    %3089 = vmatpush1.msra.mxu0 0.0
    %3090 = vmatprep.subr.mxu0 0.0
    %3091 = vmatpush1.msra.mxu0 0.0
    %3092 = vmatprep.subr.mxu0 0.0
    %3093 = vmatpush1.msra.mxu0 0.0
    %3094 = vmatprep.subr.mxu0 0.0
    %3095 = vmatpush1.msra.mxu0 0.0
    %3096 = vmatprep.subr.mxu0 0.0
    %3097 = vmatpush1.msra.mxu0 0.0
    %3098 = vmatprep.subr.mxu0 0.0
    %3099 = vmatpush1.msra.mxu0 0.0
    %3100 = vmatprep.subr.mxu0 0.0
    %3101 = vmatpush1.msra.mxu0 0.0
    %3102 = vmatprep.subr.mxu0 0.0
    %3103 = vmatpush1.msra.mxu0 0.0
    %3104 = vmatprep.subr.mxu0 0.0
    %3105 = vmatpush1.msra.mxu0 0.0
    %3106 = vmatprep.mubr.f32.mxu0 0.0
    %3107 = vmatmul.mubr.f32.gmra.mrb[0].mxu0 %v2966
    %v3108 = vpop.f32.mrb[0].mxu0
    %v3109 = vadd.f32 0.0, %v3108
    %v3110 = vpop.f32.mrb[0].mxu0
    %3111 = vdwg.mxu0
    %v3112 = vadd.f32 %v2968, %v3038
    %v3113 = vxor.u32 %v3112, 2147483648
    %v3114 = vmul.f32 %v3113, 1.442695
    %v3115 = vpow.pop %v3114
    %v3116 = vadd.f32 %v3115, 1.0
    %v3117 = vrcp.pop %v3116
    %v3118 = vmul.f32 1.0, %v3117
    %v3119 = vadd.f32 %v2969, %v3040
    %v3120 = vxor.u32 %v3119, 2147483648
    %v3121 = vmul.f32 %v3120, 1.442695
    %v3122 = vpow.pop %v3121
    %v3123 = vadd.f32 %v3122, 1.0
    %v3124 = vrcp.pop %v3123
    %v3125 = vmul.f32 1.0, %v3124
    %v3126 = vadd.f32 %v3109, %v2298
    %v3127 = vmul.f32 %v3118, %v3126
    %v3128 = vadd.f32 %v2970, %v3127
    %v3129 = vtanh.pop %v3128
    %v3130 = vsub.f32 1.0, %v3125
    %v3131 = vmul.f32 %v3130, %v3129
    %v3132 = vmul.f32 %v3125, %v2966
    %v3133 = vadd.f32 %v3131, %v3132
    %3134 = vst [vmem:[%s1388] sm:$0xff] %v3133
    %v3135 = vld [vmem:[%s1392] sm:$0xff]
    %v3136 = vld [vmem:[%s1392 + $0x8] sm:$0xff]
    %v3137 = vld [vmem:[%s1392 + $0x10] sm:$0xff]
    %3138 = vmatprep.subr.mxu0 %v2246
    %3139 = vmatpush1.msra.mxu0 %v2245
    %3140 = vmatprep.subr.mxu0 %v2249
    %3141 = vmatpush1.msra.mxu0 %v2248
    %3142 = vmatprep.subr.mxu0 %v2252
    %3143 = vmatpush1.msra.mxu0 %v2251
    %3144 = vmatprep.subr.mxu0 %v2255
    %3145 = vmatpush1.msra.mxu0 %v2254
    %3146 = vmatprep.subr.mxu0 %v2258
    %3147 = vmatpush1.msra.mxu0 %v2257
    %3148 = vmatprep.subr.mxu0 %v2261
    %3149 = vmatpush1.msra.mxu0 %v2260
    %3150 = vmatprep.subr.mxu0 %v2264
    %3151 = vmatpush1.msra.mxu0 %v2263
    %3152 = vmatprep.subr.mxu0 %v2267
    %3153 = vmatpush1.msra.mxu0 %v2266
    %3154 = vmatprep.subr.mxu0 %v2270
    %3155 = vmatpush1.msra.mxu0 %v2269
    %3156 = vmatprep.subr.mxu0 %v2273
    %3157 = vmatpush1.msra.mxu0 %v2272
    %3158 = vmatprep.subr.mxu0 %v2276
    %3159 = vmatpush1.msra.mxu0 %v2275
    %3160 = vmatprep.subr.mxu0 %v2279
    %3161 = vmatpush1.msra.mxu0 %v2278
    %3162 = vmatprep.subr.mxu0 %v2282
    %3163 = vmatpush1.msra.mxu0 %v2281
    %3164 = vmatprep.subr.mxu0 %v2285
    %3165 = vmatpush1.msra.mxu0 %v2284
    %3166 = vmatprep.subr.mxu0 %v2288
    %3167 = vmatpush1.msra.mxu0 %v2287
    %3168 = vmatprep.subr.mxu0 %v2291
    %3169 = vmatpush1.msra.mxu0 %v2290
    %3170 = vmatprep.subr.mxu0 0.0
    %3171 = vmatpush1.msra.mxu0 0.0
    %3172 = vmatprep.subr.mxu0 0.0
    %3173 = vmatpush1.msra.mxu0 0.0
    %3174 = vmatprep.subr.mxu0 0.0
    %3175 = vmatpush1.msra.mxu0 0.0
    %3176 = vmatprep.subr.mxu0 0.0
    %3177 = vmatpush1.msra.mxu0 0.0
    %3178 = vmatprep.subr.mxu0 0.0
    %3179 = vmatpush1.msra.mxu0 0.0
    %3180 = vmatprep.subr.mxu0 0.0
    %3181 = vmatpush1.msra.mxu0 0.0
    %3182 = vmatprep.subr.mxu0 0.0
    %3183 = vmatpush1.msra.mxu0 0.0
    %3184 = vmatprep.subr.mxu0 0.0
    %3185 = vmatpush1.msra.mxu0 0.0
    %3186 = vmatprep.subr.mxu0 0.0
    %3187 = vmatpush1.msra.mxu0 0.0
    %3188 = vmatprep.subr.mxu0 0.0
    %3189 = vmatpush1.msra.mxu0 0.0
    %3190 = vmatprep.subr.mxu0 0.0
    %3191 = vmatpush1.msra.mxu0 0.0
    %3192 = vmatprep.subr.mxu0 0.0
    %3193 = vmatpush1.msra.mxu0 0.0
    %3194 = vmatprep.subr.mxu0 0.0
    %3195 = vmatpush1.msra.mxu0 0.0
    %3196 = vmatprep.subr.mxu0 0.0
    %3197 = vmatpush1.msra.mxu0 0.0
    %3198 = vmatprep.subr.mxu0 0.0
    %3199 = vmatpush1.msra.mxu0 0.0
    %3200 = vmatprep.subr.mxu0 0.0
    %3201 = vmatpush1.msra.mxu0 0.0
    %3202 = vmatprep.mubr.f32.mxu0 0.0
    %3203 = vmatmul.mubr.f32.gmra.mrb[0].mxu0 %v3133
    %v3204 = vpop.f32.mrb[0].mxu0
    %v3205 = vadd.f32 0.0, %v3204
    %v3206 = vpop.f32.mrb[0].mxu0
    %v3207 = vadd.f32 0.0, %v3206
    %3208 = vdwg.mxu0
    %3209 = vmatprep.subr.mxu0 0.0
    %3210 = vmatpush1.msra.mxu0 %v2247
    %3211 = vmatprep.subr.mxu0 0.0
    %3212 = vmatpush1.msra.mxu0 %v2250
    %3213 = vmatprep.subr.mxu0 0.0
    %3214 = vmatpush1.msra.mxu0 %v2253
    %3215 = vmatprep.subr.mxu0 0.0
    %3216 = vmatpush1.msra.mxu0 %v2256
    %3217 = vmatprep.subr.mxu0 0.0
    %3218 = vmatpush1.msra.mxu0 %v2259
    %3219 = vmatprep.subr.mxu0 0.0
    %3220 = vmatpush1.msra.mxu0 %v2262
    %3221 = vmatprep.subr.mxu0 0.0
    %3222 = vmatpush1.msra.mxu0 %v2265
    %3223 = vmatprep.subr.mxu0 0.0
    %3224 = vmatpush1.msra.mxu0 %v2268
    %3225 = vmatprep.subr.mxu0 0.0
    %3226 = vmatpush1.msra.mxu0 %v2271
    %3227 = vmatprep.subr.mxu0 0.0
    %3228 = vmatpush1.msra.mxu0 %v2274
    %3229 = vmatprep.subr.mxu0 0.0
    %3230 = vmatpush1.msra.mxu0 %v2277
    %3231 = vmatprep.subr.mxu0 0.0
    %3232 = vmatpush1.msra.mxu0 %v2280
    %3233 = vmatprep.subr.mxu0 0.0
    %3234 = vmatpush1.msra.mxu0 %v2283
    %3235 = vmatprep.subr.mxu0 0.0
    %3236 = vmatpush1.msra.mxu0 %v2286
    %3237 = vmatprep.subr.mxu0 0.0
    %3238 = vmatpush1.msra.mxu0 %v2289
    %3239 = vmatprep.subr.mxu0 0.0
    %3240 = vmatpush1.msra.mxu0 %v2292
    %3241 = vmatprep.subr.mxu0 0.0
    %3242 = vmatpush1.msra.mxu0 0.0
    %3243 = vmatprep.subr.mxu0 0.0
    %3244 = vmatpush1.msra.mxu0 0.0
    %3245 = vmatprep.subr.mxu0 0.0
    %3246 = vmatpush1.msra.mxu0 0.0
    %3247 = vmatprep.subr.mxu0 0.0
    %3248 = vmatpush1.msra.mxu0 0.0
    %3249 = vmatprep.subr.mxu0 0.0
    %3250 = vmatpush1.msra.mxu0 0.0
    %3251 = vmatprep.subr.mxu0 0.0
    %3252 = vmatpush1.msra.mxu0 0.0
    %3253 = vmatprep.subr.mxu0 0.0
    %3254 = vmatpush1.msra.mxu0 0.0
    %3255 = vmatprep.subr.mxu0 0.0
    %3256 = vmatpush1.msra.mxu0 0.0
    %3257 = vmatprep.subr.mxu0 0.0
    %3258 = vmatpush1.msra.mxu0 0.0
    %3259 = vmatprep.subr.mxu0 0.0
    %3260 = vmatpush1.msra.mxu0 0.0
    %3261 = vmatprep.subr.mxu0 0.0
    %3262 = vmatpush1.msra.mxu0 0.0
    %3263 = vmatprep.subr.mxu0 0.0
    %3264 = vmatpush1.msra.mxu0 0.0
    %3265 = vmatprep.subr.mxu0 0.0
    %3266 = vmatpush1.msra.mxu0 0.0
    %3267 = vmatprep.subr.mxu0 0.0
    %3268 = vmatpush1.msra.mxu0 0.0
    %3269 = vmatprep.subr.mxu0 0.0
    %3270 = vmatpush1.msra.mxu0 0.0
    %3271 = vmatprep.subr.mxu0 0.0
    %3272 = vmatpush1.msra.mxu0 0.0
    %3273 = vmatprep.mubr.f32.mxu0 0.0
    %3274 = vmatmul.mubr.f32.gmra.mrb[0].mxu0 %v3133
    %v3275 = vpop.f32.mrb[0].mxu0
    %v3276 = vadd.f32 0.0, %v3275
    %v3277 = vpop.f32.mrb[0].mxu0
    %3278 = vdwg.mxu0
    %v3279 = vadd.f32 %v3135, %v3205
    %v3280 = vxor.u32 %v3279, 2147483648
    %v3281 = vmul.f32 %v3280, 1.442695
    %v3282 = vpow.pop %v3281
    %v3283 = vadd.f32 %v3282, 1.0
    %v3284 = vrcp.pop %v3283
    %v3285 = vmul.f32 1.0, %v3284
    %v3286 = vadd.f32 %v3136, %v3207
    %v3287 = vxor.u32 %v3286, 2147483648
    %v3288 = vmul.f32 %v3287, 1.442695
    %v3289 = vpow.pop %v3288
    %v3290 = vadd.f32 %v3289, 1.0
    %v3291 = vrcp.pop %v3290
    %v3292 = vmul.f32 1.0, %v3291
    %v3293 = vadd.f32 %v3276, %v2298
    %v3294 = vmul.f32 %v3285, %v3293
    %v3295 = vadd.f32 %v3137, %v3294
    %v3296 = vtanh.pop %v3295
    %v3297 = vsub.f32 1.0, %v3292
    %v3298 = vmul.f32 %v3297, %v3296
    %v3299 = vmul.f32 %v3292, %v3133
    %v3300 = vadd.f32 %v3298, %v3299
    %3301 = vst [vmem:[%s1568] sm:$0xff] %v3300
    %v3302 = vld [vmem:[%s1572] sm:$0xff]
    %v3303 = vld [vmem:[%s1572 + $0x8] sm:$0xff]
    %v3304 = vld [vmem:[%s1572 + $0x10] sm:$0xff]
    %3305 = vmatprep.subr.mxu0 %v2246
    %3306 = vmatpush1.msra.mxu0 %v2245
    %3307 = vmatprep.subr.mxu0 %v2249
    %3308 = vmatpush1.msra.mxu0 %v2248
    %3309 = vmatprep.subr.mxu0 %v2252
    %3310 = vmatpush1.msra.mxu0 %v2251
    %3311 = vmatprep.subr.mxu0 %v2255
    %3312 = vmatpush1.msra.mxu0 %v2254
    %3313 = vmatprep.subr.mxu0 %v2258
    %3314 = vmatpush1.msra.mxu0 %v2257
    %3315 = vmatprep.subr.mxu0 %v2261
    %3316 = vmatpush1.msra.mxu0 %v2260
    %3317 = vmatprep.subr.mxu0 %v2264
    %3318 = vmatpush1.msra.mxu0 %v2263
    %3319 = vmatprep.subr.mxu0 %v2267
    %3320 = vmatpush1.msra.mxu0 %v2266
    %3321 = vmatprep.subr.mxu0 %v2270
    %3322 = vmatpush1.msra.mxu0 %v2269
    %3323 = vmatprep.subr.mxu0 %v2273
    %3324 = vmatpush1.msra.mxu0 %v2272
    %3325 = vmatprep.subr.mxu0 %v2276
    %3326 = vmatpush1.msra.mxu0 %v2275
    %3327 = vmatprep.subr.mxu0 %v2279
    %3328 = vmatpush1.msra.mxu0 %v2278
    %3329 = vmatprep.subr.mxu0 %v2282
    %3330 = vmatpush1.msra.mxu0 %v2281
    %3331 = vmatprep.subr.mxu0 %v2285
    %3332 = vmatpush1.msra.mxu0 %v2284
    %3333 = vmatprep.subr.mxu0 %v2288
    %3334 = vmatpush1.msra.mxu0 %v2287
    %3335 = vmatprep.subr.mxu0 %v2291
    %3336 = vmatpush1.msra.mxu0 %v2290
    %3337 = vmatprep.subr.mxu0 0.0
    %3338 = vmatpush1.msra.mxu0 0.0
    %3339 = vmatprep.subr.mxu0 0.0
    %3340 = vmatpush1.msra.mxu0 0.0
    %3341 = vmatprep.subr.mxu0 0.0
    %3342 = vmatpush1.msra.mxu0 0.0
    %3343 = vmatprep.subr.mxu0 0.0
    %3344 = vmatpush1.msra.mxu0 0.0
    %3345 = vmatprep.subr.mxu0 0.0
    %3346 = vmatpush1.msra.mxu0 0.0
    %3347 = vmatprep.subr.mxu0 0.0
    %3348 = vmatpush1.msra.mxu0 0.0
    %3349 = vmatprep.subr.mxu0 0.0
    %3350 = vmatpush1.msra.mxu0 0.0
    %3351 = vmatprep.subr.mxu0 0.0
    %3352 = vmatpush1.msra.mxu0 0.0
    %3353 = vmatprep.subr.mxu0 0.0
    %3354 = vmatpush1.msra.mxu0 0.0
    %3355 = vmatprep.subr.mxu0 0.0
    %3356 = vmatpush1.msra.mxu0 0.0
    %3357 = vmatprep.subr.mxu0 0.0
    %3358 = vmatpush1.msra.mxu0 0.0
    %3359 = vmatprep.subr.mxu0 0.0
    %3360 = vmatpush1.msra.mxu0 0.0
    %3361 = vmatprep.subr.mxu0 0.0
    %3362 = vmatpush1.msra.mxu0 0.0
    %3363 = vmatprep.subr.mxu0 0.0
    %3364 = vmatpush1.msra.mxu0 0.0
    %3365 = vmatprep.subr.mxu0 0.0
    %3366 = vmatpush1.msra.mxu0 0.0
    %3367 = vmatprep.subr.mxu0 0.0
    %3368 = vmatpush1.msra.mxu0 0.0
    %3369 = vmatprep.mubr.f32.mxu0 0.0
    %3370 = vmatmul.mubr.f32.gmra.mrb[0].mxu0 %v3300
    %v3371 = vpop.f32.mrb[0].mxu0
    %v3372 = vadd.f32 0.0, %v3371
    %v3373 = vpop.f32.mrb[0].mxu0
    %v3374 = vadd.f32 0.0, %v3373
    %3375 = vdwg.mxu0
    %3376 = vmatprep.subr.mxu0 0.0
    %3377 = vmatpush1.msra.mxu0 %v2247
    %3378 = vmatprep.subr.mxu0 0.0
    %3379 = vmatpush1.msra.mxu0 %v2250
    %3380 = vmatprep.subr.mxu0 0.0
    %3381 = vmatpush1.msra.mxu0 %v2253
    %3382 = vmatprep.subr.mxu0 0.0
    %3383 = vmatpush1.msra.mxu0 %v2256
    %3384 = vmatprep.subr.mxu0 0.0
    %3385 = vmatpush1.msra.mxu0 %v2259
    %3386 = vmatprep.subr.mxu0 0.0
    %3387 = vmatpush1.msra.mxu0 %v2262
    %3388 = vmatprep.subr.mxu0 0.0
    %3389 = vmatpush1.msra.mxu0 %v2265
    %3390 = vmatprep.subr.mxu0 0.0
    %3391 = vmatpush1.msra.mxu0 %v2268
    %3392 = vmatprep.subr.mxu0 0.0
    %3393 = vmatpush1.msra.mxu0 %v2271
    %3394 = vmatprep.subr.mxu0 0.0
    %3395 = vmatpush1.msra.mxu0 %v2274
    %3396 = vmatprep.subr.mxu0 0.0
    %3397 = vmatpush1.msra.mxu0 %v2277
    %3398 = vmatprep.subr.mxu0 0.0
    %3399 = vmatpush1.msra.mxu0 %v2280
    %3400 = vmatprep.subr.mxu0 0.0
    %3401 = vmatpush1.msra.mxu0 %v2283
    %3402 = vmatprep.subr.mxu0 0.0
    %3403 = vmatpush1.msra.mxu0 %v2286
    %3404 = vmatprep.subr.mxu0 0.0
    %3405 = vmatpush1.msra.mxu0 %v2289
    %3406 = vmatprep.subr.mxu0 0.0
    %3407 = vmatpush1.msra.mxu0 %v2292
    %3408 = vmatprep.subr.mxu0 0.0
    %3409 = vmatpush1.msra.mxu0 0.0
    %3410 = vmatprep.subr.mxu0 0.0
    %3411 = vmatpush1.msra.mxu0 0.0
    %3412 = vmatprep.subr.mxu0 0.0
    %3413 = vmatpush1.msra.mxu0 0.0
    %3414 = vmatprep.subr.mxu0 0.0
    %3415 = vmatpush1.msra.mxu0 0.0
    %3416 = vmatprep.subr.mxu0 0.0
    %3417 = vmatpush1.msra.mxu0 0.0
    %3418 = vmatprep.subr.mxu0 0.0
    %3419 = vmatpush1.msra.mxu0 0.0
    %3420 = vmatprep.subr.mxu0 0.0
    %3421 = vmatpush1.msra.mxu0 0.0
    %3422 = vmatprep.subr.mxu0 0.0
    %3423 = vmatpush1.msra.mxu0 0.0
    %3424 = vmatprep.subr.mxu0 0.0
    %3425 = vmatpush1.msra.mxu0 0.0
    %3426 = vmatprep.subr.mxu0 0.0
    %3427 = vmatpush1.msra.mxu0 0.0
    %3428 = vmatprep.subr.mxu0 0.0
    %3429 = vmatpush1.msra.mxu0 0.0
    %3430 = vmatprep.subr.mxu0 0.0
    %3431 = vmatpush1.msra.mxu0 0.0
    %3432 = vmatprep.subr.mxu0 0.0
    %3433 = vmatpush1.msra.mxu0 0.0
    %3434 = vmatprep.subr.mxu0 0.0
    %3435 = vmatpush1.msra.mxu0 0.0
    %3436 = vmatprep.subr.mxu0 0.0
    %3437 = vmatpush1.msra.mxu0 0.0
    %3438 = vmatprep.subr.mxu0 0.0
    %3439 = vmatpush1.msra.mxu0 0.0
    %3440 = vmatprep.mubr.f32.mxu0 0.0
    %3441 = vmatmul.mubr.f32.gmra.mrb[0].mxu0 %v3300
    %v3442 = vpop.f32.mrb[0].mxu0
    %v3443 = vadd.f32 0.0, %v3442
    %v3444 = vpop.f32.mrb[0].mxu0
    %3445 = vdwg.mxu0
    %v3446 = vadd.f32 %v3302, %v3372
    %v3447 = vxor.u32 %v3446, 2147483648
    %v3448 = vmul.f32 %v3447, 1.442695
    %v3449 = vpow.pop %v3448
    %v3450 = vadd.f32 %v3449, 1.0
    %v3451 = vrcp.pop %v3450
    %v3452 = vmul.f32 1.0, %v3451
    %v3453 = vadd.f32 %v3303, %v3374
    %v3454 = vxor.u32 %v3453, 2147483648
    %v3455 = vmul.f32 %v3454, 1.442695
    %v3456 = vpow.pop %v3455
    %v3457 = vadd.f32 %v3456, 1.0
    %v3458 = vrcp.pop %v3457
    %v3459 = vmul.f32 1.0, %v3458
    %v3460 = vadd.f32 %v3443, %v2298
    %v3461 = vmul.f32 %v3452, %v3460
    %v3462 = vadd.f32 %v3304, %v3461
    %v3463 = vtanh.pop %v3462
    %v3464 = vsub.f32 1.0, %v3459
    %v3465 = vmul.f32 %v3464, %v3463
    %v3466 = vmul.f32 %v3459, %v3300
    %v3467 = vadd.f32 %v3465, %v3466
    %3468 = vst [vmem:[%s1748] sm:$0xff] %v3467
    %v3469 = vld [vmem:[%s1752] sm:$0xff]
    %v3470 = vld [vmem:[%s1752 + $0x8] sm:$0xff]
    %v3471 = vld [vmem:[%s1752 + $0x10] sm:$0xff]
    %3472 = vmatprep.subr.mxu0 %v2246
    %3473 = vmatpush1.msra.mxu0 %v2245
    %3474 = vmatprep.subr.mxu0 %v2249
    %3475 = vmatpush1.msra.mxu0 %v2248
    %3476 = vmatprep.subr.mxu0 %v2252
    %3477 = vmatpush1.msra.mxu0 %v2251
    %3478 = vmatprep.subr.mxu0 %v2255
    %3479 = vmatpush1.msra.mxu0 %v2254
    %3480 = vmatprep.subr.mxu0 %v2258
    %3481 = vmatpush1.msra.mxu0 %v2257
    %3482 = vmatprep.subr.mxu0 %v2261
    %3483 = vmatpush1.msra.mxu0 %v2260
    %3484 = vmatprep.subr.mxu0 %v2264
    %3485 = vmatpush1.msra.mxu0 %v2263
    %3486 = vmatprep.subr.mxu0 %v2267
    %3487 = vmatpush1.msra.mxu0 %v2266
    %3488 = vmatprep.subr.mxu0 %v2270
    %3489 = vmatpush1.msra.mxu0 %v2269
    %3490 = vmatprep.subr.mxu0 %v2273
    %3491 = vmatpush1.msra.mxu0 %v2272
    %3492 = vmatprep.subr.mxu0 %v2276
    %3493 = vmatpush1.msra.mxu0 %v2275
    %3494 = vmatprep.subr.mxu0 %v2279
    %3495 = vmatpush1.msra.mxu0 %v2278
    %3496 = vmatprep.subr.mxu0 %v2282
    %3497 = vmatpush1.msra.mxu0 %v2281
    %3498 = vmatprep.subr.mxu0 %v2285
    %3499 = vmatpush1.msra.mxu0 %v2284
    %3500 = vmatprep.subr.mxu0 %v2288
    %3501 = vmatpush1.msra.mxu0 %v2287
    %3502 = vmatprep.subr.mxu0 %v2291
    %3503 = vmatpush1.msra.mxu0 %v2290
    %3504 = vmatprep.subr.mxu0 0.0
    %3505 = vmatpush1.msra.mxu0 0.0
    %3506 = vmatprep.subr.mxu0 0.0
    %3507 = vmatpush1.msra.mxu0 0.0
    %3508 = vmatprep.subr.mxu0 0.0
    %3509 = vmatpush1.msra.mxu0 0.0
    %3510 = vmatprep.subr.mxu0 0.0
    %3511 = vmatpush1.msra.mxu0 0.0
    %3512 = vmatprep.subr.mxu0 0.0
    %3513 = vmatpush1.msra.mxu0 0.0
    %3514 = vmatprep.subr.mxu0 0.0
    %3515 = vmatpush1.msra.mxu0 0.0
    %3516 = vmatprep.subr.mxu0 0.0
    %3517 = vmatpush1.msra.mxu0 0.0
    %3518 = vmatprep.subr.mxu0 0.0
    %3519 = vmatpush1.msra.mxu0 0.0
    %3520 = vmatprep.subr.mxu0 0.0
    %3521 = vmatpush1.msra.mxu0 0.0
    %3522 = vmatprep.subr.mxu0 0.0
    %3523 = vmatpush1.msra.mxu0 0.0
    %3524 = vmatprep.subr.mxu0 0.0
    %3525 = vmatpush1.msra.mxu0 0.0
    %3526 = vmatprep.subr.mxu0 0.0
    %3527 = vmatpush1.msra.mxu0 0.0
    %3528 = vmatprep.subr.mxu0 0.0
    %3529 = vmatpush1.msra.mxu0 0.0
    %3530 = vmatprep.subr.mxu0 0.0
    %3531 = vmatpush1.msra.mxu0 0.0
    %3532 = vmatprep.subr.mxu0 0.0
    %3533 = vmatpush1.msra.mxu0 0.0
    %3534 = vmatprep.subr.mxu0 0.0
    %3535 = vmatpush1.msra.mxu0 0.0
    %3536 = vmatprep.mubr.f32.mxu0 0.0
    %3537 = vmatmul.mubr.f32.gmra.mrb[0].mxu0 %v3467
    %v3538 = vpop.f32.mrb[0].mxu0
    %v3539 = vadd.f32 0.0, %v3538
    %v3540 = vpop.f32.mrb[0].mxu0
    %v3541 = vadd.f32 0.0, %v3540
    %3542 = vdwg.mxu0
    %3543 = vmatprep.subr.mxu0 0.0
    %3544 = vmatpush1.msra.mxu0 %v2247
    %3545 = vmatprep.subr.mxu0 0.0
    %3546 = vmatpush1.msra.mxu0 %v2250
    %3547 = vmatprep.subr.mxu0 0.0
    %3548 = vmatpush1.msra.mxu0 %v2253
    %3549 = vmatprep.subr.mxu0 0.0
    %3550 = vmatpush1.msra.mxu0 %v2256
    %3551 = vmatprep.subr.mxu0 0.0
    %3552 = vmatpush1.msra.mxu0 %v2259
    %3553 = vmatprep.subr.mxu0 0.0
    %3554 = vmatpush1.msra.mxu0 %v2262
    %3555 = vmatprep.subr.mxu0 0.0
    %3556 = vmatpush1.msra.mxu0 %v2265
    %3557 = vmatprep.subr.mxu0 0.0
    %3558 = vmatpush1.msra.mxu0 %v2268
    %3559 = vmatprep.subr.mxu0 0.0
    %3560 = vmatpush1.msra.mxu0 %v2271
    %3561 = vmatprep.subr.mxu0 0.0
    %3562 = vmatpush1.msra.mxu0 %v2274
    %3563 = vmatprep.subr.mxu0 0.0
    %3564 = vmatpush1.msra.mxu0 %v2277
    %3565 = vmatprep.subr.mxu0 0.0
    %3566 = vmatpush1.msra.mxu0 %v2280
    %3567 = vmatprep.subr.mxu0 0.0
    %3568 = vmatpush1.msra.mxu0 %v2283
    %3569 = vmatprep.subr.mxu0 0.0
    %3570 = vmatpush1.msra.mxu0 %v2286
    %3571 = vmatprep.subr.mxu0 0.0
    %3572 = vmatpush1.msra.mxu0 %v2289
    %3573 = vmatprep.subr.mxu0 0.0
    %3574 = vmatpush1.msra.mxu0 %v2292
    %3575 = vmatprep.subr.mxu0 0.0
    %3576 = vmatpush1.msra.mxu0 0.0
    %3577 = vmatprep.subr.mxu0 0.0
    %3578 = vmatpush1.msra.mxu0 0.0
    %3579 = vmatprep.subr.mxu0 0.0
    %3580 = vmatpush1.msra.mxu0 0.0
    %3581 = vmatprep.subr.mxu0 0.0
    %3582 = vmatpush1.msra.mxu0 0.0
    %3583 = vmatprep.subr.mxu0 0.0
    %3584 = vmatpush1.msra.mxu0 0.0
    %3585 = vmatprep.subr.mxu0 0.0
    %3586 = vmatpush1.msra.mxu0 0.0
    %3587 = vmatprep.subr.mxu0 0.0
    %3588 = vmatpush1.msra.mxu0 0.0
    %3589 = vmatprep.subr.mxu0 0.0
    %3590 = vmatpush1.msra.mxu0 0.0
    %3591 = vmatprep.subr.mxu0 0.0
    %3592 = vmatpush1.msra.mxu0 0.0
    %3593 = vmatprep.subr.mxu0 0.0
    %3594 = vmatpush1.msra.mxu0 0.0
    %3595 = vmatprep.subr.mxu0 0.0
    %3596 = vmatpush1.msra.mxu0 0.0
    %3597 = vmatprep.subr.mxu0 0.0
    %3598 = vmatpush1.msra.mxu0 0.0
    %3599 = vmatprep.subr.mxu0 0.0
    %3600 = vmatpush1.msra.mxu0 0.0
    %3601 = vmatprep.subr.mxu0 0.0
    %3602 = vmatpush1.msra.mxu0 0.0
    %3603 = vmatprep.subr.mxu0 0.0
    %3604 = vmatpush1.msra.mxu0 0.0
    %3605 = vmatprep.subr.mxu0 0.0
    %3606 = vmatpush1.msra.mxu0 0.0
    %3607 = vmatprep.mubr.f32.mxu0 0.0
    %3608 = vmatmul.mubr.f32.gmra.mrb[0].mxu0 %v3467
    %v3609 = vpop.f32.mrb[0].mxu0
    %v3610 = vadd.f32 0.0, %v3609
    %v3611 = vpop.f32.mrb[0].mxu0
    %3612 = vdwg.mxu0
    %v3613 = vadd.f32 %v3469, %v3539
    %v3614 = vxor.u32 %v3613, 2147483648
    %v3615 = vmul.f32 %v3614, 1.442695
    %v3616 = vpow.pop %v3615
    %v3617 = vadd.f32 %v3616, 1.0
    %v3618 = vrcp.pop %v3617
    %v3619 = vmul.f32 1.0, %v3618
    %v3620 = vadd.f32 %v3470, %v3541
    %v3621 = vxor.u32 %v3620, 2147483648
    %v3622 = vmul.f32 %v3621, 1.442695
    %v3623 = vpow.pop %v3622
    %v3624 = vadd.f32 %v3623, 1.0
    %v3625 = vrcp.pop %v3624
    %v3626 = vmul.f32 1.0, %v3625
    %v3627 = vadd.f32 %v3610, %v2298
    %v3628 = vmul.f32 %v3619, %v3627
    %v3629 = vadd.f32 %v3471, %v3628
    %v3630 = vtanh.pop %v3629
    %v3631 = vsub.f32 1.0, %v3626
    %v3632 = vmul.f32 %v3631, %v3630
    %v3633 = vmul.f32 %v3626, %v3467
    %v3634 = vadd.f32 %v3632, %v3633
    %3635 = vst [vmem:[%s1928] sm:$0xff] %v3634
    %v3636 = vmax.f32 %v3634, 0.0
    %v3637 = vld [vmem:[#allocation10] sm:$0xff]
    %v3638 = vld [vmem:[#allocation10 + $0x8] sm:$0xff]
    %v3639 = vld [vmem:[#allocation10 + $0x10] sm:$0xff]
    %v3640 = vld [vmem:[#allocation10 + $0x18] sm:$0xff]
    %v3641 = vld [vmem:[#allocation10 + $0x20] sm:$0xff]
    %v3642 = vld [vmem:[#allocation10 + $0x28] sm:$0xff]
    %v3643 = vld [vmem:[#allocation10 + $0x30] sm:$0xff]
    %v3644 = vld [vmem:[#allocation10 + $0x38] sm:$0xff]
    %v3645 = vld [vmem:[#allocation10 + $0x40] sm:$0xff]
    %v3646 = vld [vmem:[#allocation10 + $0x48] sm:$0xff]
    %v3647 = vld [vmem:[#allocation10 + $0x50] sm:$0xff]
    %v3648 = vld [vmem:[#allocation10 + $0x58] sm:$0xff]
    %v3649 = vld [vmem:[#allocation10 + $0x60] sm:$0xff]
    %v3650 = vld [vmem:[#allocation10 + $0x68] sm:$0xff]
    %v3651 = vld [vmem:[#allocation10 + $0x70] sm:$0xff]
    %v3652 = vld [vmem:[#allocation10 + $0x78] sm:$0xff]
    %v3653 = vld [vmem:[%s9] sm:$0x1]
    %v3655 = vlaneseq
    %v3656 = vshrl.u32 %v3655, 7
    %v3657 = vsub.s32 0, %v3656
    %v3658 = vrot.slane %v3653, %v3657
    %3660 = vmatprep.subr.mxu0 0.0
    %3661 = vmatpush1.msra.mxu0 %v3637
    %3662 = vmatprep.subr.mxu0 0.0
    %3663 = vmatpush1.msra.mxu0 %v3638
    %3664 = vmatprep.subr.mxu0 0.0
    %3665 = vmatpush1.msra.mxu0 %v3639
    %3666 = vmatprep.subr.mxu0 0.0
    %3667 = vmatpush1.msra.mxu0 %v3640
    %3668 = vmatprep.subr.mxu0 0.0
    %3669 = vmatpush1.msra.mxu0 %v3641
    %3670 = vmatprep.subr.mxu0 0.0
    %3671 = vmatpush1.msra.mxu0 %v3642
    %3672 = vmatprep.subr.mxu0 0.0
    %3673 = vmatpush1.msra.mxu0 %v3643
    %3674 = vmatprep.subr.mxu0 0.0
    %3675 = vmatpush1.msra.mxu0 %v3644
    %3676 = vmatprep.subr.mxu0 0.0
    %3677 = vmatpush1.msra.mxu0 %v3645
    %3678 = vmatprep.subr.mxu0 0.0
    %3679 = vmatpush1.msra.mxu0 %v3646
    %3680 = vmatprep.subr.mxu0 0.0
    %3681 = vmatpush1.msra.mxu0 %v3647
    %3682 = vmatprep.subr.mxu0 0.0
    %3683 = vmatpush1.msra.mxu0 %v3648
    %3684 = vmatprep.subr.mxu0 0.0
    %3685 = vmatpush1.msra.mxu0 %v3649
    %3686 = vmatprep.subr.mxu0 0.0
    %3687 = vmatpush1.msra.mxu0 %v3650
    %3688 = vmatprep.subr.mxu0 0.0
    %3689 = vmatpush1.msra.mxu0 %v3651
    %3690 = vmatprep.subr.mxu0 0.0
    %3691 = vmatpush1.msra.mxu0 %v3652
    %3692 = vmatprep.subr.mxu0 0.0
    %3693 = vmatpush1.msra.mxu0 0.0
    %3694 = vmatprep.subr.mxu0 0.0
    %3695 = vmatpush1.msra.mxu0 0.0
    %3696 = vmatprep.subr.mxu0 0.0
    %3697 = vmatpush1.msra.mxu0 0.0
    %3698 = vmatprep.subr.mxu0 0.0
    %3699 = vmatpush1.msra.mxu0 0.0
    %3700 = vmatprep.subr.mxu0 0.0
    %3701 = vmatpush1.msra.mxu0 0.0
    %3702 = vmatprep.subr.mxu0 0.0
    %3703 = vmatpush1.msra.mxu0 0.0
    %3704 = vmatprep.subr.mxu0 0.0
    %3705 = vmatpush1.msra.mxu0 0.0
    %3706 = vmatprep.subr.mxu0 0.0
    %3707 = vmatpush1.msra.mxu0 0.0
    %3708 = vmatprep.subr.mxu0 0.0
    %3709 = vmatpush1.msra.mxu0 0.0
    %3710 = vmatprep.subr.mxu0 0.0
    %3711 = vmatpush1.msra.mxu0 0.0
    %3712 = vmatprep.subr.mxu0 0.0
    %3713 = vmatpush1.msra.mxu0 0.0
    %3714 = vmatprep.subr.mxu0 0.0
    %3715 = vmatpush1.msra.mxu0 0.0
    %3716 = vmatprep.subr.mxu0 0.0
    %3717 = vmatpush1.msra.mxu0 0.0
    %3718 = vmatprep.subr.mxu0 0.0
    %3719 = vmatpush1.msra.mxu0 0.0
    %3720 = vmatprep.subr.mxu0 0.0
    %3721 = vmatpush1.msra.mxu0 0.0
    %3722 = vmatprep.subr.mxu0 0.0
    %3723 = vmatpush1.msra.mxu0 0.0
    %3724 = vmatprep.mubr.f32.mxu0 0.0
    %3725 = vmatmul.mubr.f32.gmra.mrb[0].mxu0 %v3636
    %v3726 = vpop.f32.mrb[0].mxu0
    %v3727 = vadd.f32 %v3658, %v3726
    %v3728 = vpop.f32.mrb[0].mxu0
    %3729 = vdwg.mxu0
    %v3730 = vmax.f32 %v3727, 0.0
    %v3731 = vld [vmem:[#allocation12] sm:$0xff]
    %v3732 = vld [vmem:[#allocation12 + $0x8] sm:$0xff]
    %v3733 = vld [vmem:[#allocation12 + $0x10] sm:$0xff]
    %v3734 = vld [vmem:[#allocation12 + $0x18] sm:$0xff]
    %v3735 = vld [vmem:[#allocation12 + $0x20] sm:$0xff]
    %v3736 = vld [vmem:[#allocation12 + $0x28] sm:$0xff]
    %v3737 = vld [vmem:[#allocation12 + $0x30] sm:$0xff]
    %v3738 = vld [vmem:[#allocation12 + $0x38] sm:$0xff]
    %v3739 = vld [vmem:[#allocation12 + $0x40] sm:$0xff]
    %v3740 = vld [vmem:[#allocation12 + $0x48] sm:$0xff]
    %v3741 = vld [vmem:[#allocation12 + $0x50] sm:$0xff]
    %v3742 = vld [vmem:[#allocation12 + $0x58] sm:$0xff]
    %v3743 = vld [vmem:[#allocation12 + $0x60] sm:$0xff]
    %v3744 = vld [vmem:[#allocation12 + $0x68] sm:$0xff]
    %v3745 = vld [vmem:[#allocation12 + $0x70] sm:$0xff]
    %v3746 = vld [vmem:[#allocation12 + $0x78] sm:$0xff]
    %v3747 = vld [vmem:[%s11] sm:$0x1]
    %v3749 = vlaneseq
    %v3750 = vshrl.u32 %v3749, 7
    %v3751 = vsub.s32 0, %v3750
    %v3752 = vrot.slane %v3747, %v3751
    %3754 = vmatprep.subr.mxu0 0.0
    %3755 = vmatpush1.msra.mxu0 %v3731
    %3756 = vmatprep.subr.mxu0 0.0
    %3757 = vmatpush1.msra.mxu0 %v3732
    %3758 = vmatprep.subr.mxu0 0.0
    %3759 = vmatpush1.msra.mxu0 %v3733
    %3760 = vmatprep.subr.mxu0 0.0
    %3761 = vmatpush1.msra.mxu0 %v3734
    %3762 = vmatprep.subr.mxu0 0.0
    %3763 = vmatpush1.msra.mxu0 %v3735
    %3764 = vmatprep.subr.mxu0 0.0
    %3765 = vmatpush1.msra.mxu0 %v3736
    %3766 = vmatprep.subr.mxu0 0.0
    %3767 = vmatpush1.msra.mxu0 %v3737
    %3768 = vmatprep.subr.mxu0 0.0
    %3769 = vmatpush1.msra.mxu0 %v3738
    %3770 = vmatprep.subr.mxu0 0.0
    %3771 = vmatpush1.msra.mxu0 %v3739
    %3772 = vmatprep.subr.mxu0 0.0
    %3773 = vmatpush1.msra.mxu0 %v3740
    %3774 = vmatprep.subr.mxu0 0.0
    %3775 = vmatpush1.msra.mxu0 %v3741
    %3776 = vmatprep.subr.mxu0 0.0
    %3777 = vmatpush1.msra.mxu0 %v3742
    %3778 = vmatprep.subr.mxu0 0.0
    %3779 = vmatpush1.msra.mxu0 %v3743
    %3780 = vmatprep.subr.mxu0 0.0
    %3781 = vmatpush1.msra.mxu0 %v3744
    %3782 = vmatprep.subr.mxu0 0.0
    %3783 = vmatpush1.msra.mxu0 %v3745
    %3784 = vmatprep.subr.mxu0 0.0
    %3785 = vmatpush1.msra.mxu0 %v3746
    %3786 = vmatprep.subr.mxu0 0.0
    %3787 = vmatpush1.msra.mxu0 0.0
    %3788 = vmatprep.subr.mxu0 0.0
    %3789 = vmatpush1.msra.mxu0 0.0
    %3790 = vmatprep.subr.mxu0 0.0
    %3791 = vmatpush1.msra.mxu0 0.0
    %3792 = vmatprep.subr.mxu0 0.0
    %3793 = vmatpush1.msra.mxu0 0.0
    %3794 = vmatprep.subr.mxu0 0.0
    %3795 = vmatpush1.msra.mxu0 0.0
    %3796 = vmatprep.subr.mxu0 0.0
    %3797 = vmatpush1.msra.mxu0 0.0
    %3798 = vmatprep.subr.mxu0 0.0
    %3799 = vmatpush1.msra.mxu0 0.0
    %3800 = vmatprep.subr.mxu0 0.0
    %3801 = vmatpush1.msra.mxu0 0.0
    %3802 = vmatprep.subr.mxu0 0.0
    %3803 = vmatpush1.msra.mxu0 0.0
    %3804 = vmatprep.subr.mxu0 0.0
    %3805 = vmatpush1.msra.mxu0 0.0
    %3806 = vmatprep.subr.mxu0 0.0
    %3807 = vmatpush1.msra.mxu0 0.0
    %3808 = vmatprep.subr.mxu0 0.0
    %3809 = vmatpush1.msra.mxu0 0.0
    %3810 = vmatprep.subr.mxu0 0.0
    %3811 = vmatpush1.msra.mxu0 0.0
    %3812 = vmatprep.subr.mxu0 0.0
    %3813 = vmatpush1.msra.mxu0 0.0
    %3814 = vmatprep.subr.mxu0 0.0
    %3815 = vmatpush1.msra.mxu0 0.0
    %3816 = vmatprep.subr.mxu0 0.0
    %3817 = vmatpush1.msra.mxu0 0.0
    %3818 = vmatprep.mubr.f32.mxu0 0.0
    %3819 = vmatmul.mubr.f32.gmra.mrb[0].mxu0 %v3730
    %v3820 = vpop.f32.mrb[0].mxu0
    %v3821 = vadd.f32 %v3752, %v3820
    %v3822 = vpop.f32.mrb[0].mxu0
    %3823 = vdwg.mxu0
    %3824 = vst [vmem:[#allocation13] sm:$0xff] %v3821
    // Predicated region
    $region70: #{tpu_custom_call.1} parent=1 // pred_check
      _
    $region71: #{tpu_custom_call.1} parent=1 // pred_check_branch
      %3826 = sbr.rel (0) target = $region73
    $region72: #{tpu_custom_call.1} parent=1 // pred_region
      %s3828 = ssub.s32 128, 128
      %3829 = vsyncadd [#allocation6], %s3828
      %s3831 = sshll.u32 [#allocation13], 4
      %s3832 = int_to_ptr.vmem [resolvable:$true] %s3831
      %3834 = dma.vmem_to_hbm [thread:$0]  %s3832, 128, %s12, [#allocation6]
    $region73: #{tpu_custom_call.1} parent=1 // pred_fallthru
      _
    // Predicated region
    $region74: #{tpu_custom_call.1} parent=1 // pred_check
      _
    $region75: #{tpu_custom_call.1} parent=1 // pred_check_branch
      %3836 = sbr.rel (0) target = $region77
    $region76: #{tpu_custom_call.1} parent=1 // pred_region
      %3837 = dma.done [#allocation6], 128
    $region77: #{tpu_custom_call.1} parent=1 // pred_fallthru
      _
    %3838 = vsyncpa [#allocation5], 1
    %3839 = vsyncpa [#allocation8], 1
    %3840 = vsyncpa [#allocation11], 1
    %3841 = vsyncpa [#allocation6], 1

</llo_original>
